<compile_context>
chip_gen: v7x
topology: tpu7x:2x2x1
jax: 0.10.0
libtpu: 0.0.40
codegen_flags: <defaults>
</compile_context>

<pallas_src>
import math

import jax
import jax.numpy as jnp
from jax.experimental import pallas as pl
from jax.experimental.pallas import tpu as pltpu

# ----------------------------- model hyper-params (small, consistent w/ module) ----
B = 2          # batch
T = 8          # caption length (max seq len)
D = 128        # word_dim (BERT-hidden stand-in)
E = 256        # embed_size
H = E // 2     # GRU hidden per direction (bidirectional)
DH = D // 2    # PIE attention hidden (word_dim // 2)
N_HEAD = 1     # num_embeds (-> MultiHeadSelfAttention n_head == 1, output squeezed)
VOCAB = 64
DV = 128       # figure-encoder hidden / pooler dim (stand-in for ViLT 768)
PATCH = 8
IMG = 16
FIG_F = 3 * PATCH * PATCH   # flattened patch features

LN_EPS = 1e-5


# ===================================================================================
# Single fused kernel:
#   Stage A : wemb = LN2( LN1( wemb0 + softmax_T(traces+gumbel) * wemb0 ) @ W_tr + b )
#   Stage B : bidirectional GRU final hiddens (packed-sequence semantics via masking)
#   Stage C : PIENet (self-attn pooling, sigmoid(fc), residual LayerNorm) + l2norm
#   Stage D : figure-encoder stand-in (patch-embed matmul + mean pool + pooler tanh)
# ===================================================================================
def fused_kernel(wemb0_ref, glog_ref, len_ref, patch_ref,
                 ln1w_ref, ln1b_ref, tw_ref, tb_ref, ln2w_ref, ln2b_ref,
                 wih_ref, bih_ref, whhf_ref, bhhf_ref, whhb_ref, bhhb_ref,
                 pw1_ref, pw2_ref, pfcw_ref, pfcb_ref, plnw_ref, plnb_ref,
                 fpw_ref, fpb_ref, fow_ref, fob_ref,
                 fig_out, txt_out, attn_out, res_out):
    f32 = jnp.float32
    b, t, d = wemb0_ref.shape
    hidden = whhf_ref.shape[0]

    def layernorm(v, w, bias):
        mu = jnp.mean(v, axis=-1, keepdims=True)
        var = jnp.mean((v - mu) ** 2, axis=-1, keepdims=True)
        return (v - mu) * jax.lax.rsqrt(var + LN_EPS) * w + bias

    # ----------------- Stage A: gumbel-softmax gating + LN -> trace_fc -> LN --------
    logits = glog_ref[...]                                   # (B, T, 1) gumbel-perturbed
    m = jnp.max(logits, axis=1, keepdims=True)
    e = jnp.exp(logits - m)
    g = e / jnp.sum(e, axis=1, keepdims=True)                # softmax over T

    x3 = wemb0_ref[...] * (1.0 + g)                          # wemb + g * wemb
    x2 = x3.reshape(b * t, d)                                # (B*T, D) lane-dense slab

    x2 = layernorm(x2, ln1w_ref[...], ln1b_ref[...])
    x2 = jnp.dot(x2, tw_ref[...], preferred_element_type=f32) + tb_ref[...]
    wemb2 = layernorm(x2, ln2w_ref[...], ln2b_ref[...])      # (B*T, D)
    wemb3 = wemb2.reshape(b, t, d)

    # ----------------- validity masks (packed-sequence / pad mask) ------------------
    lens3 = len_ref[...][:, :, None]                                          # (B,1,1)
    valid3 = jax.lax.broadcasted_iota(jnp.int32, (b, t, 1), 1) < lens3        # (B,T,1)

    # ----------------- Stage B: bidirectional GRU -----------------------------------
    # Hoisted input projections: one (B*T, D) @ (D, 6H) matmul for both directions.
    gi_all = jnp.dot(wemb2, wih_ref[...], preferred_element_type=f32) + bih_ref[...]
    gi3 = gi_all.reshape(b, t, 6 * hidden)
    gi_f = gi3[:, :, :3 * hidden]                            # (B, T, 3H)
    gi_b = gi3[:, :, 3 * hidden:]

    whh_f = whhf_ref[...]
    bhh_f = bhhf_ref[...]
    whh_b = whhb_ref[...]
    bhh_b = bhhb_ref[...]

    def gru_cell(gi, h, whh, bhh):
        gh = jnp.dot(h, whh, preferred_element_type=f32) + bhh        # (B, 3H)
        i_r, i_z, i_n = gi[:, :hidden], gi[:, hidden:2 * hidden], gi[:, 2 * hidden:]
        h_r, h_z, h_n = gh[:, :hidden], gh[:, hidden:2 * hidden], gh[:, 2 * hidden:]
        r = jax.nn.sigmoid(i_r + h_r)
        z = jax.nn.sigmoid(i_z + h_z)
        n = jnp.tanh(i_n + r * h_n)
        return (1.0 - z) * n + z * h

    hf = jnp.zeros((b, hidden), f32)
    hb = jnp.zeros((b, hidden), f32)
    # Fully unrolled static time loop (T=8); only the recurrent matmuls remain here.
    for s in range(t):
        tb_ = t - 1 - s                                      # backward time index
        new_hf = gru_cell(gi_f[:, s, :], hf, whh_f, bhh_f)
        new_hb = gru_cell(gi_b[:, tb_, :], hb, whh_b, bhh_b)
        hf = jnp.where(valid3[:, s, :], new_hf, hf)          # freeze once t >= length
        hb = jnp.where(valid3[:, tb_, :], new_hb, hb)        # skip padded tail steps

    # h_n.permute(1,0,2).view(-1, embed_size) -> [h_fwd | h_bwd] per sample
    rnn_out = jnp.concatenate([hf, hb], axis=-1)             # (B, E)

    # ----------------- Stage C: PIENet (n_head == 1) + l2norm -----------------------
    h2 = jnp.tanh(jnp.dot(wemb2, pw1_ref[...], preferred_element_type=f32))   # (B*T, DH)
    # N=1 "matmul" done as a VPU lane reduction against the w2 row.
    att_col = jnp.sum(h2 * pw2_ref[...], axis=-1, keepdims=True)              # (B*T, 1)
    att3 = att_col.reshape(b, t, 1)
    att3 = jnp.where(valid3, att3, -jnp.inf)                 # pad mask (t >= length)

    m2 = jnp.max(att3, axis=1, keepdims=True)
    e2 = jnp.exp(att3 - m2)
    attn = e2 / jnp.sum(e2, axis=1, keepdims=True)           # softmax over sequence
    attn_out[...] = attn

    pooled = jnp.sum(attn * wemb3, axis=1)                   # (B, D) (n_head==1 squeeze)
    residual = jax.nn.sigmoid(
        jnp.dot(pooled, pfcw_ref[...], preferred_element_type=f32) + pfcb_ref[...])
    res_out[...] = residual

    z = layernorm(rnn_out + residual, plnw_ref[...], plnb_ref[...])
    nrm = jnp.sqrt(jnp.sum(z * z, axis=-1, keepdims=True))   # l2norm
    txt_out[...] = z / nrm

    # ----------------- Stage D: figure-encoder stand-in -----------------------------
    # TODO(synk): the full pretrained 12-layer ViLT transformer (image+OCR-text
    #             co-attention) is not replicated; only patch-embed matmul + mean
    #             pool + pooler (dense+tanh).
    p = patch_ref[...]                                       # (B, P, F)
    bp, npatch, ff = p.shape
    emb = jnp.dot(p.reshape(bp * npatch, ff), fpw_ref[...],
                  preferred_element_type=f32) + fpb_ref[...]
    pooled_fig = jnp.mean(emb.reshape(bp, npatch, -1), axis=1)      # (B, DV)
    fig_out[...] = jnp.tanh(
        jnp.dot(pooled_fig, fow_ref[...], preferred_element_type=f32) + fob_ref[...])


# ===================================================================================
# Full forward (glue): Ours_VILT_Trace.forward(fig_ocr, spoken_output, pointer_target,
#                                              cap_lengths)
# ===================================================================================
def ours_vilt_trace_forward(params, fig_ocr, spoken_output, pointer_target,
                            cap_lengths, key):
    # --- image -> unfolded patches (NCHW like PyTorch) ---
    pv = fig_ocr["pixel_values"]
    b, c, hh, ww = pv.shape
    ph, pw = hh // PATCH, ww // PATCH
    patches = pv.reshape(b, c, ph, PATCH, pw, PATCH)
    patches = jnp.transpose(patches, (0, 2, 4, 1, 3, 5)).reshape(
        b, ph * pw, c * PATCH * PATCH)
    # TODO(synk): fig_ocr["input_ids"] (OCR text branch of ViLT) is not consumed.

    # --- text inputs ---
    # TODO(synk): pretrained BertModel (frozen, no_grad) replaced by a deterministic
    #             embedding-table lookup producing wemb_out.
    wemb0 = jnp.take(params["emb_table"], spoken_output, axis=0)          # (B, T, D)
    t = wemb0.shape[1]

    # gumbel-softmax noise (tau = 1, hard = False); softmax happens inside the kernel
    g = jax.random.gumbel(key, pointer_target.shape, dtype=jnp.float32)
    glog = ((pointer_target.astype(jnp.float32) + g) / 1.0)[:, :, None]   # (B, T, 1)

    lens = cap_lengths.reshape(b, 1).astype(jnp.int32)

    # concatenated fwd/bwd input-projection weights for the hoisted GRU matmul
    wih_cat = jnp.concatenate([params["gru_wih_f"], params["gru_wih_b"]], axis=1)
    bih_cat = jnp.concatenate([params["gru_bih_f"], params["gru_bih_b"]], axis=1)

    vmem = pl.BlockSpec(memory_space=pltpu.MemorySpace.VMEM)
    fig_emb, txt_emb, txt_attn, txt_residual = pl.pallas_call(
        fused_kernel,
        out_shape=(jax.ShapeDtypeStruct((b, DV), jnp.float32),
                   jax.ShapeDtypeStruct((b, E), jnp.float32),
                   jax.ShapeDtypeStruct((b, t, 1), jnp.float32),
                   jax.ShapeDtypeStruct((b, E), jnp.float32)),
        in_specs=[vmem] * 26,
        out_specs=(vmem, vmem, vmem, vmem),
    )(wemb0, glog, lens, patches,
      params["ln1_w"], params["ln1_b"], params["trace_w"], params["trace_b"],
      params["ln2_w"], params["ln2_b"],
      wih_cat, bih_cat,
      params["gru_whh_f"], params["gru_bhh_f"], params["gru_whh_b"], params["gru_bhh_b"],
      params["pie_w1"], params["pie_w2"],
      params["pie_fc_w"], params["pie_fc_b"], params["pie_ln_w"], params["pie_ln_b"],
      params["fig_patch_w"], params["fig_patch_b"],
      params["fig_pool_w"], params["fig_pool_b"])

    # dropout layers -> identity (inference); self.abs is False (no `order`), so no abs.
    return fig_emb, txt_emb, txt_attn, txt_residual


# ----------------------------------- parameters ------------------------------------
def init_params(key):
    ks = iter(jax.random.split(key, 32))

    def uni(k, shape, scale):
        return jax.random.uniform(k, shape, jnp.float32, -scale, scale)

    def xavier(k, shape):
        limit = math.sqrt(6.0 / (shape[0] + shape[1]))
        return jax.random.uniform(k, shape, jnp.float32, -limit, limit)

    p = {}
    p["emb_table"] = 0.02 * jax.random.normal(next(ks), (VOCAB, D), jnp.float32)

    p["ln1_w"] = jnp.ones((1, D), jnp.float32)
    p["ln1_b"] = jnp.zeros((1, D), jnp.float32)
    p["ln2_w"] = jnp.ones((1, D), jnp.float32)
    p["ln2_b"] = jnp.zeros((1, D), jnp.float32)
    s = 1.0 / math.sqrt(D)
    p["trace_w"] = uni(next(ks), (D, D), s)       # stored as (in, out)
    p["trace_b"] = uni(next(ks), (1, D), s)

    sh = 1.0 / math.sqrt(H)
    for d in ("f", "b"):
        p[f"gru_wih_{d}"] = uni(next(ks), (D, 3 * H), sh)   # (in, 3H) gate order [r|z|n]
        p[f"gru_whh_{d}"] = uni(next(ks), (H, 3 * H), sh)
        p[f"gru_bih_{d}"] = uni(next(ks), (1, 3 * H), sh)
        p[f"gru_bhh_{d}"] = uni(next(ks), (1, 3 * H), sh)

    p["pie_w1"] = xavier(next(ks), (D, DH))
    p["pie_w2"] = xavier(next(ks), (1, DH))       # w_2 stored as a row (VPU reduce)
    p["pie_fc_w"] = xavier(next(ks), (D, E))
    p["pie_fc_b"] = jnp.zeros((1, E), jnp.float32)
    p["pie_ln_w"] = jnp.ones((1, E), jnp.float32)
    p["pie_ln_b"] = jnp.zeros((1, E), jnp.float32)

    p["fig_patch_w"] = 0.02 * jax.random.normal(next(ks), (FIG_F, DV), jnp.float32)
    p["fig_patch_b"] = jnp.zeros((1, DV), jnp.float32)
    p["fig_pool_w"] = 0.02 * jax.random.normal(next(ks), (DV, DV), jnp.float32)
    p["fig_pool_b"] = jnp.zeros((1, DV), jnp.float32)
    return p


if __name__ == "__main__":
    key = jax.random.PRNGKey(0)
    kp, ki, kpix, ktok, ktr, kg = jax.random.split(key, 6)

    params = init_params(kp)

    spoken_output = jax.random.randint(ktok, (B, T), 0, VOCAB)                   # token ids
    pointer_target = jax.random.bernoulli(ktr, 0.3, (B, T)).astype(jnp.float32)  # traces
    cap_lengths = jnp.array([T, 5], dtype=jnp.int32)
    fig_ocr = {
        "input_ids": jax.random.randint(ki, (B, 6), 0, VOCAB),
        "pixel_values": jax.random.normal(kpix, (B, 3, IMG, IMG), jnp.float32),  # NCHW
    }

    fwd = jax.jit(ours_vilt_trace_forward)
    fig_emb, txt_emb, txt_attn, txt_residual = fwd(
        params, fig_ocr, spoken_output, pointer_target, cap_lengths, kg)
    jax.block_until_ready((fig_emb, txt_emb, txt_attn, txt_residual))

    assert fig_emb.shape == (B, DV)
    assert txt_emb.shape == (B, E)
    assert txt_attn.shape == (B, T, 1)
    assert txt_residual.shape == (B, E)
    assert bool(jnp.all(jnp.isfinite(txt_emb)))
    assert bool(jnp.all(jnp.isfinite(fig_emb)))
    # l2norm check
    assert bool(jnp.allclose(jnp.sum(txt_emb ** 2, axis=-1), 1.0, atol=1e-4))
    # attention sums to 1 over valid positions
    assert bool(jnp.allclose(jnp.sum(txt_attn[:, :, 0], axis=-1), 1.0, atol=1e-4))

    print("KERNEL_OK")
</pallas_src>

<mosaic_0001>
module attributes {stable_mosaic.version = 11 : i64} {
  func.func @fused_kernel(%arg0: memref<2x8x128xf32, #tpu.memory_space<vmem>>, %arg1: memref<2x8x1xf32, #tpu.memory_space<vmem>>, %arg2: memref<2x1xi32, #tpu.memory_space<vmem>>, %arg3: memref<2x4x192xf32, #tpu.memory_space<vmem>>, %arg4: memref<1x128xf32, #tpu.memory_space<vmem>>, %arg5: memref<1x128xf32, #tpu.memory_space<vmem>>, %arg6: memref<128x128xf32, #tpu.memory_space<vmem>>, %arg7: memref<1x128xf32, #tpu.memory_space<vmem>>, %arg8: memref<1x128xf32, #tpu.memory_space<vmem>>, %arg9: memref<1x128xf32, #tpu.memory_space<vmem>>, %arg10: memref<128x768xf32, #tpu.memory_space<vmem>>, %arg11: memref<1x768xf32, #tpu.memory_space<vmem>>, %arg12: memref<128x384xf32, #tpu.memory_space<vmem>>, %arg13: memref<1x384xf32, #tpu.memory_space<vmem>>, %arg14: memref<128x384xf32, #tpu.memory_space<vmem>>, %arg15: memref<1x384xf32, #tpu.memory_space<vmem>>, %arg16: memref<128x64xf32, #tpu.memory_space<vmem>>, %arg17: memref<1x64xf32, #tpu.memory_space<vmem>>, %arg18: memref<128x256xf32, #tpu.memory_space<vmem>>, %arg19: memref<1x256xf32, #tpu.memory_space<vmem>>, %arg20: memref<1x256xf32, #tpu.memory_space<vmem>>, %arg21: memref<1x256xf32, #tpu.memory_space<vmem>>, %arg22: memref<192x128xf32, #tpu.memory_space<vmem>>, %arg23: memref<1x128xf32, #tpu.memory_space<vmem>>, %arg24: memref<128x128xf32, #tpu.memory_space<vmem>>, %arg25: memref<1x128xf32, #tpu.memory_space<vmem>>, %arg26: memref<2x128xf32, #tpu.memory_space<vmem>>, %arg27: memref<2x256xf32, #tpu.memory_space<vmem>>, %arg28: memref<2x8x1xf32, #tpu.memory_space<vmem>>, %arg29: memref<2x256xf32, #tpu.memory_space<vmem>>) attributes {dimension_semantics = [], scalar_prefetch = 0 : i64, scratch_operands = 0 : i64, tpu.core_type = #tpu.core_type<tc>} {
    %c0 = arith.constant 0 : index
    %c0_0 = arith.constant 0 : index
    %c0_1 = arith.constant 0 : index
    %0 = vector.load %arg1[%c0, %c0_0, %c0_1] : memref<2x8x1xf32, #tpu.memory_space<vmem>>, vector<2x8x1xf32>
    %cst = arith.constant dense<0xFF800000> : vector<2x1xf32>
    %1 = vector.multi_reduction <maximumf>, %0, %cst [1] : vector<2x8x1xf32> to vector<2x1xf32>
    %2 = vector.shape_cast %1 : vector<2x1xf32> to vector<2x1x1xf32>
    %3 = vector.broadcast %2 : vector<2x1x1xf32> to vector<2x8x1xf32>
    %4 = arith.subf %0, %3 : vector<2x8x1xf32>
    %5 = math.exp %4 : vector<2x8x1xf32>
    %cst_2 = arith.constant dense<0.000000e+00> : vector<2x1xf32>
    %6 = vector.multi_reduction <add>, %5, %cst_2 [1] : vector<2x8x1xf32> to vector<2x1xf32>
    %7 = vector.shape_cast %6 : vector<2x1xf32> to vector<2x1x1xf32>
    %8 = vector.broadcast %7 : vector<2x1x1xf32> to vector<2x8x1xf32>
    %9 = arith.divf %5, %8 : vector<2x8x1xf32>
    %c0_3 = arith.constant 0 : index
    %c0_4 = arith.constant 0 : index
    %c0_5 = arith.constant 0 : index
    %10 = vector.load %arg0[%c0_3, %c0_4, %c0_5] : memref<2x8x128xf32, #tpu.memory_space<vmem>>, vector<2x8x128xf32>
    %cst_6 = arith.constant 1.000000e+00 : f32
    %11 = vector.broadcast %cst_6 : f32 to vector<2x8x1xf32>
    %12 = arith.addf %11, %9 : vector<2x8x1xf32>
    %13 = vector.broadcast %12 : vector<2x8x1xf32> to vector<2x8x128xf32>
    %14 = arith.mulf %10, %13 : vector<2x8x128xf32>
    %15 = vector.shape_cast %14 : vector<2x8x128xf32> to vector<16x128xf32>
    %c0_7 = arith.constant 0 : index
    %c0_8 = arith.constant 0 : index
    %16 = vector.load %arg4[%c0_7, %c0_8] : memref<1x128xf32, #tpu.memory_space<vmem>>, vector<1x128xf32>
    %c0_9 = arith.constant 0 : index
    %c0_10 = arith.constant 0 : index
    %17 = vector.load %arg5[%c0_9, %c0_10] : memref<1x128xf32, #tpu.memory_space<vmem>>, vector<1x128xf32>
    %cst_11 = arith.constant dense<0.000000e+00> : vector<16xf32>
    %18 = vector.multi_reduction <add>, %15, %cst_11 [1] : vector<16x128xf32> to vector<16xf32>
    %19 = vector.shape_cast %18 : vector<16xf32> to vector<16x1xf32>
    %cst_12 = arith.constant 1.280000e+02 : f32
    %20 = vector.broadcast %cst_12 : f32 to vector<16x1xf32>
    %21 = arith.divf %19, %20 : vector<16x1xf32>
    %22 = vector.broadcast %21 : vector<16x1xf32> to vector<16x128xf32>
    %23 = arith.subf %15, %22 : vector<16x128xf32>
    %24 = arith.mulf %23, %23 : vector<16x128xf32>
    %cst_13 = arith.constant dense<0.000000e+00> : vector<16xf32>
    %25 = vector.multi_reduction <add>, %24, %cst_13 [1] : vector<16x128xf32> to vector<16xf32>
    %26 = vector.shape_cast %25 : vector<16xf32> to vector<16x1xf32>
    %cst_14 = arith.constant 1.280000e+02 : f32
    %27 = vector.broadcast %cst_14 : f32 to vector<16x1xf32>
    %28 = arith.divf %26, %27 : vector<16x1xf32>
    %29 = vector.broadcast %21 : vector<16x1xf32> to vector<16x128xf32>
    %30 = arith.subf %15, %29 : vector<16x128xf32>
    %cst_15 = arith.constant 9.99999974E-6 : f32
    %31 = vector.broadcast %cst_15 : f32 to vector<16x1xf32>
    %32 = arith.addf %28, %31 : vector<16x1xf32>
    %33 = math.rsqrt %32 : vector<16x1xf32>
    %34 = vector.broadcast %33 : vector<16x1xf32> to vector<16x128xf32>
    %35 = arith.mulf %30, %34 : vector<16x128xf32>
    %36 = vector.broadcast %16 : vector<1x128xf32> to vector<16x128xf32>
    %37 = arith.mulf %35, %36 : vector<16x128xf32>
    %38 = vector.broadcast %17 : vector<1x128xf32> to vector<16x128xf32>
    %39 = arith.addf %37, %38 : vector<16x128xf32>
    %c0_16 = arith.constant 0 : index
    %c0_17 = arith.constant 0 : index
    %40 = vector.load %arg6[%c0_16, %c0_17] : memref<128x128xf32, #tpu.memory_space<vmem>>, vector<128x128xf32>
    %cst_18 = arith.constant dense<0.000000e+00> : vector<16x128xf32>
    %41 = tpu.matmul %39, %40, %cst_18 {dimension_numbers = #tpu.dot_dimension_numbers<[1], [0], [0], [1], [0, 0, 1, 1], [], []>} : vector<16x128xf32>, vector<128x128xf32>, vector<16x128xf32> -> vector<16x128xf32>
    %c0_19 = arith.constant 0 : index
    %c0_20 = arith.constant 0 : index
    %42 = vector.load %arg7[%c0_19, %c0_20] : memref<1x128xf32, #tpu.memory_space<vmem>>, vector<1x128xf32>
    %43 = vector.broadcast %42 : vector<1x128xf32> to vector<16x128xf32>
    %44 = arith.addf %41, %43 : vector<16x128xf32>
    %c0_21 = arith.constant 0 : index
    %c0_22 = arith.constant 0 : index
    %45 = vector.load %arg8[%c0_21, %c0_22] : memref<1x128xf32, #tpu.memory_space<vmem>>, vector<1x128xf32>
    %c0_23 = arith.constant 0 : index
    %c0_24 = arith.constant 0 : index
    %46 = vector.load %arg9[%c0_23, %c0_24] : memref<1x128xf32, #tpu.memory_space<vmem>>, vector<1x128xf32>
    %cst_25 = arith.constant dense<0.000000e+00> : vector<16xf32>
    %47 = vector.multi_reduction <add>, %44, %cst_25 [1] : vector<16x128xf32> to vector<16xf32>
    %48 = vector.shape_cast %47 : vector<16xf32> to vector<16x1xf32>
    %cst_26 = arith.constant 1.280000e+02 : f32
    %49 = vector.broadcast %cst_26 : f32 to vector<16x1xf32>
    %50 = arith.divf %48, %49 : vector<16x1xf32>
    %51 = vector.broadcast %50 : vector<16x1xf32> to vector<16x128xf32>
    %52 = arith.subf %44, %51 : vector<16x128xf32>
    %53 = arith.mulf %52, %52 : vector<16x128xf32>
    %cst_27 = arith.constant dense<0.000000e+00> : vector<16xf32>
    %54 = vector.multi_reduction <add>, %53, %cst_27 [1] : vector<16x128xf32> to vector<16xf32>
    %55 = vector.shape_cast %54 : vector<16xf32> to vector<16x1xf32>
    %cst_28 = arith.constant 1.280000e+02 : f32
    %56 = vector.broadcast %cst_28 : f32 to vector<16x1xf32>
    %57 = arith.divf %55, %56 : vector<16x1xf32>
    %58 = vector.broadcast %50 : vector<16x1xf32> to vector<16x128xf32>
    %59 = arith.subf %44, %58 : vector<16x128xf32>
    %cst_29 = arith.constant 9.99999974E-6 : f32
    %60 = vector.broadcast %cst_29 : f32 to vector<16x1xf32>
    %61 = arith.addf %57, %60 : vector<16x1xf32>
    %62 = math.rsqrt %61 : vector<16x1xf32>
    %63 = vector.broadcast %62 : vector<16x1xf32> to vector<16x128xf32>
    %64 = arith.mulf %59, %63 : vector<16x128xf32>
    %65 = vector.broadcast %45 : vector<1x128xf32> to vector<16x128xf32>
    %66 = arith.mulf %64, %65 : vector<16x128xf32>
    %67 = vector.broadcast %46 : vector<1x128xf32> to vector<16x128xf32>
    %68 = arith.addf %66, %67 : vector<16x128xf32>
    %69 = vector.shape_cast %68 : vector<16x128xf32> to vector<2x8x128xf32>
    %c0_30 = arith.constant 0 : index
    %c0_31 = arith.constant 0 : index
    %70 = vector.load %arg2[%c0_30, %c0_31] : memref<2x1xi32, #tpu.memory_space<vmem>>, vector<2x1xi32>
    %71 = vector.shape_cast %70 : vector<2x1xi32> to vector<2x1x1xi32>
    %72 = tpu.iota {dimensions = array<i32: 1>} : vector<2x8x1xi32>
    %73 = vector.broadcast %71 : vector<2x1x1xi32> to vector<2x8x1xi32>
    %74 = arith.cmpi slt, %72, %73 : vector<2x8x1xi32>
    %c0_32 = arith.constant 0 : index
    %c0_33 = arith.constant 0 : index
    %75 = vector.load %arg10[%c0_32, %c0_33] : memref<128x768xf32, #tpu.memory_space<vmem>>, vector<128x768xf32>
    %cst_34 = arith.constant dense<0.000000e+00> : vector<16x768xf32>
    %76 = tpu.matmul %68, %75, %cst_34 {dimension_numbers = #tpu.dot_dimension_numbers<[1], [0], [0], [1], [0, 0, 1, 1], [], []>} : vector<16x128xf32>, vector<128x768xf32>, vector<16x768xf32> -> vector<16x768xf32>
    %c0_35 = arith.constant 0 : index
    %c0_36 = arith.constant 0 : index
    %77 = vector.load %arg11[%c0_35, %c0_36] : memref<1x768xf32, #tpu.memory_space<vmem>>, vector<1x768xf32>
    %78 = vector.broadcast %77 : vector<1x768xf32> to vector<16x768xf32>
    %79 = arith.addf %76, %78 : vector<16x768xf32>
    %80 = vector.shape_cast %79 : vector<16x768xf32> to vector<2x8x768xf32>
    %81 = vector.extract_strided_slice %80 {offsets = [0, 0, 0], sizes = [2, 8, 384], strides = [1, 1, 1]} : vector<2x8x768xf32> to vector<2x8x384xf32>
    %82 = vector.extract_strided_slice %80 {offsets = [0, 0, 384], sizes = [2, 8, 384], strides = [1, 1, 1]} : vector<2x8x768xf32> to vector<2x8x384xf32>
    %c0_37 = arith.constant 0 : index
    %c0_38 = arith.constant 0 : index
    %83 = vector.load %arg12[%c0_37, %c0_38] : memref<128x384xf32, #tpu.memory_space<vmem>>, vector<128x384xf32>
    %c0_39 = arith.constant 0 : index
    %c0_40 = arith.constant 0 : index
    %84 = vector.load %arg13[%c0_39, %c0_40] : memref<1x384xf32, #tpu.memory_space<vmem>>, vector<1x384xf32>
    %c0_41 = arith.constant 0 : index
    %c0_42 = arith.constant 0 : index
    %85 = vector.load %arg14[%c0_41, %c0_42] : memref<128x384xf32, #tpu.memory_space<vmem>>, vector<128x384xf32>
    %c0_43 = arith.constant 0 : index
    %c0_44 = arith.constant 0 : index
    %86 = vector.load %arg15[%c0_43, %c0_44] : memref<1x384xf32, #tpu.memory_space<vmem>>, vector<1x384xf32>
    %cst_45 = arith.constant 0.000000e+00 : f32
    %87 = vector.broadcast %cst_45 : f32 to vector<2x128xf32>
    %cst_46 = arith.constant 0.000000e+00 : f32
    %88 = vector.broadcast %cst_46 : f32 to vector<2x128xf32>
    %89 = vector.extract_strided_slice %81 {offsets = [0, 0, 0], sizes = [2, 1, 384], strides = [1, 1, 1]} : vector<2x8x384xf32> to vector<2x1x384xf32>
    %90 = vector.shape_cast %89 : vector<2x1x384xf32> to vector<2x384xf32>
    %cst_47 = arith.constant dense<0.000000e+00> : vector<2x384xf32>
    %91 = tpu.matmul %87, %83, %cst_47 {dimension_numbers = #tpu.dot_dimension_numbers<[1], [0], [0], [1], [0, 0, 1, 1], [], []>} : vector<2x128xf32>, vector<128x384xf32>, vector<2x384xf32> -> vector<2x384xf32>
    %92 = vector.broadcast %84 : vector<1x384xf32> to vector<2x384xf32>
    %93 = arith.addf %91, %92 : vector<2x384xf32>
    %94 = vector.extract_strided_slice %90 {offsets = [0, 0], sizes = [2, 128], strides = [1, 1]} : vector<2x384xf32> to vector<2x128xf32>
    %95 = vector.extract_strided_slice %90 {offsets = [0, 128], sizes = [2, 128], strides = [1, 1]} : vector<2x384xf32> to vector<2x128xf32>
    %96 = vector.extract_strided_slice %90 {offsets = [0, 256], sizes = [2, 128], strides = [1, 1]} : vector<2x384xf32> to vector<2x128xf32>
    %97 = vector.extract_strided_slice %93 {offsets = [0, 0], sizes = [2, 128], strides = [1, 1]} : vector<2x384xf32> to vector<2x128xf32>
    %98 = vector.extract_strided_slice %93 {offsets = [0, 128], sizes = [2, 128], strides = [1, 1]} : vector<2x384xf32> to vector<2x128xf32>
    %99 = vector.extract_strided_slice %93 {offsets = [0, 256], sizes = [2, 128], strides = [1, 1]} : vector<2x384xf32> to vector<2x128xf32>
    %100 = arith.addf %94, %97 : vector<2x128xf32>
    %101 = arith.negf %100 : vector<2x128xf32>
    %102 = math.exp %101 : vector<2x128xf32>
    %cst_48 = arith.constant 1.000000e+00 : f32
    %103 = vector.broadcast %cst_48 : f32 to vector<2x128xf32>
    %104 = arith.addf %103, %102 : vector<2x128xf32>
    %105 = arith.divf %103, %104 : vector<2x128xf32>
    %106 = arith.addf %95, %98 : vector<2x128xf32>
    %107 = arith.negf %106 : vector<2x128xf32>
    %108 = math.exp %107 : vector<2x128xf32>
    %cst_49 = arith.constant 1.000000e+00 : f32
    %109 = vector.broadcast %cst_49 : f32 to vector<2x128xf32>
    %110 = arith.addf %109, %108 : vector<2x128xf32>
    %111 = arith.divf %109, %110 : vector<2x128xf32>
    %112 = arith.mulf %105, %99 : vector<2x128xf32>
    %113 = arith.addf %96, %112 : vector<2x128xf32>
    %114 = math.tanh %113 : vector<2x128xf32>
    %cst_50 = arith.constant 1.000000e+00 : f32
    %115 = vector.broadcast %cst_50 : f32 to vector<2x128xf32>
    %116 = arith.subf %115, %111 : vector<2x128xf32>
    %117 = arith.mulf %116, %114 : vector<2x128xf32>
    %118 = arith.mulf %111, %87 : vector<2x128xf32>
    %119 = arith.addf %117, %118 : vector<2x128xf32>
    %120 = vector.extract_strided_slice %82 {offsets = [0, 7, 0], sizes = [2, 1, 384], strides = [1, 1, 1]} : vector<2x8x384xf32> to vector<2x1x384xf32>
    %121 = vector.shape_cast %120 : vector<2x1x384xf32> to vector<2x384xf32>
    %cst_51 = arith.constant dense<0.000000e+00> : vector<2x384xf32>
    %122 = tpu.matmul %88, %85, %cst_51 {dimension_numbers = #tpu.dot_dimension_numbers<[1], [0], [0], [1], [0, 0, 1, 1], [], []>} : vector<2x128xf32>, vector<128x384xf32>, vector<2x384xf32> -> vector<2x384xf32>
    %123 = vector.broadcast %86 : vector<1x384xf32> to vector<2x384xf32>
    %124 = arith.addf %122, %123 : vector<2x384xf32>
    %125 = vector.extract_strided_slice %121 {offsets = [0, 0], sizes = [2, 128], strides = [1, 1]} : vector<2x384xf32> to vector<2x128xf32>
    %126 = vector.extract_strided_slice %121 {offsets = [0, 128], sizes = [2, 128], strides = [1, 1]} : vector<2x384xf32> to vector<2x128xf32>
    %127 = vector.extract_strided_slice %121 {offsets = [0, 256], sizes = [2, 128], strides = [1, 1]} : vector<2x384xf32> to vector<2x128xf32>
    %128 = vector.extract_strided_slice %124 {offsets = [0, 0], sizes = [2, 128], strides = [1, 1]} : vector<2x384xf32> to vector<2x128xf32>
    %129 = vector.extract_strided_slice %124 {offsets = [0, 128], sizes = [2, 128], strides = [1, 1]} : vector<2x384xf32> to vector<2x128xf32>
    %130 = vector.extract_strided_slice %124 {offsets = [0, 256], sizes = [2, 128], strides = [1, 1]} : vector<2x384xf32> to vector<2x128xf32>
    %131 = arith.addf %125, %128 : vector<2x128xf32>
    %132 = arith.negf %131 : vector<2x128xf32>
    %133 = math.exp %132 : vector<2x128xf32>
    %cst_52 = arith.constant 1.000000e+00 : f32
    %134 = vector.broadcast %cst_52 : f32 to vector<2x128xf32>
    %135 = arith.addf %134, %133 : vector<2x128xf32>
    %136 = arith.divf %134, %135 : vector<2x128xf32>
    %137 = arith.addf %126, %129 : vector<2x128xf32>
    %138 = arith.negf %137 : vector<2x128xf32>
    %139 = math.exp %138 : vector<2x128xf32>
    %cst_53 = arith.constant 1.000000e+00 : f32
    %140 = vector.broadcast %cst_53 : f32 to vector<2x128xf32>
    %141 = arith.addf %140, %139 : vector<2x128xf32>
    %142 = arith.divf %140, %141 : vector<2x128xf32>
    %143 = arith.mulf %136, %130 : vector<2x128xf32>
    %144 = arith.addf %127, %143 : vector<2x128xf32>
    %145 = math.tanh %144 : vector<2x128xf32>
    %cst_54 = arith.constant 1.000000e+00 : f32
    %146 = vector.broadcast %cst_54 : f32 to vector<2x128xf32>
    %147 = arith.subf %146, %142 : vector<2x128xf32>
    %148 = arith.mulf %147, %145 : vector<2x128xf32>
    %149 = arith.mulf %142, %88 : vector<2x128xf32>
    %150 = arith.addf %148, %149 : vector<2x128xf32>
    %151 = vector.extract_strided_slice %74 {offsets = [0, 0, 0], sizes = [2, 1, 1], strides = [1, 1, 1]} : vector<2x8x1xi1> to vector<2x1x1xi1>
    %152 = vector.shape_cast %151 : vector<2x1x1xi1> to vector<2x1xi1>
    %153 = vector.shape_cast %152 : vector<2x1xi1> to vector<2x1xi1>
    %154 = vector.broadcast %153 : vector<2x1xi1> to vector<2x128xi1>
    %155 = arith.select %154, %119, %87 : vector<2x128xi1>, vector<2x128xf32>
    %156 = vector.extract_strided_slice %74 {offsets = [0, 7, 0], sizes = [2, 1, 1], strides = [1, 1, 1]} : vector<2x8x1xi1> to vector<2x1x1xi1>
    %157 = vector.shape_cast %156 : vector<2x1x1xi1> to vector<2x1xi1>
    %158 = vector.shape_cast %157 : vector<2x1xi1> to vector<2x1xi1>
    %159 = vector.broadcast %158 : vector<2x1xi1> to vector<2x128xi1>
    %160 = arith.select %159, %150, %88 : vector<2x128xi1>, vector<2x128xf32>
    %161 = vector.extract_strided_slice %81 {offsets = [0, 1, 0], sizes = [2, 1, 384], strides = [1, 1, 1]} : vector<2x8x384xf32> to vector<2x1x384xf32>
    %162 = vector.shape_cast %161 : vector<2x1x384xf32> to vector<2x384xf32>
    %cst_55 = arith.constant dense<0.000000e+00> : vector<2x384xf32>
    %163 = tpu.matmul %155, %83, %cst_55 {dimension_numbers = #tpu.dot_dimension_numbers<[1], [0], [0], [1], [0, 0, 1, 1], [], []>} : vector<2x128xf32>, vector<128x384xf32>, vector<2x384xf32> -> vector<2x384xf32>
    %164 = vector.broadcast %84 : vector<1x384xf32> to vector<2x384xf32>
    %165 = arith.addf %163, %164 : vector<2x384xf32>
    %166 = vector.extract_strided_slice %162 {offsets = [0, 0], sizes = [2, 128], strides = [1, 1]} : vector<2x384xf32> to vector<2x128xf32>
    %167 = vector.extract_strided_slice %162 {offsets = [0, 128], sizes = [2, 128], strides = [1, 1]} : vector<2x384xf32> to vector<2x128xf32>
    %168 = vector.extract_strided_slice %162 {offsets = [0, 256], sizes = [2, 128], strides = [1, 1]} : vector<2x384xf32> to vector<2x128xf32>
    %169 = vector.extract_strided_slice %165 {offsets = [0, 0], sizes = [2, 128], strides = [1, 1]} : vector<2x384xf32> to vector<2x128xf32>
    %170 = vector.extract_strided_slice %165 {offsets = [0, 128], sizes = [2, 128], strides = [1, 1]} : vector<2x384xf32> to vector<2x128xf32>
    %171 = vector.extract_strided_slice %165 {offsets = [0, 256], sizes = [2, 128], strides = [1, 1]} : vector<2x384xf32> to vector<2x128xf32>
    %172 = arith.addf %166, %169 : vector<2x128xf32>
    %173 = arith.negf %172 : vector<2x128xf32>
    %174 = math.exp %173 : vector<2x128xf32>
    %cst_56 = arith.constant 1.000000e+00 : f32
    %175 = vector.broadcast %cst_56 : f32 to vector<2x128xf32>
    %176 = arith.addf %175, %174 : vector<2x128xf32>
    %177 = arith.divf %175, %176 : vector<2x128xf32>
    %178 = arith.addf %167, %170 : vector<2x128xf32>
    %179 = arith.negf %178 : vector<2x128xf32>
    %180 = math.exp %179 : vector<2x128xf32>
    %cst_57 = arith.constant 1.000000e+00 : f32
    %181 = vector.broadcast %cst_57 : f32 to vector<2x128xf32>
    %182 = arith.addf %181, %180 : vector<2x128xf32>
    %183 = arith.divf %181, %182 : vector<2x128xf32>
    %184 = arith.mulf %177, %171 : vector<2x128xf32>
    %185 = arith.addf %168, %184 : vector<2x128xf32>
    %186 = math.tanh %185 : vector<2x128xf32>
    %cst_58 = arith.constant 1.000000e+00 : f32
    %187 = vector.broadcast %cst_58 : f32 to vector<2x128xf32>
    %188 = arith.subf %187, %183 : vector<2x128xf32>
    %189 = arith.mulf %188, %186 : vector<2x128xf32>
    %190 = arith.mulf %183, %155 : vector<2x128xf32>
    %191 = arith.addf %189, %190 : vector<2x128xf32>
    %192 = vector.extract_strided_slice %82 {offsets = [0, 6, 0], sizes = [2, 1, 384], strides = [1, 1, 1]} : vector<2x8x384xf32> to vector<2x1x384xf32>
    %193 = vector.shape_cast %192 : vector<2x1x384xf32> to vector<2x384xf32>
    %cst_59 = arith.constant dense<0.000000e+00> : vector<2x384xf32>
    %194 = tpu.matmul %160, %85, %cst_59 {dimension_numbers = #tpu.dot_dimension_numbers<[1], [0], [0], [1], [0, 0, 1, 1], [], []>} : vector<2x128xf32>, vector<128x384xf32>, vector<2x384xf32> -> vector<2x384xf32>
    %195 = vector.broadcast %86 : vector<1x384xf32> to vector<2x384xf32>
    %196 = arith.addf %194, %195 : vector<2x384xf32>
    %197 = vector.extract_strided_slice %193 {offsets = [0, 0], sizes = [2, 128], strides = [1, 1]} : vector<2x384xf32> to vector<2x128xf32>
    %198 = vector.extract_strided_slice %193 {offsets = [0, 128], sizes = [2, 128], strides = [1, 1]} : vector<2x384xf32> to vector<2x128xf32>
    %199 = vector.extract_strided_slice %193 {offsets = [0, 256], sizes = [2, 128], strides = [1, 1]} : vector<2x384xf32> to vector<2x128xf32>
    %200 = vector.extract_strided_slice %196 {offsets = [0, 0], sizes = [2, 128], strides = [1, 1]} : vector<2x384xf32> to vector<2x128xf32>
    %201 = vector.extract_strided_slice %196 {offsets = [0, 128], sizes = [2, 128], strides = [1, 1]} : vector<2x384xf32> to vector<2x128xf32>
    %202 = vector.extract_strided_slice %196 {offsets = [0, 256], sizes = [2, 128], strides = [1, 1]} : vector<2x384xf32> to vector<2x128xf32>
    %203 = arith.addf %197, %200 : vector<2x128xf32>
    %204 = arith.negf %203 : vector<2x128xf32>
    %205 = math.exp %204 : vector<2x128xf32>
    %cst_60 = arith.constant 1.000000e+00 : f32
    %206 = vector.broadcast %cst_60 : f32 to vector<2x128xf32>
    %207 = arith.addf %206, %205 : vector<2x128xf32>
    %208 = arith.divf %206, %207 : vector<2x128xf32>
    %209 = arith.addf %198, %201 : vector<2x128xf32>
    %210 = arith.negf %209 : vector<2x128xf32>
    %211 = math.exp %210 : vector<2x128xf32>
    %cst_61 = arith.constant 1.000000e+00 : f32
    %212 = vector.broadcast %cst_61 : f32 to vector<2x128xf32>
    %213 = arith.addf %212, %211 : vector<2x128xf32>
    %214 = arith.divf %212, %213 : vector<2x128xf32>
    %215 = arith.mulf %208, %202 : vector<2x128xf32>
    %216 = arith.addf %199, %215 : vector<2x128xf32>
    %217 = math.tanh %216 : vector<2x128xf32>
    %cst_62 = arith.constant 1.000000e+00 : f32
    %218 = vector.broadcast %cst_62 : f32 to vector<2x128xf32>
    %219 = arith.subf %218, %214 : vector<2x128xf32>
    %220 = arith.mulf %219, %217 : vector<2x128xf32>
    %221 = arith.mulf %214, %160 : vector<2x128xf32>
    %222 = arith.addf %220, %221 : vector<2x128xf32>
    %223 = vector.extract_strided_slice %74 {offsets = [0, 1, 0], sizes = [2, 1, 1], strides = [1, 1, 1]} : vector<2x8x1xi1> to vector<2x1x1xi1>
    %224 = vector.shape_cast %223 : vector<2x1x1xi1> to vector<2x1xi1>
    %225 = vector.shape_cast %224 : vector<2x1xi1> to vector<2x1xi1>
    %226 = vector.broadcast %225 : vector<2x1xi1> to vector<2x128xi1>
    %227 = arith.select %226, %191, %155 : vector<2x128xi1>, vector<2x128xf32>
    %228 = vector.extract_strided_slice %74 {offsets = [0, 6, 0], sizes = [2, 1, 1], strides = [1, 1, 1]} : vector<2x8x1xi1> to vector<2x1x1xi1>
    %229 = vector.shape_cast %228 : vector<2x1x1xi1> to vector<2x1xi1>
    %230 = vector.shape_cast %229 : vector<2x1xi1> to vector<2x1xi1>
    %231 = vector.broadcast %230 : vector<2x1xi1> to vector<2x128xi1>
    %232 = arith.select %231, %222, %160 : vector<2x128xi1>, vector<2x128xf32>
    %233 = vector.extract_strided_slice %81 {offsets = [0, 2, 0], sizes = [2, 1, 384], strides = [1, 1, 1]} : vector<2x8x384xf32> to vector<2x1x384xf32>
    %234 = vector.shape_cast %233 : vector<2x1x384xf32> to vector<2x384xf32>
    %cst_63 = arith.constant dense<0.000000e+00> : vector<2x384xf32>
    %235 = tpu.matmul %227, %83, %cst_63 {dimension_numbers = #tpu.dot_dimension_numbers<[1], [0], [0], [1], [0, 0, 1, 1], [], []>} : vector<2x128xf32>, vector<128x384xf32>, vector<2x384xf32> -> vector<2x384xf32>
    %236 = vector.broadcast %84 : vector<1x384xf32> to vector<2x384xf32>
    %237 = arith.addf %235, %236 : vector<2x384xf32>
    %238 = vector.extract_strided_slice %234 {offsets = [0, 0], sizes = [2, 128], strides = [1, 1]} : vector<2x384xf32> to vector<2x128xf32>
    %239 = vector.extract_strided_slice %234 {offsets = [0, 128], sizes = [2, 128], strides = [1, 1]} : vector<2x384xf32> to vector<2x128xf32>
    %240 = vector.extract_strided_slice %234 {offsets = [0, 256], sizes = [2, 128], strides = [1, 1]} : vector<2x384xf32> to vector<2x128xf32>
    %241 = vector.extract_strided_slice %237 {offsets = [0, 0], sizes = [2, 128], strides = [1, 1]} : vector<2x384xf32> to vector<2x128xf32>
    %242 = vector.extract_strided_slice %237 {offsets = [0, 128], sizes = [2, 128], strides = [1, 1]} : vector<2x384xf32> to vector<2x128xf32>
    %243 = vector.extract_strided_slice %237 {offsets = [0, 256], sizes = [2, 128], strides = [1, 1]} : vector<2x384xf32> to vector<2x128xf32>
    %244 = arith.addf %238, %241 : vector<2x128xf32>
    %245 = arith.negf %244 : vector<2x128xf32>
    %246 = math.exp %245 : vector<2x128xf32>
    %cst_64 = arith.constant 1.000000e+00 : f32
    %247 = vector.broadcast %cst_64 : f32 to vector<2x128xf32>
    %248 = arith.addf %247, %246 : vector<2x128xf32>
    %249 = arith.divf %247, %248 : vector<2x128xf32>
    %250 = arith.addf %239, %242 : vector<2x128xf32>
    %251 = arith.negf %250 : vector<2x128xf32>
    %252 = math.exp %251 : vector<2x128xf32>
    %cst_65 = arith.constant 1.000000e+00 : f32
    %253 = vector.broadcast %cst_65 : f32 to vector<2x128xf32>
    %254 = arith.addf %253, %252 : vector<2x128xf32>
    %255 = arith.divf %253, %254 : vector<2x128xf32>
    %256 = arith.mulf %249, %243 : vector<2x128xf32>
    %257 = arith.addf %240, %256 : vector<2x128xf32>
    %258 = math.tanh %257 : vector<2x128xf32>
    %cst_66 = arith.constant 1.000000e+00 : f32
    %259 = vector.broadcast %cst_66 : f32 to vector<2x128xf32>
    %260 = arith.subf %259, %255 : vector<2x128xf32>
    %261 = arith.mulf %260, %258 : vector<2x128xf32>
    %262 = arith.mulf %255, %227 : vector<2x128xf32>
    %263 = arith.addf %261, %262 : vector<2x128xf32>
    %264 = vector.extract_strided_slice %82 {offsets = [0, 5, 0], sizes = [2, 1, 384], strides = [1, 1, 1]} : vector<2x8x384xf32> to vector<2x1x384xf32>
    %265 = vector.shape_cast %264 : vector<2x1x384xf32> to vector<2x384xf32>
    %cst_67 = arith.constant dense<0.000000e+00> : vector<2x384xf32>
    %266 = tpu.matmul %232, %85, %cst_67 {dimension_numbers = #tpu.dot_dimension_numbers<[1], [0], [0], [1], [0, 0, 1, 1], [], []>} : vector<2x128xf32>, vector<128x384xf32>, vector<2x384xf32> -> vector<2x384xf32>
    %267 = vector.broadcast %86 : vector<1x384xf32> to vector<2x384xf32>
    %268 = arith.addf %266, %267 : vector<2x384xf32>
    %269 = vector.extract_strided_slice %265 {offsets = [0, 0], sizes = [2, 128], strides = [1, 1]} : vector<2x384xf32> to vector<2x128xf32>
    %270 = vector.extract_strided_slice %265 {offsets = [0, 128], sizes = [2, 128], strides = [1, 1]} : vector<2x384xf32> to vector<2x128xf32>
    %271 = vector.extract_strided_slice %265 {offsets = [0, 256], sizes = [2, 128], strides = [1, 1]} : vector<2x384xf32> to vector<2x128xf32>
    %272 = vector.extract_strided_slice %268 {offsets = [0, 0], sizes = [2, 128], strides = [1, 1]} : vector<2x384xf32> to vector<2x128xf32>
    %273 = vector.extract_strided_slice %268 {offsets = [0, 128], sizes = [2, 128], strides = [1, 1]} : vector<2x384xf32> to vector<2x128xf32>
    %274 = vector.extract_strided_slice %268 {offsets = [0, 256], sizes = [2, 128], strides = [1, 1]} : vector<2x384xf32> to vector<2x128xf32>
    %275 = arith.addf %269, %272 : vector<2x128xf32>
    %276 = arith.negf %275 : vector<2x128xf32>
    %277 = math.exp %276 : vector<2x128xf32>
    %cst_68 = arith.constant 1.000000e+00 : f32
    %278 = vector.broadcast %cst_68 : f32 to vector<2x128xf32>
    %279 = arith.addf %278, %277 : vector<2x128xf32>
    %280 = arith.divf %278, %279 : vector<2x128xf32>
    %281 = arith.addf %270, %273 : vector<2x128xf32>
    %282 = arith.negf %281 : vector<2x128xf32>
    %283 = math.exp %282 : vector<2x128xf32>
    %cst_69 = arith.constant 1.000000e+00 : f32
    %284 = vector.broadcast %cst_69 : f32 to vector<2x128xf32>
    %285 = arith.addf %284, %283 : vector<2x128xf32>
    %286 = arith.divf %284, %285 : vector<2x128xf32>
    %287 = arith.mulf %280, %274 : vector<2x128xf32>
    %288 = arith.addf %271, %287 : vector<2x128xf32>
    %289 = math.tanh %288 : vector<2x128xf32>
    %cst_70 = arith.constant 1.000000e+00 : f32
    %290 = vector.broadcast %cst_70 : f32 to vector<2x128xf32>
    %291 = arith.subf %290, %286 : vector<2x128xf32>
    %292 = arith.mulf %291, %289 : vector<2x128xf32>
    %293 = arith.mulf %286, %232 : vector<2x128xf32>
    %294 = arith.addf %292, %293 : vector<2x128xf32>
    %295 = vector.extract_strided_slice %74 {offsets = [0, 2, 0], sizes = [2, 1, 1], strides = [1, 1, 1]} : vector<2x8x1xi1> to vector<2x1x1xi1>
    %296 = vector.shape_cast %295 : vector<2x1x1xi1> to vector<2x1xi1>
    %297 = vector.shape_cast %296 : vector<2x1xi1> to vector<2x1xi1>
    %298 = vector.broadcast %297 : vector<2x1xi1> to vector<2x128xi1>
    %299 = arith.select %298, %263, %227 : vector<2x128xi1>, vector<2x128xf32>
    %300 = vector.extract_strided_slice %74 {offsets = [0, 5, 0], sizes = [2, 1, 1], strides = [1, 1, 1]} : vector<2x8x1xi1> to vector<2x1x1xi1>
    %301 = vector.shape_cast %300 : vector<2x1x1xi1> to vector<2x1xi1>
    %302 = vector.shape_cast %301 : vector<2x1xi1> to vector<2x1xi1>
    %303 = vector.broadcast %302 : vector<2x1xi1> to vector<2x128xi1>
    %304 = arith.select %303, %294, %232 : vector<2x128xi1>, vector<2x128xf32>
    %305 = vector.extract_strided_slice %81 {offsets = [0, 3, 0], sizes = [2, 1, 384], strides = [1, 1, 1]} : vector<2x8x384xf32> to vector<2x1x384xf32>
    %306 = vector.shape_cast %305 : vector<2x1x384xf32> to vector<2x384xf32>
    %cst_71 = arith.constant dense<0.000000e+00> : vector<2x384xf32>
    %307 = tpu.matmul %299, %83, %cst_71 {dimension_numbers = #tpu.dot_dimension_numbers<[1], [0], [0], [1], [0, 0, 1, 1], [], []>} : vector<2x128xf32>, vector<128x384xf32>, vector<2x384xf32> -> vector<2x384xf32>
    %308 = vector.broadcast %84 : vector<1x384xf32> to vector<2x384xf32>
    %309 = arith.addf %307, %308 : vector<2x384xf32>
    %310 = vector.extract_strided_slice %306 {offsets = [0, 0], sizes = [2, 128], strides = [1, 1]} : vector<2x384xf32> to vector<2x128xf32>
    %311 = vector.extract_strided_slice %306 {offsets = [0, 128], sizes = [2, 128], strides = [1, 1]} : vector<2x384xf32> to vector<2x128xf32>
    %312 = vector.extract_strided_slice %306 {offsets = [0, 256], sizes = [2, 128], strides = [1, 1]} : vector<2x384xf32> to vector<2x128xf32>
    %313 = vector.extract_strided_slice %309 {offsets = [0, 0], sizes = [2, 128], strides = [1, 1]} : vector<2x384xf32> to vector<2x128xf32>
    %314 = vector.extract_strided_slice %309 {offsets = [0, 128], sizes = [2, 128], strides = [1, 1]} : vector<2x384xf32> to vector<2x128xf32>
    %315 = vector.extract_strided_slice %309 {offsets = [0, 256], sizes = [2, 128], strides = [1, 1]} : vector<2x384xf32> to vector<2x128xf32>
    %316 = arith.addf %310, %313 : vector<2x128xf32>
    %317 = arith.negf %316 : vector<2x128xf32>
    %318 = math.exp %317 : vector<2x128xf32>
    %cst_72 = arith.constant 1.000000e+00 : f32
    %319 = vector.broadcast %cst_72 : f32 to vector<2x128xf32>
    %320 = arith.addf %319, %318 : vector<2x128xf32>
    %321 = arith.divf %319, %320 : vector<2x128xf32>
    %322 = arith.addf %311, %314 : vector<2x128xf32>
    %323 = arith.negf %322 : vector<2x128xf32>
    %324 = math.exp %323 : vector<2x128xf32>
    %cst_73 = arith.constant 1.000000e+00 : f32
    %325 = vector.broadcast %cst_73 : f32 to vector<2x128xf32>
    %326 = arith.addf %325, %324 : vector<2x128xf32>
    %327 = arith.divf %325, %326 : vector<2x128xf32>
    %328 = arith.mulf %321, %315 : vector<2x128xf32>
    %329 = arith.addf %312, %328 : vector<2x128xf32>
    %330 = math.tanh %329 : vector<2x128xf32>
    %cst_74 = arith.constant 1.000000e+00 : f32
    %331 = vector.broadcast %cst_74 : f32 to vector<2x128xf32>
    %332 = arith.subf %331, %327 : vector<2x128xf32>
    %333 = arith.mulf %332, %330 : vector<2x128xf32>
    %334 = arith.mulf %327, %299 : vector<2x128xf32>
    %335 = arith.addf %333, %334 : vector<2x128xf32>
    %336 = vector.extract_strided_slice %82 {offsets = [0, 4, 0], sizes = [2, 1, 384], strides = [1, 1, 1]} : vector<2x8x384xf32> to vector<2x1x384xf32>
    %337 = vector.shape_cast %336 : vector<2x1x384xf32> to vector<2x384xf32>
    %cst_75 = arith.constant dense<0.000000e+00> : vector<2x384xf32>
    %338 = tpu.matmul %304, %85, %cst_75 {dimension_numbers = #tpu.dot_dimension_numbers<[1], [0], [0], [1], [0, 0, 1, 1], [], []>} : vector<2x128xf32>, vector<128x384xf32>, vector<2x384xf32> -> vector<2x384xf32>
    %339 = vector.broadcast %86 : vector<1x384xf32> to vector<2x384xf32>
    %340 = arith.addf %338, %339 : vector<2x384xf32>
    %341 = vector.extract_strided_slice %337 {offsets = [0, 0], sizes = [2, 128], strides = [1, 1]} : vector<2x384xf32> to vector<2x128xf32>
    %342 = vector.extract_strided_slice %337 {offsets = [0, 128], sizes = [2, 128], strides = [1, 1]} : vector<2x384xf32> to vector<2x128xf32>
    %343 = vector.extract_strided_slice %337 {offsets = [0, 256], sizes = [2, 128], strides = [1, 1]} : vector<2x384xf32> to vector<2x128xf32>
    %344 = vector.extract_strided_slice %340 {offsets = [0, 0], sizes = [2, 128], strides = [1, 1]} : vector<2x384xf32> to vector<2x128xf32>
    %345 = vector.extract_strided_slice %340 {offsets = [0, 128], sizes = [2, 128], strides = [1, 1]} : vector<2x384xf32> to vector<2x128xf32>
    %346 = vector.extract_strided_slice %340 {offsets = [0, 256], sizes = [2, 128], strides = [1, 1]} : vector<2x384xf32> to vector<2x128xf32>
    %347 = arith.addf %341, %344 : vector<2x128xf32>
    %348 = arith.negf %347 : vector<2x128xf32>
    %349 = math.exp %348 : vector<2x128xf32>
    %cst_76 = arith.constant 1.000000e+00 : f32
    %350 = vector.broadcast %cst_76 : f32 to vector<2x128xf32>
    %351 = arith.addf %350, %349 : vector<2x128xf32>
    %352 = arith.divf %350, %351 : vector<2x128xf32>
    %353 = arith.addf %342, %345 : vector<2x128xf32>
    %354 = arith.negf %353 : vector<2x128xf32>
    %355 = math.exp %354 : vector<2x128xf32>
    %cst_77 = arith.constant 1.000000e+00 : f32
    %356 = vector.broadcast %cst_77 : f32 to vector<2x128xf32>
    %357 = arith.addf %356, %355 : vector<2x128xf32>
    %358 = arith.divf %356, %357 : vector<2x128xf32>
    %359 = arith.mulf %352, %346 : vector<2x128xf32>
    %360 = arith.addf %343, %359 : vector<2x128xf32>
    %361 = math.tanh %360 : vector<2x128xf32>
    %cst_78 = arith.constant 1.000000e+00 : f32
    %362 = vector.broadcast %cst_78 : f32 to vector<2x128xf32>
    %363 = arith.subf %362, %358 : vector<2x128xf32>
    %364 = arith.mulf %363, %361 : vector<2x128xf32>
    %365 = arith.mulf %358, %304 : vector<2x128xf32>
    %366 = arith.addf %364, %365 : vector<2x128xf32>
    %367 = vector.extract_strided_slice %74 {offsets = [0, 3, 0], sizes = [2, 1, 1], strides = [1, 1, 1]} : vector<2x8x1xi1> to vector<2x1x1xi1>
    %368 = vector.shape_cast %367 : vector<2x1x1xi1> to vector<2x1xi1>
    %369 = vector.shape_cast %368 : vector<2x1xi1> to vector<2x1xi1>
    %370 = vector.broadcast %369 : vector<2x1xi1> to vector<2x128xi1>
    %371 = arith.select %370, %335, %299 : vector<2x128xi1>, vector<2x128xf32>
    %372 = vector.extract_strided_slice %74 {offsets = [0, 4, 0], sizes = [2, 1, 1], strides = [1, 1, 1]} : vector<2x8x1xi1> to vector<2x1x1xi1>
    %373 = vector.shape_cast %372 : vector<2x1x1xi1> to vector<2x1xi1>
    %374 = vector.shape_cast %373 : vector<2x1xi1> to vector<2x1xi1>
    %375 = vector.broadcast %374 : vector<2x1xi1> to vector<2x128xi1>
    %376 = arith.select %375, %366, %304 : vector<2x128xi1>, vector<2x128xf32>
    %377 = vector.extract_strided_slice %81 {offsets = [0, 4, 0], sizes = [2, 1, 384], strides = [1, 1, 1]} : vector<2x8x384xf32> to vector<2x1x384xf32>
    %378 = vector.shape_cast %377 : vector<2x1x384xf32> to vector<2x384xf32>
    %cst_79 = arith.constant dense<0.000000e+00> : vector<2x384xf32>
    %379 = tpu.matmul %371, %83, %cst_79 {dimension_numbers = #tpu.dot_dimension_numbers<[1], [0], [0], [1], [0, 0, 1, 1], [], []>} : vector<2x128xf32>, vector<128x384xf32>, vector<2x384xf32> -> vector<2x384xf32>
    %380 = vector.broadcast %84 : vector<1x384xf32> to vector<2x384xf32>
    %381 = arith.addf %379, %380 : vector<2x384xf32>
    %382 = vector.extract_strided_slice %378 {offsets = [0, 0], sizes = [2, 128], strides = [1, 1]} : vector<2x384xf32> to vector<2x128xf32>
    %383 = vector.extract_strided_slice %378 {offsets = [0, 128], sizes = [2, 128], strides = [1, 1]} : vector<2x384xf32> to vector<2x128xf32>
    %384 = vector.extract_strided_slice %378 {offsets = [0, 256], sizes = [2, 128], strides = [1, 1]} : vector<2x384xf32> to vector<2x128xf32>
    %385 = vector.extract_strided_slice %381 {offsets = [0, 0], sizes = [2, 128], strides = [1, 1]} : vector<2x384xf32> to vector<2x128xf32>
    %386 = vector.extract_strided_slice %381 {offsets = [0, 128], sizes = [2, 128], strides = [1, 1]} : vector<2x384xf32> to vector<2x128xf32>
    %387 = vector.extract_strided_slice %381 {offsets = [0, 256], sizes = [2, 128], strides = [1, 1]} : vector<2x384xf32> to vector<2x128xf32>
    %388 = arith.addf %382, %385 : vector<2x128xf32>
    %389 = arith.negf %388 : vector<2x128xf32>
    %390 = math.exp %389 : vector<2x128xf32>
    %cst_80 = arith.constant 1.000000e+00 : f32
    %391 = vector.broadcast %cst_80 : f32 to vector<2x128xf32>
    %392 = arith.addf %391, %390 : vector<2x128xf32>
    %393 = arith.divf %391, %392 : vector<2x128xf32>
    %394 = arith.addf %383, %386 : vector<2x128xf32>
    %395 = arith.negf %394 : vector<2x128xf32>
    %396 = math.exp %395 : vector<2x128xf32>
    %cst_81 = arith.constant 1.000000e+00 : f32
    %397 = vector.broadcast %cst_81 : f32 to vector<2x128xf32>
    %398 = arith.addf %397, %396 : vector<2x128xf32>
    %399 = arith.divf %397, %398 : vector<2x128xf32>
    %400 = arith.mulf %393, %387 : vector<2x128xf32>
    %401 = arith.addf %384, %400 : vector<2x128xf32>
    %402 = math.tanh %401 : vector<2x128xf32>
    %cst_82 = arith.constant 1.000000e+00 : f32
    %403 = vector.broadcast %cst_82 : f32 to vector<2x128xf32>
    %404 = arith.subf %403, %399 : vector<2x128xf32>
    %405 = arith.mulf %404, %402 : vector<2x128xf32>
    %406 = arith.mulf %399, %371 : vector<2x128xf32>
    %407 = arith.addf %405, %406 : vector<2x128xf32>
    %408 = vector.extract_strided_slice %82 {offsets = [0, 3, 0], sizes = [2, 1, 384], strides = [1, 1, 1]} : vector<2x8x384xf32> to vector<2x1x384xf32>
    %409 = vector.shape_cast %408 : vector<2x1x384xf32> to vector<2x384xf32>
    %cst_83 = arith.constant dense<0.000000e+00> : vector<2x384xf32>
    %410 = tpu.matmul %376, %85, %cst_83 {dimension_numbers = #tpu.dot_dimension_numbers<[1], [0], [0], [1], [0, 0, 1, 1], [], []>} : vector<2x128xf32>, vector<128x384xf32>, vector<2x384xf32> -> vector<2x384xf32>
    %411 = vector.broadcast %86 : vector<1x384xf32> to vector<2x384xf32>
    %412 = arith.addf %410, %411 : vector<2x384xf32>
    %413 = vector.extract_strided_slice %409 {offsets = [0, 0], sizes = [2, 128], strides = [1, 1]} : vector<2x384xf32> to vector<2x128xf32>
    %414 = vector.extract_strided_slice %409 {offsets = [0, 128], sizes = [2, 128], strides = [1, 1]} : vector<2x384xf32> to vector<2x128xf32>
    %415 = vector.extract_strided_slice %409 {offsets = [0, 256], sizes = [2, 128], strides = [1, 1]} : vector<2x384xf32> to vector<2x128xf32>
    %416 = vector.extract_strided_slice %412 {offsets = [0, 0], sizes = [2, 128], strides = [1, 1]} : vector<2x384xf32> to vector<2x128xf32>
    %417 = vector.extract_strided_slice %412 {offsets = [0, 128], sizes = [2, 128], strides = [1, 1]} : vector<2x384xf32> to vector<2x128xf32>
    %418 = vector.extract_strided_slice %412 {offsets = [0, 256], sizes = [2, 128], strides = [1, 1]} : vector<2x384xf32> to vector<2x128xf32>
    %419 = arith.addf %413, %416 : vector<2x128xf32>
    %420 = arith.negf %419 : vector<2x128xf32>
    %421 = math.exp %420 : vector<2x128xf32>
    %cst_84 = arith.constant 1.000000e+00 : f32
    %422 = vector.broadcast %cst_84 : f32 to vector<2x128xf32>
    %423 = arith.addf %422, %421 : vector<2x128xf32>
    %424 = arith.divf %422, %423 : vector<2x128xf32>
    %425 = arith.addf %414, %417 : vector<2x128xf32>
    %426 = arith.negf %425 : vector<2x128xf32>
    %427 = math.exp %426 : vector<2x128xf32>
    %cst_85 = arith.constant 1.000000e+00 : f32
    %428 = vector.broadcast %cst_85 : f32 to vector<2x128xf32>
    %429 = arith.addf %428, %427 : vector<2x128xf32>
    %430 = arith.divf %428, %429 : vector<2x128xf32>
    %431 = arith.mulf %424, %418 : vector<2x128xf32>
    %432 = arith.addf %415, %431 : vector<2x128xf32>
    %433 = math.tanh %432 : vector<2x128xf32>
    %cst_86 = arith.constant 1.000000e+00 : f32
    %434 = vector.broadcast %cst_86 : f32 to vector<2x128xf32>
    %435 = arith.subf %434, %430 : vector<2x128xf32>
    %436 = arith.mulf %435, %433 : vector<2x128xf32>
    %437 = arith.mulf %430, %376 : vector<2x128xf32>
    %438 = arith.addf %436, %437 : vector<2x128xf32>
    %439 = vector.extract_strided_slice %74 {offsets = [0, 4, 0], sizes = [2, 1, 1], strides = [1, 1, 1]} : vector<2x8x1xi1> to vector<2x1x1xi1>
    %440 = vector.shape_cast %439 : vector<2x1x1xi1> to vector<2x1xi1>
    %441 = vector.shape_cast %440 : vector<2x1xi1> to vector<2x1xi1>
    %442 = vector.broadcast %441 : vector<2x1xi1> to vector<2x128xi1>
    %443 = arith.select %442, %407, %371 : vector<2x128xi1>, vector<2x128xf32>
    %444 = vector.extract_strided_slice %74 {offsets = [0, 3, 0], sizes = [2, 1, 1], strides = [1, 1, 1]} : vector<2x8x1xi1> to vector<2x1x1xi1>
    %445 = vector.shape_cast %444 : vector<2x1x1xi1> to vector<2x1xi1>
    %446 = vector.shape_cast %445 : vector<2x1xi1> to vector<2x1xi1>
    %447 = vector.broadcast %446 : vector<2x1xi1> to vector<2x128xi1>
    %448 = arith.select %447, %438, %376 : vector<2x128xi1>, vector<2x128xf32>
    %449 = vector.extract_strided_slice %81 {offsets = [0, 5, 0], sizes = [2, 1, 384], strides = [1, 1, 1]} : vector<2x8x384xf32> to vector<2x1x384xf32>
    %450 = vector.shape_cast %449 : vector<2x1x384xf32> to vector<2x384xf32>
    %cst_87 = arith.constant dense<0.000000e+00> : vector<2x384xf32>
    %451 = tpu.matmul %443, %83, %cst_87 {dimension_numbers = #tpu.dot_dimension_numbers<[1], [0], [0], [1], [0, 0, 1, 1], [], []>} : vector<2x128xf32>, vector<128x384xf32>, vector<2x384xf32> -> vector<2x384xf32>
    %452 = vector.broadcast %84 : vector<1x384xf32> to vector<2x384xf32>
    %453 = arith.addf %451, %452 : vector<2x384xf32>
    %454 = vector.extract_strided_slice %450 {offsets = [0, 0], sizes = [2, 128], strides = [1, 1]} : vector<2x384xf32> to vector<2x128xf32>
    %455 = vector.extract_strided_slice %450 {offsets = [0, 128], sizes = [2, 128], strides = [1, 1]} : vector<2x384xf32> to vector<2x128xf32>
    %456 = vector.extract_strided_slice %450 {offsets = [0, 256], sizes = [2, 128], strides = [1, 1]} : vector<2x384xf32> to vector<2x128xf32>
    %457 = vector.extract_strided_slice %453 {offsets = [0, 0], sizes = [2, 128], strides = [1, 1]} : vector<2x384xf32> to vector<2x128xf32>
    %458 = vector.extract_strided_slice %453 {offsets = [0, 128], sizes = [2, 128], strides = [1, 1]} : vector<2x384xf32> to vector<2x128xf32>
    %459 = vector.extract_strided_slice %453 {offsets = [0, 256], sizes = [2, 128], strides = [1, 1]} : vector<2x384xf32> to vector<2x128xf32>
    %460 = arith.addf %454, %457 : vector<2x128xf32>
    %461 = arith.negf %460 : vector<2x128xf32>
    %462 = math.exp %461 : vector<2x128xf32>
    %cst_88 = arith.constant 1.000000e+00 : f32
    %463 = vector.broadcast %cst_88 : f32 to vector<2x128xf32>
    %464 = arith.addf %463, %462 : vector<2x128xf32>
    %465 = arith.divf %463, %464 : vector<2x128xf32>
    %466 = arith.addf %455, %458 : vector<2x128xf32>
    %467 = arith.negf %466 : vector<2x128xf32>
    %468 = math.exp %467 : vector<2x128xf32>
    %cst_89 = arith.constant 1.000000e+00 : f32
    %469 = vector.broadcast %cst_89 : f32 to vector<2x128xf32>
    %470 = arith.addf %469, %468 : vector<2x128xf32>
    %471 = arith.divf %469, %470 : vector<2x128xf32>
    %472 = arith.mulf %465, %459 : vector<2x128xf32>
    %473 = arith.addf %456, %472 : vector<2x128xf32>
    %474 = math.tanh %473 : vector<2x128xf32>
    %cst_90 = arith.constant 1.000000e+00 : f32
    %475 = vector.broadcast %cst_90 : f32 to vector<2x128xf32>
    %476 = arith.subf %475, %471 : vector<2x128xf32>
    %477 = arith.mulf %476, %474 : vector<2x128xf32>
    %478 = arith.mulf %471, %443 : vector<2x128xf32>
    %479 = arith.addf %477, %478 : vector<2x128xf32>
    %480 = vector.extract_strided_slice %82 {offsets = [0, 2, 0], sizes = [2, 1, 384], strides = [1, 1, 1]} : vector<2x8x384xf32> to vector<2x1x384xf32>
    %481 = vector.shape_cast %480 : vector<2x1x384xf32> to vector<2x384xf32>
    %cst_91 = arith.constant dense<0.000000e+00> : vector<2x384xf32>
    %482 = tpu.matmul %448, %85, %cst_91 {dimension_numbers = #tpu.dot_dimension_numbers<[1], [0], [0], [1], [0, 0, 1, 1], [], []>} : vector<2x128xf32>, vector<128x384xf32>, vector<2x384xf32> -> vector<2x384xf32>
    %483 = vector.broadcast %86 : vector<1x384xf32> to vector<2x384xf32>
    %484 = arith.addf %482, %483 : vector<2x384xf32>
    %485 = vector.extract_strided_slice %481 {offsets = [0, 0], sizes = [2, 128], strides = [1, 1]} : vector<2x384xf32> to vector<2x128xf32>
    %486 = vector.extract_strided_slice %481 {offsets = [0, 128], sizes = [2, 128], strides = [1, 1]} : vector<2x384xf32> to vector<2x128xf32>
    %487 = vector.extract_strided_slice %481 {offsets = [0, 256], sizes = [2, 128], strides = [1, 1]} : vector<2x384xf32> to vector<2x128xf32>
    %488 = vector.extract_strided_slice %484 {offsets = [0, 0], sizes = [2, 128], strides = [1, 1]} : vector<2x384xf32> to vector<2x128xf32>
    %489 = vector.extract_strided_slice %484 {offsets = [0, 128], sizes = [2, 128], strides = [1, 1]} : vector<2x384xf32> to vector<2x128xf32>
    %490 = vector.extract_strided_slice %484 {offsets = [0, 256], sizes = [2, 128], strides = [1, 1]} : vector<2x384xf32> to vector<2x128xf32>
    %491 = arith.addf %485, %488 : vector<2x128xf32>
    %492 = arith.negf %491 : vector<2x128xf32>
    %493 = math.exp %492 : vector<2x128xf32>
    %cst_92 = arith.constant 1.000000e+00 : f32
    %494 = vector.broadcast %cst_92 : f32 to vector<2x128xf32>
    %495 = arith.addf %494, %493 : vector<2x128xf32>
    %496 = arith.divf %494, %495 : vector<2x128xf32>
    %497 = arith.addf %486, %489 : vector<2x128xf32>
    %498 = arith.negf %497 : vector<2x128xf32>
    %499 = math.exp %498 : vector<2x128xf32>
    %cst_93 = arith.constant 1.000000e+00 : f32
    %500 = vector.broadcast %cst_93 : f32 to vector<2x128xf32>
    %501 = arith.addf %500, %499 : vector<2x128xf32>
    %502 = arith.divf %500, %501 : vector<2x128xf32>
    %503 = arith.mulf %496, %490 : vector<2x128xf32>
    %504 = arith.addf %487, %503 : vector<2x128xf32>
    %505 = math.tanh %504 : vector<2x128xf32>
    %cst_94 = arith.constant 1.000000e+00 : f32
    %506 = vector.broadcast %cst_94 : f32 to vector<2x128xf32>
    %507 = arith.subf %506, %502 : vector<2x128xf32>
    %508 = arith.mulf %507, %505 : vector<2x128xf32>
    %509 = arith.mulf %502, %448 : vector<2x128xf32>
    %510 = arith.addf %508, %509 : vector<2x128xf32>
    %511 = vector.extract_strided_slice %74 {offsets = [0, 5, 0], sizes = [2, 1, 1], strides = [1, 1, 1]} : vector<2x8x1xi1> to vector<2x1x1xi1>
    %512 = vector.shape_cast %511 : vector<2x1x1xi1> to vector<2x1xi1>
    %513 = vector.shape_cast %512 : vector<2x1xi1> to vector<2x1xi1>
    %514 = vector.broadcast %513 : vector<2x1xi1> to vector<2x128xi1>
    %515 = arith.select %514, %479, %443 : vector<2x128xi1>, vector<2x128xf32>
    %516 = vector.extract_strided_slice %74 {offsets = [0, 2, 0], sizes = [2, 1, 1], strides = [1, 1, 1]} : vector<2x8x1xi1> to vector<2x1x1xi1>
    %517 = vector.shape_cast %516 : vector<2x1x1xi1> to vector<2x1xi1>
    %518 = vector.shape_cast %517 : vector<2x1xi1> to vector<2x1xi1>
    %519 = vector.broadcast %518 : vector<2x1xi1> to vector<2x128xi1>
    %520 = arith.select %519, %510, %448 : vector<2x128xi1>, vector<2x128xf32>
    %521 = vector.extract_strided_slice %81 {offsets = [0, 6, 0], sizes = [2, 1, 384], strides = [1, 1, 1]} : vector<2x8x384xf32> to vector<2x1x384xf32>
    %522 = vector.shape_cast %521 : vector<2x1x384xf32> to vector<2x384xf32>
    %cst_95 = arith.constant dense<0.000000e+00> : vector<2x384xf32>
    %523 = tpu.matmul %515, %83, %cst_95 {dimension_numbers = #tpu.dot_dimension_numbers<[1], [0], [0], [1], [0, 0, 1, 1], [], []>} : vector<2x128xf32>, vector<128x384xf32>, vector<2x384xf32> -> vector<2x384xf32>
    %524 = vector.broadcast %84 : vector<1x384xf32> to vector<2x384xf32>
    %525 = arith.addf %523, %524 : vector<2x384xf32>
    %526 = vector.extract_strided_slice %522 {offsets = [0, 0], sizes = [2, 128], strides = [1, 1]} : vector<2x384xf32> to vector<2x128xf32>
    %527 = vector.extract_strided_slice %522 {offsets = [0, 128], sizes = [2, 128], strides = [1, 1]} : vector<2x384xf32> to vector<2x128xf32>
    %528 = vector.extract_strided_slice %522 {offsets = [0, 256], sizes = [2, 128], strides = [1, 1]} : vector<2x384xf32> to vector<2x128xf32>
    %529 = vector.extract_strided_slice %525 {offsets = [0, 0], sizes = [2, 128], strides = [1, 1]} : vector<2x384xf32> to vector<2x128xf32>
    %530 = vector.extract_strided_slice %525 {offsets = [0, 128], sizes = [2, 128], strides = [1, 1]} : vector<2x384xf32> to vector<2x128xf32>
    %531 = vector.extract_strided_slice %525 {offsets = [0, 256], sizes = [2, 128], strides = [1, 1]} : vector<2x384xf32> to vector<2x128xf32>
    %532 = arith.addf %526, %529 : vector<2x128xf32>
    %533 = arith.negf %532 : vector<2x128xf32>
    %534 = math.exp %533 : vector<2x128xf32>
    %cst_96 = arith.constant 1.000000e+00 : f32
    %535 = vector.broadcast %cst_96 : f32 to vector<2x128xf32>
    %536 = arith.addf %535, %534 : vector<2x128xf32>
    %537 = arith.divf %535, %536 : vector<2x128xf32>
    %538 = arith.addf %527, %530 : vector<2x128xf32>
    %539 = arith.negf %538 : vector<2x128xf32>
    %540 = math.exp %539 : vector<2x128xf32>
    %cst_97 = arith.constant 1.000000e+00 : f32
    %541 = vector.broadcast %cst_97 : f32 to vector<2x128xf32>
    %542 = arith.addf %541, %540 : vector<2x128xf32>
    %543 = arith.divf %541, %542 : vector<2x128xf32>
    %544 = arith.mulf %537, %531 : vector<2x128xf32>
    %545 = arith.addf %528, %544 : vector<2x128xf32>
    %546 = math.tanh %545 : vector<2x128xf32>
    %cst_98 = arith.constant 1.000000e+00 : f32
    %547 = vector.broadcast %cst_98 : f32 to vector<2x128xf32>
    %548 = arith.subf %547, %543 : vector<2x128xf32>
    %549 = arith.mulf %548, %546 : vector<2x128xf32>
    %550 = arith.mulf %543, %515 : vector<2x128xf32>
    %551 = arith.addf %549, %550 : vector<2x128xf32>
    %552 = vector.extract_strided_slice %82 {offsets = [0, 1, 0], sizes = [2, 1, 384], strides = [1, 1, 1]} : vector<2x8x384xf32> to vector<2x1x384xf32>
    %553 = vector.shape_cast %552 : vector<2x1x384xf32> to vector<2x384xf32>
    %cst_99 = arith.constant dense<0.000000e+00> : vector<2x384xf32>
    %554 = tpu.matmul %520, %85, %cst_99 {dimension_numbers = #tpu.dot_dimension_numbers<[1], [0], [0], [1], [0, 0, 1, 1], [], []>} : vector<2x128xf32>, vector<128x384xf32>, vector<2x384xf32> -> vector<2x384xf32>
    %555 = vector.broadcast %86 : vector<1x384xf32> to vector<2x384xf32>
    %556 = arith.addf %554, %555 : vector<2x384xf32>
    %557 = vector.extract_strided_slice %553 {offsets = [0, 0], sizes = [2, 128], strides = [1, 1]} : vector<2x384xf32> to vector<2x128xf32>
    %558 = vector.extract_strided_slice %553 {offsets = [0, 128], sizes = [2, 128], strides = [1, 1]} : vector<2x384xf32> to vector<2x128xf32>
    %559 = vector.extract_strided_slice %553 {offsets = [0, 256], sizes = [2, 128], strides = [1, 1]} : vector<2x384xf32> to vector<2x128xf32>
    %560 = vector.extract_strided_slice %556 {offsets = [0, 0], sizes = [2, 128], strides = [1, 1]} : vector<2x384xf32> to vector<2x128xf32>
    %561 = vector.extract_strided_slice %556 {offsets = [0, 128], sizes = [2, 128], strides = [1, 1]} : vector<2x384xf32> to vector<2x128xf32>
    %562 = vector.extract_strided_slice %556 {offsets = [0, 256], sizes = [2, 128], strides = [1, 1]} : vector<2x384xf32> to vector<2x128xf32>
    %563 = arith.addf %557, %560 : vector<2x128xf32>
    %564 = arith.negf %563 : vector<2x128xf32>
    %565 = math.exp %564 : vector<2x128xf32>
    %cst_100 = arith.constant 1.000000e+00 : f32
    %566 = vector.broadcast %cst_100 : f32 to vector<2x128xf32>
    %567 = arith.addf %566, %565 : vector<2x128xf32>
    %568 = arith.divf %566, %567 : vector<2x128xf32>
    %569 = arith.addf %558, %561 : vector<2x128xf32>
    %570 = arith.negf %569 : vector<2x128xf32>
    %571 = math.exp %570 : vector<2x128xf32>
    %cst_101 = arith.constant 1.000000e+00 : f32
    %572 = vector.broadcast %cst_101 : f32 to vector<2x128xf32>
    %573 = arith.addf %572, %571 : vector<2x128xf32>
    %574 = arith.divf %572, %573 : vector<2x128xf32>
    %575 = arith.mulf %568, %562 : vector<2x128xf32>
    %576 = arith.addf %559, %575 : vector<2x128xf32>
    %577 = math.tanh %576 : vector<2x128xf32>
    %cst_102 = arith.constant 1.000000e+00 : f32
    %578 = vector.broadcast %cst_102 : f32 to vector<2x128xf32>
    %579 = arith.subf %578, %574 : vector<2x128xf32>
    %580 = arith.mulf %579, %577 : vector<2x128xf32>
    %581 = arith.mulf %574, %520 : vector<2x128xf32>
    %582 = arith.addf %580, %581 : vector<2x128xf32>
    %583 = vector.extract_strided_slice %74 {offsets = [0, 6, 0], sizes = [2, 1, 1], strides = [1, 1, 1]} : vector<2x8x1xi1> to vector<2x1x1xi1>
    %584 = vector.shape_cast %583 : vector<2x1x1xi1> to vector<2x1xi1>
    %585 = vector.shape_cast %584 : vector<2x1xi1> to vector<2x1xi1>
    %586 = vector.broadcast %585 : vector<2x1xi1> to vector<2x128xi1>
    %587 = arith.select %586, %551, %515 : vector<2x128xi1>, vector<2x128xf32>
    %588 = vector.extract_strided_slice %74 {offsets = [0, 1, 0], sizes = [2, 1, 1], strides = [1, 1, 1]} : vector<2x8x1xi1> to vector<2x1x1xi1>
    %589 = vector.shape_cast %588 : vector<2x1x1xi1> to vector<2x1xi1>
    %590 = vector.shape_cast %589 : vector<2x1xi1> to vector<2x1xi1>
    %591 = vector.broadcast %590 : vector<2x1xi1> to vector<2x128xi1>
    %592 = arith.select %591, %582, %520 : vector<2x128xi1>, vector<2x128xf32>
    %593 = vector.extract_strided_slice %81 {offsets = [0, 7, 0], sizes = [2, 1, 384], strides = [1, 1, 1]} : vector<2x8x384xf32> to vector<2x1x384xf32>
    %594 = vector.shape_cast %593 : vector<2x1x384xf32> to vector<2x384xf32>
    %cst_103 = arith.constant dense<0.000000e+00> : vector<2x384xf32>
    %595 = tpu.matmul %587, %83, %cst_103 {dimension_numbers = #tpu.dot_dimension_numbers<[1], [0], [0], [1], [0, 0, 1, 1], [], []>} : vector<2x128xf32>, vector<128x384xf32>, vector<2x384xf32> -> vector<2x384xf32>
    %596 = vector.broadcast %84 : vector<1x384xf32> to vector<2x384xf32>
    %597 = arith.addf %595, %596 : vector<2x384xf32>
    %598 = vector.extract_strided_slice %594 {offsets = [0, 0], sizes = [2, 128], strides = [1, 1]} : vector<2x384xf32> to vector<2x128xf32>
    %599 = vector.extract_strided_slice %594 {offsets = [0, 128], sizes = [2, 128], strides = [1, 1]} : vector<2x384xf32> to vector<2x128xf32>
    %600 = vector.extract_strided_slice %594 {offsets = [0, 256], sizes = [2, 128], strides = [1, 1]} : vector<2x384xf32> to vector<2x128xf32>
    %601 = vector.extract_strided_slice %597 {offsets = [0, 0], sizes = [2, 128], strides = [1, 1]} : vector<2x384xf32> to vector<2x128xf32>
    %602 = vector.extract_strided_slice %597 {offsets = [0, 128], sizes = [2, 128], strides = [1, 1]} : vector<2x384xf32> to vector<2x128xf32>
    %603 = vector.extract_strided_slice %597 {offsets = [0, 256], sizes = [2, 128], strides = [1, 1]} : vector<2x384xf32> to vector<2x128xf32>
    %604 = arith.addf %598, %601 : vector<2x128xf32>
    %605 = arith.negf %604 : vector<2x128xf32>
    %606 = math.exp %605 : vector<2x128xf32>
    %cst_104 = arith.constant 1.000000e+00 : f32
    %607 = vector.broadcast %cst_104 : f32 to vector<2x128xf32>
    %608 = arith.addf %607, %606 : vector<2x128xf32>
    %609 = arith.divf %607, %608 : vector<2x128xf32>
    %610 = arith.addf %599, %602 : vector<2x128xf32>
    %611 = arith.negf %610 : vector<2x128xf32>
    %612 = math.exp %611 : vector<2x128xf32>
    %cst_105 = arith.constant 1.000000e+00 : f32
    %613 = vector.broadcast %cst_105 : f32 to vector<2x128xf32>
    %614 = arith.addf %613, %612 : vector<2x128xf32>
    %615 = arith.divf %613, %614 : vector<2x128xf32>
    %616 = arith.mulf %609, %603 : vector<2x128xf32>
    %617 = arith.addf %600, %616 : vector<2x128xf32>
    %618 = math.tanh %617 : vector<2x128xf32>
    %cst_106 = arith.constant 1.000000e+00 : f32
    %619 = vector.broadcast %cst_106 : f32 to vector<2x128xf32>
    %620 = arith.subf %619, %615 : vector<2x128xf32>
    %621 = arith.mulf %620, %618 : vector<2x128xf32>
    %622 = arith.mulf %615, %587 : vector<2x128xf32>
    %623 = arith.addf %621, %622 : vector<2x128xf32>
    %624 = vector.extract_strided_slice %82 {offsets = [0, 0, 0], sizes = [2, 1, 384], strides = [1, 1, 1]} : vector<2x8x384xf32> to vector<2x1x384xf32>
    %625 = vector.shape_cast %624 : vector<2x1x384xf32> to vector<2x384xf32>
    %cst_107 = arith.constant dense<0.000000e+00> : vector<2x384xf32>
    %626 = tpu.matmul %592, %85, %cst_107 {dimension_numbers = #tpu.dot_dimension_numbers<[1], [0], [0], [1], [0, 0, 1, 1], [], []>} : vector<2x128xf32>, vector<128x384xf32>, vector<2x384xf32> -> vector<2x384xf32>
    %627 = vector.broadcast %86 : vector<1x384xf32> to vector<2x384xf32>
    %628 = arith.addf %626, %627 : vector<2x384xf32>
    %629 = vector.extract_strided_slice %625 {offsets = [0, 0], sizes = [2, 128], strides = [1, 1]} : vector<2x384xf32> to vector<2x128xf32>
    %630 = vector.extract_strided_slice %625 {offsets = [0, 128], sizes = [2, 128], strides = [1, 1]} : vector<2x384xf32> to vector<2x128xf32>
    %631 = vector.extract_strided_slice %625 {offsets = [0, 256], sizes = [2, 128], strides = [1, 1]} : vector<2x384xf32> to vector<2x128xf32>
    %632 = vector.extract_strided_slice %628 {offsets = [0, 0], sizes = [2, 128], strides = [1, 1]} : vector<2x384xf32> to vector<2x128xf32>
    %633 = vector.extract_strided_slice %628 {offsets = [0, 128], sizes = [2, 128], strides = [1, 1]} : vector<2x384xf32> to vector<2x128xf32>
    %634 = vector.extract_strided_slice %628 {offsets = [0, 256], sizes = [2, 128], strides = [1, 1]} : vector<2x384xf32> to vector<2x128xf32>
    %635 = arith.addf %629, %632 : vector<2x128xf32>
    %636 = arith.negf %635 : vector<2x128xf32>
    %637 = math.exp %636 : vector<2x128xf32>
    %cst_108 = arith.constant 1.000000e+00 : f32
    %638 = vector.broadcast %cst_108 : f32 to vector<2x128xf32>
    %639 = arith.addf %638, %637 : vector<2x128xf32>
    %640 = arith.divf %638, %639 : vector<2x128xf32>
    %641 = arith.addf %630, %633 : vector<2x128xf32>
    %642 = arith.negf %641 : vector<2x128xf32>
    %643 = math.exp %642 : vector<2x128xf32>
    %cst_109 = arith.constant 1.000000e+00 : f32
    %644 = vector.broadcast %cst_109 : f32 to vector<2x128xf32>
    %645 = arith.addf %644, %643 : vector<2x128xf32>
    %646 = arith.divf %644, %645 : vector<2x128xf32>
    %647 = arith.mulf %640, %634 : vector<2x128xf32>
    %648 = arith.addf %631, %647 : vector<2x128xf32>
    %649 = math.tanh %648 : vector<2x128xf32>
    %cst_110 = arith.constant 1.000000e+00 : f32
    %650 = vector.broadcast %cst_110 : f32 to vector<2x128xf32>
    %651 = arith.subf %650, %646 : vector<2x128xf32>
    %652 = arith.mulf %651, %649 : vector<2x128xf32>
    %653 = arith.mulf %646, %592 : vector<2x128xf32>
    %654 = arith.addf %652, %653 : vector<2x128xf32>
    %655 = vector.extract_strided_slice %74 {offsets = [0, 7, 0], sizes = [2, 1, 1], strides = [1, 1, 1]} : vector<2x8x1xi1> to vector<2x1x1xi1>
    %656 = vector.shape_cast %655 : vector<2x1x1xi1> to vector<2x1xi1>
    %657 = vector.shape_cast %656 : vector<2x1xi1> to vector<2x1xi1>
    %658 = vector.broadcast %657 : vector<2x1xi1> to vector<2x128xi1>
    %659 = arith.select %658, %623, %587 : vector<2x128xi1>, vector<2x128xf32>
    %660 = vector.extract_strided_slice %74 {offsets = [0, 0, 0], sizes = [2, 1, 1], strides = [1, 1, 1]} : vector<2x8x1xi1> to vector<2x1x1xi1>
    %661 = vector.shape_cast %660 : vector<2x1x1xi1> to vector<2x1xi1>
    %662 = vector.shape_cast %661 : vector<2x1xi1> to vector<2x1xi1>
    %663 = vector.broadcast %662 : vector<2x1xi1> to vector<2x128xi1>
    %664 = arith.select %663, %654, %592 : vector<2x128xi1>, vector<2x128xf32>
    %665 = tpu.concatenate %659, %664 in 1 : vector<2x128xf32>, vector<2x128xf32> -> vector<2x256xf32>
    %c0_111 = arith.constant 0 : index
    %c0_112 = arith.constant 0 : index
    %666 = vector.load %arg16[%c0_111, %c0_112] : memref<128x64xf32, #tpu.memory_space<vmem>>, vector<128x64xf32>
    %cst_113 = arith.constant dense<0.000000e+00> : vector<16x64xf32>
    %667 = tpu.matmul %68, %666, %cst_113 {dimension_numbers = #tpu.dot_dimension_numbers<[1], [0], [0], [1], [0, 0, 1, 1], [], []>} : vector<16x128xf32>, vector<128x64xf32>, vector<16x64xf32> -> vector<16x64xf32>
    %668 = math.tanh %667 : vector<16x64xf32>
    %c0_114 = arith.constant 0 : index
    %c0_115 = arith.constant 0 : index
    %669 = vector.load %arg17[%c0_114, %c0_115] : memref<1x64xf32, #tpu.memory_space<vmem>>, vector<1x64xf32>
    %670 = vector.broadcast %669 : vector<1x64xf32> to vector<16x64xf32>
    %671 = arith.mulf %668, %670 : vector<16x64xf32>
    %cst_116 = arith.constant dense<0.000000e+00> : vector<16xf32>
    %672 = vector.multi_reduction <add>, %671, %cst_116 [1] : vector<16x64xf32> to vector<16xf32>
    %673 = vector.shape_cast %672 : vector<16xf32> to vector<16x1xf32>
    %674 = vector.shape_cast %673 : vector<16x1xf32> to vector<2x8x1xf32>
    %cst_117 = arith.constant 0xFF800000 : f32
    %675 = vector.broadcast %cst_117 : f32 to vector<2x8x1xf32>
    %676 = arith.select %74, %674, %675 : vector<2x8x1xi1>, vector<2x8x1xf32>
    %cst_118 = arith.constant dense<0xFF800000> : vector<2x1xf32>
    %677 = vector.multi_reduction <maximumf>, %676, %cst_118 [1] : vector<2x8x1xf32> to vector<2x1xf32>
    %678 = vector.shape_cast %677 : vector<2x1xf32> to vector<2x1x1xf32>
    %679 = vector.broadcast %678 : vector<2x1x1xf32> to vector<2x8x1xf32>
    %680 = arith.subf %676, %679 : vector<2x8x1xf32>
    %681 = math.exp %680 : vector<2x8x1xf32>
    %cst_119 = arith.constant dense<0.000000e+00> : vector<2x1xf32>
    %682 = vector.multi_reduction <add>, %681, %cst_119 [1] : vector<2x8x1xf32> to vector<2x1xf32>
    %683 = vector.shape_cast %682 : vector<2x1xf32> to vector<2x1x1xf32>
    %684 = vector.broadcast %683 : vector<2x1x1xf32> to vector<2x8x1xf32>
    %685 = arith.divf %681, %684 : vector<2x8x1xf32>
    %c0_120 = arith.constant 0 : index
    %c0_121 = arith.constant 0 : index
    %c0_122 = arith.constant 0 : index
    %686 = vector.load %arg28[%c0_120, %c0_121, %c0_122] : memref<2x8x1xf32, #tpu.memory_space<vmem>>, vector<2x8x1xf32>
    tpu.vector_store %arg28[%c0_120, %c0_121, %c0_122], %685 {strides = array<i32>} : memref<2x8x1xf32, #tpu.memory_space<vmem>>, vector<2x8x1xf32>,
    %687 = vector.broadcast %685 : vector<2x8x1xf32> to vector<2x8x128xf32>
    %688 = arith.mulf %687, %69 : vector<2x8x128xf32>
    %cst_123 = arith.constant dense<0.000000e+00> : vector<2x128xf32>
    %689 = vector.multi_reduction <add>, %688, %cst_123 [1] : vector<2x8x128xf32> to vector<2x128xf32>
    %c0_124 = arith.constant 0 : index
    %c0_125 = arith.constant 0 : index
    %690 = vector.load %arg18[%c0_124, %c0_125] : memref<128x256xf32, #tpu.memory_space<vmem>>, vector<128x256xf32>
    %cst_126 = arith.constant dense<0.000000e+00> : vector<2x256xf32>
    %691 = tpu.matmul %689, %690, %cst_126 {dimension_numbers = #tpu.dot_dimension_numbers<[1], [0], [0], [1], [0, 0, 1, 1], [], []>} : vector<2x128xf32>, vector<128x256xf32>, vector<2x256xf32> -> vector<2x256xf32>
    %c0_127 = arith.constant 0 : index
    %c0_128 = arith.constant 0 : index
    %692 = vector.load %arg19[%c0_127, %c0_128] : memref<1x256xf32, #tpu.memory_space<vmem>>, vector<1x256xf32>
    %693 = vector.broadcast %692 : vector<1x256xf32> to vector<2x256xf32>
    %694 = arith.addf %691, %693 : vector<2x256xf32>
    %695 = arith.negf %694 : vector<2x256xf32>
    %696 = math.exp %695 : vector<2x256xf32>
    %cst_129 = arith.constant 1.000000e+00 : f32
    %697 = vector.broadcast %cst_129 : f32 to vector<2x256xf32>
    %698 = arith.addf %697, %696 : vector<2x256xf32>
    %699 = arith.divf %697, %698 : vector<2x256xf32>
    %c0_130 = arith.constant 0 : index
    %c0_131 = arith.constant 0 : index
    %700 = vector.load %arg29[%c0_130, %c0_131] : memref<2x256xf32, #tpu.memory_space<vmem>>, vector<2x256xf32>
    tpu.vector_store %arg29[%c0_130, %c0_131], %699 {strides = array<i32>} : memref<2x256xf32, #tpu.memory_space<vmem>>, vector<2x256xf32>,
    %701 = arith.addf %665, %699 : vector<2x256xf32>
    %c0_132 = arith.constant 0 : index
    %c0_133 = arith.constant 0 : index
    %702 = vector.load %arg20[%c0_132, %c0_133] : memref<1x256xf32, #tpu.memory_space<vmem>>, vector<1x256xf32>
    %c0_134 = arith.constant 0 : index
    %c0_135 = arith.constant 0 : index
    %703 = vector.load %arg21[%c0_134, %c0_135] : memref<1x256xf32, #tpu.memory_space<vmem>>, vector<1x256xf32>
    %cst_136 = arith.constant dense<0.000000e+00> : vector<2xf32>
    %704 = vector.multi_reduction <add>, %701, %cst_136 [1] : vector<2x256xf32> to vector<2xf32>
    %705 = vector.shape_cast %704 : vector<2xf32> to vector<2x1xf32>
    %cst_137 = arith.constant 2.560000e+02 : f32
    %706 = vector.broadcast %cst_137 : f32 to vector<2x1xf32>
    %707 = arith.divf %705, %706 : vector<2x1xf32>
    %708 = vector.broadcast %707 : vector<2x1xf32> to vector<2x256xf32>
    %709 = arith.subf %701, %708 : vector<2x256xf32>
    %710 = arith.mulf %709, %709 : vector<2x256xf32>
    %cst_138 = arith.constant dense<0.000000e+00> : vector<2xf32>
    %711 = vector.multi_reduction <add>, %710, %cst_138 [1] : vector<2x256xf32> to vector<2xf32>
    %712 = vector.shape_cast %711 : vector<2xf32> to vector<2x1xf32>
    %cst_139 = arith.constant 2.560000e+02 : f32
    %713 = vector.broadcast %cst_139 : f32 to vector<2x1xf32>
    %714 = arith.divf %712, %713 : vector<2x1xf32>
    %715 = vector.broadcast %707 : vector<2x1xf32> to vector<2x256xf32>
    %716 = arith.subf %701, %715 : vector<2x256xf32>
    %cst_140 = arith.constant 9.99999974E-6 : f32
    %717 = vector.broadcast %cst_140 : f32 to vector<2x1xf32>
    %718 = arith.addf %714, %717 : vector<2x1xf32>
    %719 = math.rsqrt %718 : vector<2x1xf32>
    %720 = vector.broadcast %719 : vector<2x1xf32> to vector<2x256xf32>
    %721 = arith.mulf %716, %720 : vector<2x256xf32>
    %722 = vector.broadcast %702 : vector<1x256xf32> to vector<2x256xf32>
    %723 = arith.mulf %721, %722 : vector<2x256xf32>
    %724 = vector.broadcast %703 : vector<1x256xf32> to vector<2x256xf32>
    %725 = arith.addf %723, %724 : vector<2x256xf32>
    %726 = arith.mulf %725, %725 : vector<2x256xf32>
    %cst_141 = arith.constant dense<0.000000e+00> : vector<2xf32>
    %727 = vector.multi_reduction <add>, %726, %cst_141 [1] : vector<2x256xf32> to vector<2xf32>
    %728 = vector.shape_cast %727 : vector<2xf32> to vector<2x1xf32>
    %729 = math.sqrt %728 : vector<2x1xf32>
    %730 = vector.broadcast %729 : vector<2x1xf32> to vector<2x256xf32>
    %731 = arith.divf %725, %730 : vector<2x256xf32>
    %c0_142 = arith.constant 0 : index
    %c0_143 = arith.constant 0 : index
    %732 = vector.load %arg27[%c0_142, %c0_143] : memref<2x256xf32, #tpu.memory_space<vmem>>, vector<2x256xf32>
    tpu.vector_store %arg27[%c0_142, %c0_143], %731 {strides = array<i32>} : memref<2x256xf32, #tpu.memory_space<vmem>>, vector<2x256xf32>,
    %c0_144 = arith.constant 0 : index
    %c0_145 = arith.constant 0 : index
    %c0_146 = arith.constant 0 : index
    %733 = vector.load %arg3[%c0_144, %c0_145, %c0_146] : memref<2x4x192xf32, #tpu.memory_space<vmem>>, vector<2x4x192xf32>
    %734 = vector.shape_cast %733 : vector<2x4x192xf32> to vector<8x192xf32>
    %c0_147 = arith.constant 0 : index
    %c0_148 = arith.constant 0 : index
    %735 = vector.load %arg22[%c0_147, %c0_148] : memref<192x128xf32, #tpu.memory_space<vmem>>, vector<192x128xf32>
    %cst_149 = arith.constant dense<0.000000e+00> : vector<8x128xf32>
    %736 = tpu.matmul %734, %735, %cst_149 {dimension_numbers = #tpu.dot_dimension_numbers<[1], [0], [0], [1], [0, 0, 1, 1], [], []>} : vector<8x192xf32>, vector<192x128xf32>, vector<8x128xf32> -> vector<8x128xf32>
    %c0_150 = arith.constant 0 : index
    %c0_151 = arith.constant 0 : index
    %737 = vector.load %arg23[%c0_150, %c0_151] : memref<1x128xf32, #tpu.memory_space<vmem>>, vector<1x128xf32>
    %738 = vector.broadcast %737 : vector<1x128xf32> to vector<8x128xf32>
    %739 = arith.addf %736, %738 : vector<8x128xf32>
    %740 = vector.shape_cast %739 : vector<8x128xf32> to vector<2x4x128xf32>
    %cst_152 = arith.constant dense<0.000000e+00> : vector<2x128xf32>
    %741 = vector.multi_reduction <add>, %740, %cst_152 [1] : vector<2x4x128xf32> to vector<2x128xf32>
    %cst_153 = arith.constant 4.000000e+00 : f32
    %742 = vector.broadcast %cst_153 : f32 to vector<2x128xf32>
    %743 = arith.divf %741, %742 : vector<2x128xf32>
    %c0_154 = arith.constant 0 : index
    %c0_155 = arith.constant 0 : index
    %744 = vector.load %arg24[%c0_154, %c0_155] : memref<128x128xf32, #tpu.memory_space<vmem>>, vector<128x128xf32>
    %cst_156 = arith.constant dense<0.000000e+00> : vector<2x128xf32>
    %745 = tpu.matmul %743, %744, %cst_156 {dimension_numbers = #tpu.dot_dimension_numbers<[1], [0], [0], [1], [0, 0, 1, 1], [], []>} : vector<2x128xf32>, vector<128x128xf32>, vector<2x128xf32> -> vector<2x128xf32>
    %c0_157 = arith.constant 0 : index
    %c0_158 = arith.constant 0 : index
    %746 = vector.load %arg25[%c0_157, %c0_158] : memref<1x128xf32, #tpu.memory_space<vmem>>, vector<1x128xf32>
    %747 = vector.broadcast %746 : vector<1x128xf32> to vector<2x128xf32>
    %748 = arith.addf %745, %747 : vector<2x128xf32>
    %749 = math.tanh %748 : vector<2x128xf32>
    %c0_159 = arith.constant 0 : index
    %c0_160 = arith.constant 0 : index
    %750 = vector.load %arg26[%c0_159, %c0_160] : memref<2x128xf32, #tpu.memory_space<vmem>>, vector<2x128xf32>
    tpu.vector_store %arg26[%c0_159, %c0_160], %749 {strides = array<i32>} : memref<2x128xf32, #tpu.memory_space<vmem>>, vector<2x128xf32>,
    return
  }
}

</mosaic_0001>

<llo_original>
// kernel: ours_vilt_trace_forward.1
$region0: #{ours_vilt_trace_forward.1}
  #allocation0 [shape = 'u32[]', space=smem, size = 0x4, offset = 0x4, fixed_abs, tag = 'smem constant byte address 0x4 - core index']
  #allocation1 [shape = 'u32[144,128]{1,0:T(1,128)}', space=vmem, size = 0x12000, scoped, tag = 'internal scratch']
  %s0 = inlined_call_operand.smem [shape: u32[30], index: -1, kind: input, shape index: {}]
  %s1 = sld [smem:[%s0]]
  %s2 = scalar_lea.smem %s0, 1
  %s3 = sld [smem:[%s2]]
  %s4 = scalar_lea.smem %s0, 2
  %s5 = sld [smem:[%s4]]
  %s6 = scalar_lea.smem %s0, 3
  %s7 = sld [smem:[%s6]]
  %s8 = scalar_lea.smem %s0, 4
  %s9 = sld [smem:[%s8]]
  %s10 = scalar_lea.smem %s0, 5
  %s11 = sld [smem:[%s10]]
  %s12 = scalar_lea.smem %s0, 6
  %s13 = sld [smem:[%s12]]
  %s14 = scalar_lea.smem %s0, 7
  %s15 = sld [smem:[%s14]]
  %s16 = scalar_lea.smem %s0, 8
  %s17 = sld [smem:[%s16]]
  %s18 = scalar_lea.smem %s0, 9
  %s19 = sld [smem:[%s18]]
  %s20 = scalar_lea.smem %s0, 10
  %s21 = sld [smem:[%s20]]
  %s22 = scalar_lea.smem %s0, 11
  %s23 = sld [smem:[%s22]]
  %s24 = scalar_lea.smem %s0, 12
  %s25 = sld [smem:[%s24]]
  %s26 = scalar_lea.smem %s0, 13
  %s27 = sld [smem:[%s26]]
  %s28 = scalar_lea.smem %s0, 14
  %s29 = sld [smem:[%s28]]
  %s30 = scalar_lea.smem %s0, 15
  %s31 = sld [smem:[%s30]]
  %s32 = scalar_lea.smem %s0, 16
  %s33 = sld [smem:[%s32]]
  %s34 = scalar_lea.smem %s0, 17
  %s35 = sld [smem:[%s34]]
  %s36 = scalar_lea.smem %s0, 18
  %s37 = sld [smem:[%s36]]
  %s38 = scalar_lea.smem %s0, 19
  %s39 = sld [smem:[%s38]]
  %s40 = scalar_lea.smem %s0, 20
  %s41 = sld [smem:[%s40]]
  %s42 = scalar_lea.smem %s0, 21
  %s43 = sld [smem:[%s42]]
  %s44 = scalar_lea.smem %s0, 22
  %s45 = sld [smem:[%s44]]
  %s46 = scalar_lea.smem %s0, 23
  %s47 = sld [smem:[%s46]]
  %s48 = scalar_lea.smem %s0, 24
  %s49 = sld [smem:[%s48]]
  %s50 = scalar_lea.smem %s0, 25
  %s51 = sld [smem:[%s50]]
  %s52 = scalar_lea.smem %s0, 26
  %s53 = sld [smem:[%s52]]
  %s54 = scalar_lea.smem %s0, 27
  %s55 = sld [smem:[%s54]]
  %s56 = scalar_lea.smem %s0, 28
  %s57 = sld [smem:[%s56]]
  %s58 = scalar_lea.smem %s0, 29
  %s59 = sld [smem:[%s58]]
  %60 = xla_tuple %s53, %s55, %s57, %s59
  %s61 = sld [smem:[#allocation0]]
  $region138: #{ours_vilt_trace_forward.1} parent=0
    _
  %s63 = ssub.s32 1, %s61
  %s64 = scalar_select 0, %s63, %s61
  $region1: #{ours_vilt_trace_forward.1} parent=0
    #allocation2 [shape = 'u8[1024]{0}', space=vmem, size = 0x400, scoped, tag = 'output window, operand 0, single buffered']
    #allocation3 [shape = 's32[1]{0}', space=sflag, size = 0x4, scoped, tag = 'scoped memory for ours_vilt_trace_forward.1']
    #allocation4 [shape = 'u8[2048]{0}', space=vmem, size = 0x800, scoped, tag = 'output window, operand 1, single buffered']
    #allocation5 [shape = 's32[1]{0}', space=sflag, size = 0x4, scoped, tag = 'scoped memory for ours_vilt_trace_forward.1']
    #allocation6 [shape = 'u8[2048]{0}', space=vmem, size = 0x800, scoped, tag = 'output window, operand 3, single buffered']
    %65 = vsyncpa [#allocation3], 0
    %66 = vsyncpa [#allocation5], 0
    // Predicated region
    $region2: #{ours_vilt_trace_forward.1} parent=1 // pred_check
      _
    $region3: #{ours_vilt_trace_forward.1} parent=1 // pred_check_branch
      %68 = sbr.rel (0) target = $region5
    $region4: #{ours_vilt_trace_forward.1} parent=1 // pred_region
      _
    $region5: #{ours_vilt_trace_forward.1} parent=1 // pred_fallthru
      _
    // Predicated region
    $region6: #{ours_vilt_trace_forward.1} parent=1 // pred_check
      _
    $region7: #{ours_vilt_trace_forward.1} parent=1 // pred_check_branch
      %70 = sbr.rel (0) target = $region9
    $region8: #{ours_vilt_trace_forward.1} parent=1 // pred_region
      _
    $region9: #{ours_vilt_trace_forward.1} parent=1 // pred_fallthru
      _
    // Predicated region
    $region10: #{ours_vilt_trace_forward.1} parent=1 // pred_check
      _
    $region11: #{ours_vilt_trace_forward.1} parent=1 // pred_check_branch
      %72 = sbr.rel (0) target = $region13
    $region12: #{ours_vilt_trace_forward.1} parent=1 // pred_region
      _
    $region13: #{ours_vilt_trace_forward.1} parent=1 // pred_fallthru
      _
    // Predicated region
    $region14: #{ours_vilt_trace_forward.1} parent=1 // pred_check
      _
    $region15: #{ours_vilt_trace_forward.1} parent=1 // pred_check_branch
      %74 = sbr.rel (0) target = $region17
    $region16: #{ours_vilt_trace_forward.1} parent=1 // pred_region
      _
    $region17: #{ours_vilt_trace_forward.1} parent=1 // pred_fallthru
      _
    // Predicated region
    $region18: #{ours_vilt_trace_forward.1} parent=1 // pred_check
      _
    $region19: #{ours_vilt_trace_forward.1} parent=1 // pred_check_branch
      %76 = sbr.rel (0) target = $region21
    $region20: #{ours_vilt_trace_forward.1} parent=1 // pred_region
      _
    $region21: #{ours_vilt_trace_forward.1} parent=1 // pred_fallthru
      _
    // Predicated region
    $region22: #{ours_vilt_trace_forward.1} parent=1 // pred_check
      _
    $region23: #{ours_vilt_trace_forward.1} parent=1 // pred_check_branch
      %78 = sbr.rel (0) target = $region25
    $region24: #{ours_vilt_trace_forward.1} parent=1 // pred_region
      _
    $region25: #{ours_vilt_trace_forward.1} parent=1 // pred_fallthru
      _
    // Predicated region
    $region26: #{ours_vilt_trace_forward.1} parent=1 // pred_check
      _
    $region27: #{ours_vilt_trace_forward.1} parent=1 // pred_check_branch
      %80 = sbr.rel (0) target = $region29
    $region28: #{ours_vilt_trace_forward.1} parent=1 // pred_region
      _
    $region29: #{ours_vilt_trace_forward.1} parent=1 // pred_fallthru
      _
    // Predicated region
    $region30: #{ours_vilt_trace_forward.1} parent=1 // pred_check
      _
    $region31: #{ours_vilt_trace_forward.1} parent=1 // pred_check_branch
      %82 = sbr.rel (0) target = $region33
    $region32: #{ours_vilt_trace_forward.1} parent=1 // pred_region
      _
    $region33: #{ours_vilt_trace_forward.1} parent=1 // pred_fallthru
      _
    // Predicated region
    $region34: #{ours_vilt_trace_forward.1} parent=1 // pred_check
      _
    $region35: #{ours_vilt_trace_forward.1} parent=1 // pred_check_branch
      %84 = sbr.rel (0) target = $region37
    $region36: #{ours_vilt_trace_forward.1} parent=1 // pred_region
      _
    $region37: #{ours_vilt_trace_forward.1} parent=1 // pred_fallthru
      _
    // Predicated region
    $region38: #{ours_vilt_trace_forward.1} parent=1 // pred_check
      _
    $region39: #{ours_vilt_trace_forward.1} parent=1 // pred_check_branch
      %86 = sbr.rel (0) target = $region41
    $region40: #{ours_vilt_trace_forward.1} parent=1 // pred_region
      _
    $region41: #{ours_vilt_trace_forward.1} parent=1 // pred_fallthru
      _
    // Predicated region
    $region42: #{ours_vilt_trace_forward.1} parent=1 // pred_check
      _
    $region43: #{ours_vilt_trace_forward.1} parent=1 // pred_check_branch
      %88 = sbr.rel (0) target = $region45
    $region44: #{ours_vilt_trace_forward.1} parent=1 // pred_region
      _
    $region45: #{ours_vilt_trace_forward.1} parent=1 // pred_fallthru
      _
    // Predicated region
    $region46: #{ours_vilt_trace_forward.1} parent=1 // pred_check
      _
    $region47: #{ours_vilt_trace_forward.1} parent=1 // pred_check_branch
      %90 = sbr.rel (0) target = $region49
    $region48: #{ours_vilt_trace_forward.1} parent=1 // pred_region
      _
    $region49: #{ours_vilt_trace_forward.1} parent=1 // pred_fallthru
      _
    // Predicated region
    $region50: #{ours_vilt_trace_forward.1} parent=1 // pred_check
      _
    $region51: #{ours_vilt_trace_forward.1} parent=1 // pred_check_branch
      %92 = sbr.rel (0) target = $region53
    $region52: #{ours_vilt_trace_forward.1} parent=1 // pred_region
      _
    $region53: #{ours_vilt_trace_forward.1} parent=1 // pred_fallthru
      _
    // Predicated region
    $region54: #{ours_vilt_trace_forward.1} parent=1 // pred_check
      _
    $region55: #{ours_vilt_trace_forward.1} parent=1 // pred_check_branch
      %94 = sbr.rel (0) target = $region57
    $region56: #{ours_vilt_trace_forward.1} parent=1 // pred_region
      _
    $region57: #{ours_vilt_trace_forward.1} parent=1 // pred_fallthru
      _
    // Predicated region
    $region58: #{ours_vilt_trace_forward.1} parent=1 // pred_check
      _
    $region59: #{ours_vilt_trace_forward.1} parent=1 // pred_check_branch
      %96 = sbr.rel (0) target = $region61
    $region60: #{ours_vilt_trace_forward.1} parent=1 // pred_region
      _
    $region61: #{ours_vilt_trace_forward.1} parent=1 // pred_fallthru
      _
    // Predicated region
    $region62: #{ours_vilt_trace_forward.1} parent=1 // pred_check
      _
    $region63: #{ours_vilt_trace_forward.1} parent=1 // pred_check_branch
      %98 = sbr.rel (0) target = $region65
    $region64: #{ours_vilt_trace_forward.1} parent=1 // pred_region
      _
    $region65: #{ours_vilt_trace_forward.1} parent=1 // pred_fallthru
      _
    // Predicated region
    $region66: #{ours_vilt_trace_forward.1} parent=1 // pred_check
      _
    $region67: #{ours_vilt_trace_forward.1} parent=1 // pred_check_branch
      %100 = sbr.rel (0) target = $region69
    $region68: #{ours_vilt_trace_forward.1} parent=1 // pred_region
      _
    $region69: #{ours_vilt_trace_forward.1} parent=1 // pred_fallthru
      _
    // Predicated region
    $region70: #{ours_vilt_trace_forward.1} parent=1 // pred_check
      _
    $region71: #{ours_vilt_trace_forward.1} parent=1 // pred_check_branch
      %102 = sbr.rel (0) target = $region73
    $region72: #{ours_vilt_trace_forward.1} parent=1 // pred_region
      _
    $region73: #{ours_vilt_trace_forward.1} parent=1 // pred_fallthru
      _
    // Predicated region
    $region74: #{ours_vilt_trace_forward.1} parent=1 // pred_check
      _
    $region75: #{ours_vilt_trace_forward.1} parent=1 // pred_check_branch
      %104 = sbr.rel (0) target = $region77
    $region76: #{ours_vilt_trace_forward.1} parent=1 // pred_region
      _
    $region77: #{ours_vilt_trace_forward.1} parent=1 // pred_fallthru
      _
    // Predicated region
    $region78: #{ours_vilt_trace_forward.1} parent=1 // pred_check
      _
    $region79: #{ours_vilt_trace_forward.1} parent=1 // pred_check_branch
      %106 = sbr.rel (0) target = $region81
    $region80: #{ours_vilt_trace_forward.1} parent=1 // pred_region
      _
    $region81: #{ours_vilt_trace_forward.1} parent=1 // pred_fallthru
      _
    // Predicated region
    $region82: #{ours_vilt_trace_forward.1} parent=1 // pred_check
      _
    $region83: #{ours_vilt_trace_forward.1} parent=1 // pred_check_branch
      %108 = sbr.rel (0) target = $region85
    $region84: #{ours_vilt_trace_forward.1} parent=1 // pred_region
      _
    $region85: #{ours_vilt_trace_forward.1} parent=1 // pred_fallthru
      _
    // Predicated region
    $region86: #{ours_vilt_trace_forward.1} parent=1 // pred_check
      _
    $region87: #{ours_vilt_trace_forward.1} parent=1 // pred_check_branch
      %110 = sbr.rel (0) target = $region89
    $region88: #{ours_vilt_trace_forward.1} parent=1 // pred_region
      _
    $region89: #{ours_vilt_trace_forward.1} parent=1 // pred_fallthru
      _
    // Predicated region
    $region90: #{ours_vilt_trace_forward.1} parent=1 // pred_check
      _
    $region91: #{ours_vilt_trace_forward.1} parent=1 // pred_check_branch
      %112 = sbr.rel (0) target = $region93
    $region92: #{ours_vilt_trace_forward.1} parent=1 // pred_region
      _
    $region93: #{ours_vilt_trace_forward.1} parent=1 // pred_fallthru
      _
    // Predicated region
    $region94: #{ours_vilt_trace_forward.1} parent=1 // pred_check
      _
    $region95: #{ours_vilt_trace_forward.1} parent=1 // pred_check_branch
      %114 = sbr.rel (0) target = $region97
    $region96: #{ours_vilt_trace_forward.1} parent=1 // pred_region
      _
    $region97: #{ours_vilt_trace_forward.1} parent=1 // pred_fallthru
      _
    // Predicated region
    $region98: #{ours_vilt_trace_forward.1} parent=1 // pred_check
      _
    $region99: #{ours_vilt_trace_forward.1} parent=1 // pred_check_branch
      %116 = sbr.rel (0) target = $region101
    $region100: #{ours_vilt_trace_forward.1} parent=1 // pred_region
      _
    $region101: #{ours_vilt_trace_forward.1} parent=1 // pred_fallthru
      _
    // Predicated region
    $region102: #{ours_vilt_trace_forward.1} parent=1 // pred_check
      _
    $region103: #{ours_vilt_trace_forward.1} parent=1 // pred_check_branch
      %118 = sbr.rel (0) target = $region105
    $region104: #{ours_vilt_trace_forward.1} parent=1 // pred_region
      _
    $region105: #{ours_vilt_trace_forward.1} parent=1 // pred_fallthru
      _
    %v119 = vld [vmem:[%s3] sm:$0xff]
    %v120 = vld [vmem:[%s3 + $0x8] sm:$0xff]
    %vm121 = vcmask 7168
    %v122 = vsel %vm121, %v119, -inf
    %v123 = vrot.slane %v122, 4
    %v124 = vmax.f32 %v122, %v123
    %v125 = vrot.slane %v124, 2
    %v126 = vmax.f32 %v124, %v125
    %v127 = vrot.slane %v126, 1
    %v128 = vmax.f32 %v126, %v127
    %v129 = vsel %vm121, %v120, -inf
    %v130 = vrot.slane %v129, 4
    %v131 = vmax.f32 %v129, %v130
    %v132 = vrot.slane %v131, 2
    %v133 = vmax.f32 %v131, %v132
    %v134 = vrot.slane %v133, 1
    %v135 = vmax.f32 %v133, %v134
    %v136 = vsub.f32 %v119, %v128
    %v137 = vsub.f32 %v120, %v135
    %v138 = vmul.f32 %v136, 1.442695
    %v139 = vpow.pop %v138
    %v140 = vmul.f32 %v137, 1.442695
    %v141 = vpow.pop %v140
    %v142 = vsel %vm121, %v139, 0.0
    %v143 = vrot.slane %v142, 4
    %v144 = vadd.f32 %v142, %v143
    %v145 = vrot.slane %v144, 2
    %v146 = vadd.f32 %v144, %v145
    %v147 = vrot.slane %v146, 1
    %v148 = vadd.f32 %v146, %v147
    %v149 = vsel %vm121, %v141, 0.0
    %v150 = vrot.slane %v149, 4
    %v151 = vadd.f32 %v149, %v150
    %v152 = vrot.slane %v151, 2
    %v153 = vadd.f32 %v151, %v152
    %v154 = vrot.slane %v153, 1
    %v155 = vadd.f32 %v153, %v154
    %v156 = vrcp.pop %v148
    %v157 = vmul.f32 %v139, %v156
    %v158 = vrcp.pop %v155
    %v159 = vmul.f32 %v141, %v158
    %v160 = vld [vmem:[%s1] sm:$0xff]
    %v161 = vld [vmem:[%s1 + $0x8] sm:$0xff]
    %v162 = vadd.f32 %v157, 1.0
    %v163 = vadd.f32 %v159, 1.0
    %165 = vset.pattern.permute.xlu0 0
    %166 = vperm.xlu0 %165, %v162
    %v167 = vpop.permute.xlu0 %166
    %170 = vset.pattern.permute.xlu0 0
    %171 = vperm.xlu0 %170, %v163
    %v172 = vpop.permute.xlu0 %171
    %v174 = vmul.f32 %v160, %v167
    %v175 = vmul.f32 %v161, %v172
    %v176 = vld [vmem:[%s9] sm:$0x1]
    %v177 = vld [vmem:[%s11] sm:$0x1]
    %178 = vadd.xlane.f32.xlu0 %v174
    %v179 = vpop.xlane.xlu0 %178
    %180 = vadd.xlane.f32.xlu0 %v175
    %v181 = vpop.xlane.xlu0 %180
    %v182 = vrcp.pop 128.0
    %v183 = vmul.f32 %v179, %v182
    %v184 = vmul.f32 %v181, %v182
    %v185 = vsub.f32 %v174, %v183
    %v186 = vsub.f32 %v175, %v184
    %v187 = vmul.f32 %v185, %v185
    %v188 = vmul.f32 %v186, %v186
    %189 = vadd.xlane.f32.xlu0 %v187
    %v190 = vpop.xlane.xlu0 %189
    %191 = vadd.xlane.f32.xlu0 %v188
    %v192 = vpop.xlane.xlu0 %191
    %v193 = vmul.f32 %v190, %v182
    %v194 = vmul.f32 %v192, %v182
    %v195 = vadd.f32 %v193, 1e-05
    %v196 = vadd.f32 %v194, 1e-05
    %v197 = vrsqrt.pop %v195
    %v198 = vrsqrt.pop %v196
    %v199 = vmul.f32 %v185, %v197
    %v200 = vmul.f32 %v186, %v198
    %v202 = vlaneseq
    %v203 = vshrl.u32 %v202, 7
    %v204 = vsub.s32 0, %v203
    %v205 = vrot.slane %v176, %v204
    %v207 = vmul.f32 %v199, %v205
    %v208 = vmul.f32 %v200, %v205
    %v210 = vlaneseq
    %v211 = vshrl.u32 %v210, 7
    %v212 = vsub.s32 0, %v211
    %v213 = vrot.slane %v177, %v212
    %v215 = vadd.f32 %v207, %v213
    %v216 = vadd.f32 %v208, %v213
    %v217 = vld [vmem:[%s13] sm:$0xff]
    %v218 = vld [vmem:[%s13 + $0x8] sm:$0xff]
    %v219 = vld [vmem:[%s13 + $0x10] sm:$0xff]
    %v220 = vld [vmem:[%s13 + $0x18] sm:$0xff]
    %v221 = vld [vmem:[%s13 + $0x20] sm:$0xff]
    %v222 = vld [vmem:[%s13 + $0x28] sm:$0xff]
    %v223 = vld [vmem:[%s13 + $0x30] sm:$0xff]
    %v224 = vld [vmem:[%s13 + $0x38] sm:$0xff]
    %v225 = vld [vmem:[%s13 + $0x40] sm:$0xff]
    %v226 = vld [vmem:[%s13 + $0x48] sm:$0xff]
    %v227 = vld [vmem:[%s13 + $0x50] sm:$0xff]
    %v228 = vld [vmem:[%s13 + $0x58] sm:$0xff]
    %v229 = vld [vmem:[%s13 + $0x60] sm:$0xff]
    %v230 = vld [vmem:[%s13 + $0x68] sm:$0xff]
    %v231 = vld [vmem:[%s13 + $0x70] sm:$0xff]
    %v232 = vld [vmem:[%s13 + $0x78] sm:$0xff]
    %v233 = vld [vmem:[%s15] sm:$0x1]
    %v235 = vlaneseq
    %v236 = vshrl.u32 %v235, 7
    %v237 = vsub.s32 0, %v236
    %v238 = vrot.slane %v233, %v237
    %240 = vmatprep.subr.mxu0 0.0
    %241 = vmatpush1.msra.mxu0 %v217
    %242 = vmatprep.subr.mxu0 0.0
    %243 = vmatpush1.msra.mxu0 %v218
    %244 = vmatprep.subr.mxu0 0.0
    %245 = vmatpush1.msra.mxu0 %v219
    %246 = vmatprep.subr.mxu0 0.0
    %247 = vmatpush1.msra.mxu0 %v220
    %248 = vmatprep.subr.mxu0 0.0
    %249 = vmatpush1.msra.mxu0 %v221
    %250 = vmatprep.subr.mxu0 0.0
    %251 = vmatpush1.msra.mxu0 %v222
    %252 = vmatprep.subr.mxu0 0.0
    %253 = vmatpush1.msra.mxu0 %v223
    %254 = vmatprep.subr.mxu0 0.0
    %255 = vmatpush1.msra.mxu0 %v224
    %256 = vmatprep.subr.mxu0 0.0
    %257 = vmatpush1.msra.mxu0 %v225
    %258 = vmatprep.subr.mxu0 0.0
    %259 = vmatpush1.msra.mxu0 %v226
    %260 = vmatprep.subr.mxu0 0.0
    %261 = vmatpush1.msra.mxu0 %v227
    %262 = vmatprep.subr.mxu0 0.0
    %263 = vmatpush1.msra.mxu0 %v228
    %264 = vmatprep.subr.mxu0 0.0
    %265 = vmatpush1.msra.mxu0 %v229
    %266 = vmatprep.subr.mxu0 0.0
    %267 = vmatpush1.msra.mxu0 %v230
    %268 = vmatprep.subr.mxu0 0.0
    %269 = vmatpush1.msra.mxu0 %v231
    %270 = vmatprep.subr.mxu0 0.0
    %271 = vmatpush1.msra.mxu0 %v232
    %272 = vmatprep.subr.mxu0 0.0
    %273 = vmatpush1.msra.mxu0 0.0
    %274 = vmatprep.subr.mxu0 0.0
    %275 = vmatpush1.msra.mxu0 0.0
    %276 = vmatprep.subr.mxu0 0.0
    %277 = vmatpush1.msra.mxu0 0.0
    %278 = vmatprep.subr.mxu0 0.0
    %279 = vmatpush1.msra.mxu0 0.0
    %280 = vmatprep.subr.mxu0 0.0
    %281 = vmatpush1.msra.mxu0 0.0
    %282 = vmatprep.subr.mxu0 0.0
    %283 = vmatpush1.msra.mxu0 0.0
    %284 = vmatprep.subr.mxu0 0.0
    %285 = vmatpush1.msra.mxu0 0.0
    %286 = vmatprep.subr.mxu0 0.0
    %287 = vmatpush1.msra.mxu0 0.0
    %288 = vmatprep.subr.mxu0 0.0
    %289 = vmatpush1.msra.mxu0 0.0
    %290 = vmatprep.subr.mxu0 0.0
    %291 = vmatpush1.msra.mxu0 0.0
    %292 = vmatprep.subr.mxu0 0.0
    %293 = vmatpush1.msra.mxu0 0.0
    %294 = vmatprep.subr.mxu0 0.0
    %295 = vmatpush1.msra.mxu0 0.0
    %296 = vmatprep.subr.mxu0 0.0
    %297 = vmatpush1.msra.mxu0 0.0
    %298 = vmatprep.subr.mxu0 0.0
    %299 = vmatpush1.msra.mxu0 0.0
    %300 = vmatprep.subr.mxu0 0.0
    %301 = vmatpush1.msra.mxu0 0.0
    %302 = vmatprep.subr.mxu0 0.0
    %303 = vmatpush1.msra.mxu0 0.0
    %304 = vmatprep.mubr.f32.mxu0 0.0
    %305 = vmatmul.mubr.f32.gmra.mrb[0].mxu0 %v215
    %v306 = vpop.f32.mrb[0].mxu0
    %v307 = vadd.f32 %v238, %v306
    %v308 = vpop.f32.mrb[0].mxu0
    %309 = vmatprep.mubr.f32.mxu0 0.0
    %310 = vmatmul.mubr.f32.gmra.mrb[0].mxu0 %v216
    %v311 = vpop.f32.mrb[0].mxu0
    %v312 = vadd.f32 %v238, %v311
    %v313 = vpop.f32.mrb[0].mxu0
    %314 = vdwg.mxu0
    %v315 = vld [vmem:[%s17] sm:$0x1]
    %v316 = vld [vmem:[%s19] sm:$0x1]
    %317 = vadd.xlane.f32.xlu0 %v307
    %v318 = vpop.xlane.xlu0 %317
    %319 = vadd.xlane.f32.xlu0 %v312
    %v320 = vpop.xlane.xlu0 %319
    %v321 = vmul.f32 %v318, %v182
    %v322 = vmul.f32 %v320, %v182
    %v323 = vsub.f32 %v307, %v321
    %v324 = vsub.f32 %v312, %v322
    %v325 = vmul.f32 %v323, %v323
    %v326 = vmul.f32 %v324, %v324
    %327 = vadd.xlane.f32.xlu0 %v325
    %v328 = vpop.xlane.xlu0 %327
    %329 = vadd.xlane.f32.xlu0 %v326
    %v330 = vpop.xlane.xlu0 %329
    %v331 = vmul.f32 %v328, %v182
    %v332 = vmul.f32 %v330, %v182
    %v333 = vadd.f32 %v331, 1e-05
    %v334 = vadd.f32 %v332, 1e-05
    %v335 = vrsqrt.pop %v333
    %v336 = vrsqrt.pop %v334
    %v337 = vmul.f32 %v323, %v335
    %v338 = vmul.f32 %v324, %v336
    %v340 = vlaneseq
    %v341 = vshrl.u32 %v340, 7
    %v342 = vsub.s32 0, %v341
    %v343 = vrot.slane %v315, %v342
    %v345 = vmul.f32 %v337, %v343
    %v346 = vmul.f32 %v338, %v343
    %v348 = vlaneseq
    %v349 = vshrl.u32 %v348, 7
    %v350 = vsub.s32 0, %v349
    %v351 = vrot.slane %v316, %v350
    %v353 = vadd.f32 %v345, %v351
    %v354 = vadd.f32 %v346, %v351
    %v355 = vld [vmem:[%s5] sm:$0x3]
    %v357 = vunpack.c.l.s4 1966171168
    %v358 = vunpack.c.0.s8 %v357
    %v359 = vlaneseq
    %v360 = vshrl.u32 %v359, 7
    %v361 = vsub.s32 %v358, %v360
    %v362 = vrot.slane %v355, %v361
    %v363 = vcombine.high %v362, %v362
    %v365 = vunpack.c.l.s4 1966171168
    %v366 = vunpack.c.0.s8 %v365
    %v367 = vlaneseq
    %v368 = vshrl.u32 %v367, 7
    %v369 = vsub.s32 %v366, %v368
    %v370 = vrot.slane %v362, %v369
    %v372 = vunpack.c.l.s4 1966171168
    %v373 = vunpack.c.0.s8 %v372
    %v374 = vlaneseq
    %v375 = vshrl.u32 %v374, 7
    %v376 = vsub.s32 %v373, %v375
    %v377 = vrot.slane %v363, %v376
    %v378 = vlaneseq
    %v379 = vshrl.u32 %v378, 7
    %v380 = vlaneseq
    %v381 = vshrl.u32 %v380, 7
    %v382 = vsub.s32 0, %v381
    %v383 = vrot.slane %v370, %v382
    %v384 = vlaneseq
    %v385 = vshrl.u32 %v384, 7
    %v386 = vsub.s32 0, %v385
    %v387 = vrot.slane %v377, %v386
    %vm388 = vcmp.lt.s32.totalorder %v379, %v383
    %vm389 = vcmp.lt.s32.totalorder %v379, %v387
    %v390 = vld [vmem:[%s21] sm:$0xff]
    %v391 = vld [vmem:[%s21 + $0x8] sm:$0xff]
    %v392 = vld [vmem:[%s21 + $0x10] sm:$0xff]
    %v393 = vld [vmem:[%s21 + $0x18] sm:$0xff]
    %v394 = vld [vmem:[%s21 + $0x20] sm:$0xff]
    %v395 = vld [vmem:[%s21 + $0x28] sm:$0xff]
    %v396 = vld [vmem:[%s21 + $0x30] sm:$0xff]
    %v397 = vld [vmem:[%s21 + $0x38] sm:$0xff]
    %v398 = vld [vmem:[%s21 + $0x40] sm:$0xff]
    %v399 = vld [vmem:[%s21 + $0x48] sm:$0xff]
    %v400 = vld [vmem:[%s21 + $0x50] sm:$0xff]
    %v401 = vld [vmem:[%s21 + $0x58] sm:$0xff]
    %v402 = vld [vmem:[%s21 + $0x60] sm:$0xff]
    %v403 = vld [vmem:[%s21 + $0x68] sm:$0xff]
    %v404 = vld [vmem:[%s21 + $0x70] sm:$0xff]
    %v405 = vld [vmem:[%s21 + $0x78] sm:$0xff]
    %v406 = vld [vmem:[%s21 + $0x80] sm:$0xff]
    %v407 = vld [vmem:[%s21 + $0x88] sm:$0xff]
    %v408 = vld [vmem:[%s21 + $0x90] sm:$0xff]
    %v409 = vld [vmem:[%s21 + $0x98] sm:$0xff]
    %v410 = vld [vmem:[%s21 + $0xa0] sm:$0xff]
    %v411 = vld [vmem:[%s21 + $0xa8] sm:$0xff]
    %v412 = vld [vmem:[%s21 + $0xb0] sm:$0xff]
    %v413 = vld [vmem:[%s21 + $0xb8] sm:$0xff]
    %v414 = vld [vmem:[%s21 + $0xc0] sm:$0xff]
    %v415 = vld [vmem:[%s21 + $0xc8] sm:$0xff]
    %v416 = vld [vmem:[%s21 + $0xd0] sm:$0xff]
    %v417 = vld [vmem:[%s21 + $0xd8] sm:$0xff]
    %v418 = vld [vmem:[%s21 + $0xe0] sm:$0xff]
    %v419 = vld [vmem:[%s21 + $0xe8] sm:$0xff]
    %v420 = vld [vmem:[%s21 + $0xf0] sm:$0xff]
    %v421 = vld [vmem:[%s21 + $0xf8] sm:$0xff]
    %v422 = vld [vmem:[%s21 + $0x100] sm:$0xff]
    %v423 = vld [vmem:[%s21 + $0x108] sm:$0xff]
    %v424 = vld [vmem:[%s21 + $0x110] sm:$0xff]
    %v425 = vld [vmem:[%s21 + $0x118] sm:$0xff]
    %v426 = vld [vmem:[%s21 + $0x120] sm:$0xff]
    %v427 = vld [vmem:[%s21 + $0x128] sm:$0xff]
    %v428 = vld [vmem:[%s21 + $0x130] sm:$0xff]
    %v429 = vld [vmem:[%s21 + $0x138] sm:$0xff]
    %v430 = vld [vmem:[%s21 + $0x140] sm:$0xff]
    %v431 = vld [vmem:[%s21 + $0x148] sm:$0xff]
    %v432 = vld [vmem:[%s21 + $0x150] sm:$0xff]
    %v433 = vld [vmem:[%s21 + $0x158] sm:$0xff]
    %v434 = vld [vmem:[%s21 + $0x160] sm:$0xff]
    %v435 = vld [vmem:[%s21 + $0x168] sm:$0xff]
    %v436 = vld [vmem:[%s21 + $0x170] sm:$0xff]
    %v437 = vld [vmem:[%s21 + $0x178] sm:$0xff]
    %v438 = vld [vmem:[%s21 + $0x180] sm:$0xff]
    %v439 = vld [vmem:[%s21 + $0x188] sm:$0xff]
    %v440 = vld [vmem:[%s21 + $0x190] sm:$0xff]
    %v441 = vld [vmem:[%s21 + $0x198] sm:$0xff]
    %v442 = vld [vmem:[%s21 + $0x1a0] sm:$0xff]
    %v443 = vld [vmem:[%s21 + $0x1a8] sm:$0xff]
    %v444 = vld [vmem:[%s21 + $0x1b0] sm:$0xff]
    %v445 = vld [vmem:[%s21 + $0x1b8] sm:$0xff]
    %v446 = vld [vmem:[%s21 + $0x1c0] sm:$0xff]
    %v447 = vld [vmem:[%s21 + $0x1c8] sm:$0xff]
    %v448 = vld [vmem:[%s21 + $0x1d0] sm:$0xff]
    %v449 = vld [vmem:[%s21 + $0x1d8] sm:$0xff]
    %v450 = vld [vmem:[%s21 + $0x1e0] sm:$0xff]
    %v451 = vld [vmem:[%s21 + $0x1e8] sm:$0xff]
    %v452 = vld [vmem:[%s21 + $0x1f0] sm:$0xff]
    %v453 = vld [vmem:[%s21 + $0x1f8] sm:$0xff]
    %v454 = vld [vmem:[%s21 + $0x200] sm:$0xff]
    %v455 = vld [vmem:[%s21 + $0x208] sm:$0xff]
    %v456 = vld [vmem:[%s21 + $0x210] sm:$0xff]
    %v457 = vld [vmem:[%s21 + $0x218] sm:$0xff]
    %v458 = vld [vmem:[%s21 + $0x220] sm:$0xff]
    %v459 = vld [vmem:[%s21 + $0x228] sm:$0xff]
    %v460 = vld [vmem:[%s21 + $0x230] sm:$0xff]
    %v461 = vld [vmem:[%s21 + $0x238] sm:$0xff]
    %v462 = vld [vmem:[%s21 + $0x240] sm:$0xff]
    %v463 = vld [vmem:[%s21 + $0x248] sm:$0xff]
    %v464 = vld [vmem:[%s21 + $0x250] sm:$0xff]
    %v465 = vld [vmem:[%s21 + $0x258] sm:$0xff]
    %v466 = vld [vmem:[%s21 + $0x260] sm:$0xff]
    %v467 = vld [vmem:[%s21 + $0x268] sm:$0xff]
    %v468 = vld [vmem:[%s21 + $0x270] sm:$0xff]
    %v469 = vld [vmem:[%s21 + $0x278] sm:$0xff]
    %v470 = vld [vmem:[%s21 + $0x280] sm:$0xff]
    %v471 = vld [vmem:[%s21 + $0x288] sm:$0xff]
    %v472 = vld [vmem:[%s21 + $0x290] sm:$0xff]
    %v473 = vld [vmem:[%s21 + $0x298] sm:$0xff]
    %v474 = vld [vmem:[%s21 + $0x2a0] sm:$0xff]
    %v475 = vld [vmem:[%s21 + $0x2a8] sm:$0xff]
    %v476 = vld [vmem:[%s21 + $0x2b0] sm:$0xff]
    %v477 = vld [vmem:[%s21 + $0x2b8] sm:$0xff]
    %v478 = vld [vmem:[%s21 + $0x2c0] sm:$0xff]
    %v479 = vld [vmem:[%s21 + $0x2c8] sm:$0xff]
    %v480 = vld [vmem:[%s21 + $0x2d0] sm:$0xff]
    %v481 = vld [vmem:[%s21 + $0x2d8] sm:$0xff]
    %v482 = vld [vmem:[%s21 + $0x2e0] sm:$0xff]
    %v483 = vld [vmem:[%s21 + $0x2e8] sm:$0xff]
    %v484 = vld [vmem:[%s21 + $0x2f0] sm:$0xff]
    %v485 = vld [vmem:[%s21 + $0x2f8] sm:$0xff]
    %v486 = vld [vmem:[%s23] sm:$0x3f]
    %v488 = vlaneseq
    %v489 = vshrl.u32 %v488, 7
    %v490 = vsub.s32 0, %v489
    %v491 = vrot.slane %v486, %v490
    %v492 = vlaneseq
    %v493 = vshrl.u32 %v492, 7
    %v494 = vsub.s32 1, %v493
    %v495 = vrot.slane %v486, %v494
    %v496 = vlaneseq
    %v497 = vshrl.u32 %v496, 7
    %v498 = vsub.s32 2, %v497
    %v499 = vrot.slane %v486, %v498
    %v500 = vlaneseq
    %v501 = vshrl.u32 %v500, 7
    %v502 = vsub.s32 3, %v501
    %v503 = vrot.slane %v486, %v502
    %v504 = vlaneseq
    %v505 = vshrl.u32 %v504, 7
    %v506 = vsub.s32 4, %v505
    %v507 = vrot.slane %v486, %v506
    %v508 = vlaneseq
    %v509 = vshrl.u32 %v508, 7
    %v510 = vsub.s32 5, %v509
    %v511 = vrot.slane %v486, %v510
    %518 = vmatprep.subr.mxu0 %v391
    %519 = vmatpush1.msra.mxu0 %v390
    %520 = vmatprep.subr.mxu0 %v397
    %521 = vmatpush1.msra.mxu0 %v396
    %522 = vmatprep.subr.mxu0 %v403
    %523 = vmatpush1.msra.mxu0 %v402
    %524 = vmatprep.subr.mxu0 %v409
    %525 = vmatpush1.msra.mxu0 %v408
    %526 = vmatprep.subr.mxu0 %v415
    %527 = vmatpush1.msra.mxu0 %v414
    %528 = vmatprep.subr.mxu0 %v421
    %529 = vmatpush1.msra.mxu0 %v420
    %530 = vmatprep.subr.mxu0 %v427
    %531 = vmatpush1.msra.mxu0 %v426
    %532 = vmatprep.subr.mxu0 %v433
    %533 = vmatpush1.msra.mxu0 %v432
    %534 = vmatprep.subr.mxu0 %v439
    %535 = vmatpush1.msra.mxu0 %v438
    %536 = vmatprep.subr.mxu0 %v445
    %537 = vmatpush1.msra.mxu0 %v444
    %538 = vmatprep.subr.mxu0 %v451
    %539 = vmatpush1.msra.mxu0 %v450
    %540 = vmatprep.subr.mxu0 %v457
    %541 = vmatpush1.msra.mxu0 %v456
    %542 = vmatprep.subr.mxu0 %v463
    %543 = vmatpush1.msra.mxu0 %v462
    %544 = vmatprep.subr.mxu0 %v469
    %545 = vmatpush1.msra.mxu0 %v468
    %546 = vmatprep.subr.mxu0 %v475
    %547 = vmatpush1.msra.mxu0 %v474
    %548 = vmatprep.subr.mxu0 %v481
    %549 = vmatpush1.msra.mxu0 %v480
    %550 = vmatprep.subr.mxu0 0.0
    %551 = vmatpush1.msra.mxu0 0.0
    %552 = vmatprep.subr.mxu0 0.0
    %553 = vmatpush1.msra.mxu0 0.0
    %554 = vmatprep.subr.mxu0 0.0
    %555 = vmatpush1.msra.mxu0 0.0
    %556 = vmatprep.subr.mxu0 0.0
    %557 = vmatpush1.msra.mxu0 0.0
    %558 = vmatprep.subr.mxu0 0.0
    %559 = vmatpush1.msra.mxu0 0.0
    %560 = vmatprep.subr.mxu0 0.0
    %561 = vmatpush1.msra.mxu0 0.0
    %562 = vmatprep.subr.mxu0 0.0
    %563 = vmatpush1.msra.mxu0 0.0
    %564 = vmatprep.subr.mxu0 0.0
    %565 = vmatpush1.msra.mxu0 0.0
    %566 = vmatprep.subr.mxu0 0.0
    %567 = vmatpush1.msra.mxu0 0.0
    %568 = vmatprep.subr.mxu0 0.0
    %569 = vmatpush1.msra.mxu0 0.0
    %570 = vmatprep.subr.mxu0 0.0
    %571 = vmatpush1.msra.mxu0 0.0
    %572 = vmatprep.subr.mxu0 0.0
    %573 = vmatpush1.msra.mxu0 0.0
    %574 = vmatprep.subr.mxu0 0.0
    %575 = vmatpush1.msra.mxu0 0.0
    %576 = vmatprep.subr.mxu0 0.0
    %577 = vmatpush1.msra.mxu0 0.0
    %578 = vmatprep.subr.mxu0 0.0
    %579 = vmatpush1.msra.mxu0 0.0
    %580 = vmatprep.subr.mxu0 0.0
    %581 = vmatpush1.msra.mxu0 0.0
    %582 = vmatprep.mubr.f32.mxu0 0.0
    %583 = vmatmul.mubr.f32.gmra.mrb[0].mxu0 %v353
    %v584 = vpop.f32.mrb[0].mxu0
    %v585 = vadd.f32 %v491, %v584
    %v586 = vpop.f32.mrb[0].mxu0
    %v587 = vadd.f32 %v495, %v586
    %588 = vmatprep.mubr.f32.mxu0 0.0
    %589 = vmatmul.mubr.f32.gmra.mrb[0].mxu0 %v354
    %v590 = vpop.f32.mrb[0].mxu0
    %v591 = vadd.f32 %v491, %v590
    %v592 = vpop.f32.mrb[0].mxu0
    %v593 = vadd.f32 %v495, %v592
    %594 = vdwg.mxu0
    %595 = vmatprep.subr.mxu0 %v393
    %596 = vmatpush1.msra.mxu0 %v392
    %597 = vmatprep.subr.mxu0 %v399
    %598 = vmatpush1.msra.mxu0 %v398
    %599 = vmatprep.subr.mxu0 %v405
    %600 = vmatpush1.msra.mxu0 %v404
    %601 = vmatprep.subr.mxu0 %v411
    %602 = vmatpush1.msra.mxu0 %v410
    %603 = vmatprep.subr.mxu0 %v417
    %604 = vmatpush1.msra.mxu0 %v416
    %605 = vmatprep.subr.mxu0 %v423
    %606 = vmatpush1.msra.mxu0 %v422
    %607 = vmatprep.subr.mxu0 %v429
    %608 = vmatpush1.msra.mxu0 %v428
    %609 = vmatprep.subr.mxu0 %v435
    %610 = vmatpush1.msra.mxu0 %v434
    %611 = vmatprep.subr.mxu0 %v441
    %612 = vmatpush1.msra.mxu0 %v440
    %613 = vmatprep.subr.mxu0 %v447
    %614 = vmatpush1.msra.mxu0 %v446
    %615 = vmatprep.subr.mxu0 %v453
    %616 = vmatpush1.msra.mxu0 %v452
    %617 = vmatprep.subr.mxu0 %v459
    %618 = vmatpush1.msra.mxu0 %v458
    %619 = vmatprep.subr.mxu0 %v465
    %620 = vmatpush1.msra.mxu0 %v464
    %621 = vmatprep.subr.mxu0 %v471
    %622 = vmatpush1.msra.mxu0 %v470
    %623 = vmatprep.subr.mxu0 %v477
    %624 = vmatpush1.msra.mxu0 %v476
    %625 = vmatprep.subr.mxu0 %v483
    %626 = vmatpush1.msra.mxu0 %v482
    %627 = vmatprep.subr.mxu0 0.0
    %628 = vmatpush1.msra.mxu0 0.0
    %629 = vmatprep.subr.mxu0 0.0
    %630 = vmatpush1.msra.mxu0 0.0
    %631 = vmatprep.subr.mxu0 0.0
    %632 = vmatpush1.msra.mxu0 0.0
    %633 = vmatprep.subr.mxu0 0.0
    %634 = vmatpush1.msra.mxu0 0.0
    %635 = vmatprep.subr.mxu0 0.0
    %636 = vmatpush1.msra.mxu0 0.0
    %637 = vmatprep.subr.mxu0 0.0
    %638 = vmatpush1.msra.mxu0 0.0
    %639 = vmatprep.subr.mxu0 0.0
    %640 = vmatpush1.msra.mxu0 0.0
    %641 = vmatprep.subr.mxu0 0.0
    %642 = vmatpush1.msra.mxu0 0.0
    %643 = vmatprep.subr.mxu0 0.0
    %644 = vmatpush1.msra.mxu0 0.0
    %645 = vmatprep.subr.mxu0 0.0
    %646 = vmatpush1.msra.mxu0 0.0
    %647 = vmatprep.subr.mxu0 0.0
    %648 = vmatpush1.msra.mxu0 0.0
    %649 = vmatprep.subr.mxu0 0.0
    %650 = vmatpush1.msra.mxu0 0.0
    %651 = vmatprep.subr.mxu0 0.0
    %652 = vmatpush1.msra.mxu0 0.0
    %653 = vmatprep.subr.mxu0 0.0
    %654 = vmatpush1.msra.mxu0 0.0
    %655 = vmatprep.subr.mxu0 0.0
    %656 = vmatpush1.msra.mxu0 0.0
    %657 = vmatprep.subr.mxu0 0.0
    %658 = vmatpush1.msra.mxu0 0.0
    %659 = vmatprep.mubr.f32.mxu0 0.0
    %660 = vmatmul.mubr.f32.gmra.mrb[0].mxu0 %v353
    %v661 = vpop.f32.mrb[0].mxu0
    %v662 = vadd.f32 %v499, %v661
    %v663 = vpop.f32.mrb[0].mxu0
    %v664 = vadd.f32 %v503, %v663
    %665 = vmatprep.mubr.f32.mxu0 0.0
    %666 = vmatmul.mubr.f32.gmra.mrb[0].mxu0 %v354
    %v667 = vpop.f32.mrb[0].mxu0
    %v668 = vadd.f32 %v499, %v667
    %v669 = vpop.f32.mrb[0].mxu0
    %v670 = vadd.f32 %v503, %v669
    %671 = vdwg.mxu0
    %672 = vmatprep.subr.mxu0 %v395
    %673 = vmatpush1.msra.mxu0 %v394
    %674 = vmatprep.subr.mxu0 %v401
    %675 = vmatpush1.msra.mxu0 %v400
    %676 = vmatprep.subr.mxu0 %v407
    %677 = vmatpush1.msra.mxu0 %v406
    %678 = vmatprep.subr.mxu0 %v413
    %679 = vmatpush1.msra.mxu0 %v412
    %680 = vmatprep.subr.mxu0 %v419
    %681 = vmatpush1.msra.mxu0 %v418
    %682 = vmatprep.subr.mxu0 %v425
    %683 = vmatpush1.msra.mxu0 %v424
    %684 = vmatprep.subr.mxu0 %v431
    %685 = vmatpush1.msra.mxu0 %v430
    %686 = vmatprep.subr.mxu0 %v437
    %687 = vmatpush1.msra.mxu0 %v436
    %688 = vmatprep.subr.mxu0 %v443
    %689 = vmatpush1.msra.mxu0 %v442
    %690 = vmatprep.subr.mxu0 %v449
    %691 = vmatpush1.msra.mxu0 %v448
    %692 = vmatprep.subr.mxu0 %v455
    %693 = vmatpush1.msra.mxu0 %v454
    %694 = vmatprep.subr.mxu0 %v461
    %695 = vmatpush1.msra.mxu0 %v460
    %696 = vmatprep.subr.mxu0 %v467
    %697 = vmatpush1.msra.mxu0 %v466
    %698 = vmatprep.subr.mxu0 %v473
    %699 = vmatpush1.msra.mxu0 %v472
    %700 = vmatprep.subr.mxu0 %v479
    %701 = vmatpush1.msra.mxu0 %v478
    %702 = vmatprep.subr.mxu0 %v485
    %703 = vmatpush1.msra.mxu0 %v484
    %704 = vmatprep.subr.mxu0 0.0
    %705 = vmatpush1.msra.mxu0 0.0
    %706 = vmatprep.subr.mxu0 0.0
    %707 = vmatpush1.msra.mxu0 0.0
    %708 = vmatprep.subr.mxu0 0.0
    %709 = vmatpush1.msra.mxu0 0.0
    %710 = vmatprep.subr.mxu0 0.0
    %711 = vmatpush1.msra.mxu0 0.0
    %712 = vmatprep.subr.mxu0 0.0
    %713 = vmatpush1.msra.mxu0 0.0
    %714 = vmatprep.subr.mxu0 0.0
    %715 = vmatpush1.msra.mxu0 0.0
    %716 = vmatprep.subr.mxu0 0.0
    %717 = vmatpush1.msra.mxu0 0.0
    %718 = vmatprep.subr.mxu0 0.0
    %719 = vmatpush1.msra.mxu0 0.0
    %720 = vmatprep.subr.mxu0 0.0
    %721 = vmatpush1.msra.mxu0 0.0
    %722 = vmatprep.subr.mxu0 0.0
    %723 = vmatpush1.msra.mxu0 0.0
    %724 = vmatprep.subr.mxu0 0.0
    %725 = vmatpush1.msra.mxu0 0.0
    %726 = vmatprep.subr.mxu0 0.0
    %727 = vmatpush1.msra.mxu0 0.0
    %728 = vmatprep.subr.mxu0 0.0
    %729 = vmatpush1.msra.mxu0 0.0
    %730 = vmatprep.subr.mxu0 0.0
    %731 = vmatpush1.msra.mxu0 0.0
    %732 = vmatprep.subr.mxu0 0.0
    %733 = vmatpush1.msra.mxu0 0.0
    %734 = vmatprep.subr.mxu0 0.0
    %735 = vmatpush1.msra.mxu0 0.0
    %736 = vmatprep.mubr.f32.mxu0 0.0
    %737 = vmatmul.mubr.f32.gmra.mrb[0].mxu0 %v353
    %v738 = vpop.f32.mrb[0].mxu0
    %v739 = vadd.f32 %v507, %v738
    %v740 = vpop.f32.mrb[0].mxu0
    %v741 = vadd.f32 %v511, %v740
    %742 = vmatprep.mubr.f32.mxu0 0.0
    %743 = vmatmul.mubr.f32.gmra.mrb[0].mxu0 %v354
    %v744 = vpop.f32.mrb[0].mxu0
    %v745 = vadd.f32 %v507, %v744
    %v746 = vpop.f32.mrb[0].mxu0
    %v747 = vadd.f32 %v511, %v746
    %748 = vdwg.mxu0
    %v749 = vld [vmem:[%s25] sm:$0xff]
    %v750 = vld [vmem:[%s25 + $0x8] sm:$0xff]
    %v751 = vld [vmem:[%s25 + $0x10] sm:$0xff]
    %v752 = vld [vmem:[%s25 + $0x18] sm:$0xff]
    %v753 = vld [vmem:[%s25 + $0x20] sm:$0xff]
    %v754 = vld [vmem:[%s25 + $0x28] sm:$0xff]
    %v755 = vld [vmem:[%s25 + $0x30] sm:$0xff]
    %v756 = vld [vmem:[%s25 + $0x38] sm:$0xff]
    %v757 = vld [vmem:[%s25 + $0x40] sm:$0xff]
    %v758 = vld [vmem:[%s25 + $0x48] sm:$0xff]
    %v759 = vld [vmem:[%s25 + $0x50] sm:$0xff]
    %v760 = vld [vmem:[%s25 + $0x58] sm:$0xff]
    %v761 = vld [vmem:[%s25 + $0x60] sm:$0xff]
    %v762 = vld [vmem:[%s25 + $0x68] sm:$0xff]
    %v763 = vld [vmem:[%s25 + $0x70] sm:$0xff]
    %v764 = vld [vmem:[%s25 + $0x78] sm:$0xff]
    %v765 = vld [vmem:[%s25 + $0x80] sm:$0xff]
    %v766 = vld [vmem:[%s25 + $0x88] sm:$0xff]
    %v767 = vld [vmem:[%s25 + $0x90] sm:$0xff]
    %v768 = vld [vmem:[%s25 + $0x98] sm:$0xff]
    %v769 = vld [vmem:[%s25 + $0xa0] sm:$0xff]
    %v770 = vld [vmem:[%s25 + $0xa8] sm:$0xff]
    %v771 = vld [vmem:[%s25 + $0xb0] sm:$0xff]
    %v772 = vld [vmem:[%s25 + $0xb8] sm:$0xff]
    %v773 = vld [vmem:[%s25 + $0xc0] sm:$0xff]
    %v774 = vld [vmem:[%s25 + $0xc8] sm:$0xff]
    %v775 = vld [vmem:[%s25 + $0xd0] sm:$0xff]
    %v776 = vld [vmem:[%s25 + $0xd8] sm:$0xff]
    %v777 = vld [vmem:[%s25 + $0xe0] sm:$0xff]
    %v778 = vld [vmem:[%s25 + $0xe8] sm:$0xff]
    %v779 = vld [vmem:[%s25 + $0xf0] sm:$0xff]
    %v780 = vld [vmem:[%s25 + $0xf8] sm:$0xff]
    %v781 = vld [vmem:[%s25 + $0x100] sm:$0xff]
    %v782 = vld [vmem:[%s25 + $0x108] sm:$0xff]
    %v783 = vld [vmem:[%s25 + $0x110] sm:$0xff]
    %v784 = vld [vmem:[%s25 + $0x118] sm:$0xff]
    %v785 = vld [vmem:[%s25 + $0x120] sm:$0xff]
    %v786 = vld [vmem:[%s25 + $0x128] sm:$0xff]
    %v787 = vld [vmem:[%s25 + $0x130] sm:$0xff]
    %v788 = vld [vmem:[%s25 + $0x138] sm:$0xff]
    %v789 = vld [vmem:[%s25 + $0x140] sm:$0xff]
    %v790 = vld [vmem:[%s25 + $0x148] sm:$0xff]
    %v791 = vld [vmem:[%s25 + $0x150] sm:$0xff]
    %v792 = vld [vmem:[%s25 + $0x158] sm:$0xff]
    %v793 = vld [vmem:[%s25 + $0x160] sm:$0xff]
    %v794 = vld [vmem:[%s25 + $0x168] sm:$0xff]
    %v795 = vld [vmem:[%s25 + $0x170] sm:$0xff]
    %v796 = vld [vmem:[%s25 + $0x178] sm:$0xff]
    %v797 = vld [vmem:[%s27] sm:$0x7]
    %v798 = vld [vmem:[%s29] sm:$0xff]
    %v799 = vld [vmem:[%s29 + $0x8] sm:$0xff]
    %v800 = vld [vmem:[%s29 + $0x10] sm:$0xff]
    %v801 = vld [vmem:[%s29 + $0x18] sm:$0xff]
    %v802 = vld [vmem:[%s29 + $0x20] sm:$0xff]
    %v803 = vld [vmem:[%s29 + $0x28] sm:$0xff]
    %v804 = vld [vmem:[%s29 + $0x30] sm:$0xff]
    %v805 = vld [vmem:[%s29 + $0x38] sm:$0xff]
    %v806 = vld [vmem:[%s29 + $0x40] sm:$0xff]
    %v807 = vld [vmem:[%s29 + $0x48] sm:$0xff]
    %v808 = vld [vmem:[%s29 + $0x50] sm:$0xff]
    %v809 = vld [vmem:[%s29 + $0x58] sm:$0xff]
    %v810 = vld [vmem:[%s29 + $0x60] sm:$0xff]
    %v811 = vld [vmem:[%s29 + $0x68] sm:$0xff]
    %v812 = vld [vmem:[%s29 + $0x70] sm:$0xff]
    %v813 = vld [vmem:[%s29 + $0x78] sm:$0xff]
    %v814 = vld [vmem:[%s29 + $0x80] sm:$0xff]
    %v815 = vld [vmem:[%s29 + $0x88] sm:$0xff]
    %v816 = vld [vmem:[%s29 + $0x90] sm:$0xff]
    %v817 = vld [vmem:[%s29 + $0x98] sm:$0xff]
    %v818 = vld [vmem:[%s29 + $0xa0] sm:$0xff]
    %v819 = vld [vmem:[%s29 + $0xa8] sm:$0xff]
    %v820 = vld [vmem:[%s29 + $0xb0] sm:$0xff]
    %v821 = vld [vmem:[%s29 + $0xb8] sm:$0xff]
    %v822 = vld [vmem:[%s29 + $0xc0] sm:$0xff]
    %v823 = vld [vmem:[%s29 + $0xc8] sm:$0xff]
    %v824 = vld [vmem:[%s29 + $0xd0] sm:$0xff]
    %v825 = vld [vmem:[%s29 + $0xd8] sm:$0xff]
    %v826 = vld [vmem:[%s29 + $0xe0] sm:$0xff]
    %v827 = vld [vmem:[%s29 + $0xe8] sm:$0xff]
    %v828 = vld [vmem:[%s29 + $0xf0] sm:$0xff]
    %v829 = vld [vmem:[%s29 + $0xf8] sm:$0xff]
    %v830 = vld [vmem:[%s29 + $0x100] sm:$0xff]
    %v831 = vld [vmem:[%s29 + $0x108] sm:$0xff]
    %v832 = vld [vmem:[%s29 + $0x110] sm:$0xff]
    %v833 = vld [vmem:[%s29 + $0x118] sm:$0xff]
    %v834 = vld [vmem:[%s29 + $0x120] sm:$0xff]
    %v835 = vld [vmem:[%s29 + $0x128] sm:$0xff]
    %v836 = vld [vmem:[%s29 + $0x130] sm:$0xff]
    %v837 = vld [vmem:[%s29 + $0x138] sm:$0xff]
    %v838 = vld [vmem:[%s29 + $0x140] sm:$0xff]
    %v839 = vld [vmem:[%s29 + $0x148] sm:$0xff]
    %v840 = vld [vmem:[%s29 + $0x150] sm:$0xff]
    %v841 = vld [vmem:[%s29 + $0x158] sm:$0xff]
    %v842 = vld [vmem:[%s29 + $0x160] sm:$0xff]
    %v843 = vld [vmem:[%s29 + $0x168] sm:$0xff]
    %v844 = vld [vmem:[%s29 + $0x170] sm:$0xff]
    %v845 = vld [vmem:[%s29 + $0x178] sm:$0xff]
    %v846 = vld [vmem:[%s31] sm:$0x7]
    %v848 = vlaneseq
    %v849 = vshrl.u32 %v848, 7
    %v850 = vsub.s32 0, %v849
    %v851 = vrot.slane %v797, %v850
    %v852 = vlaneseq
    %v853 = vshrl.u32 %v852, 7
    %v854 = vsub.s32 1, %v853
    %v855 = vrot.slane %v797, %v854
    %v856 = vlaneseq
    %v857 = vshrl.u32 %v856, 7
    %v858 = vsub.s32 2, %v857
    %v859 = vrot.slane %v797, %v858
    %863 = vmatprep.subr.mxu0 %v750
    %864 = vmatpush1.msra.mxu0 %v749
    %865 = vmatprep.subr.mxu0 %v753
    %866 = vmatpush1.msra.mxu0 %v752
    %867 = vmatprep.subr.mxu0 %v756
    %868 = vmatpush1.msra.mxu0 %v755
    %869 = vmatprep.subr.mxu0 %v759
    %870 = vmatpush1.msra.mxu0 %v758
    %871 = vmatprep.subr.mxu0 %v762
    %872 = vmatpush1.msra.mxu0 %v761
    %873 = vmatprep.subr.mxu0 %v765
    %874 = vmatpush1.msra.mxu0 %v764
    %875 = vmatprep.subr.mxu0 %v768
    %876 = vmatpush1.msra.mxu0 %v767
    %877 = vmatprep.subr.mxu0 %v771
    %878 = vmatpush1.msra.mxu0 %v770
    %879 = vmatprep.subr.mxu0 %v774
    %880 = vmatpush1.msra.mxu0 %v773
    %881 = vmatprep.subr.mxu0 %v777
    %882 = vmatpush1.msra.mxu0 %v776
    %883 = vmatprep.subr.mxu0 %v780
    %884 = vmatpush1.msra.mxu0 %v779
    %885 = vmatprep.subr.mxu0 %v783
    %886 = vmatpush1.msra.mxu0 %v782
    %887 = vmatprep.subr.mxu0 %v786
    %888 = vmatpush1.msra.mxu0 %v785
    %889 = vmatprep.subr.mxu0 %v789
    %890 = vmatpush1.msra.mxu0 %v788
    %891 = vmatprep.subr.mxu0 %v792
    %892 = vmatpush1.msra.mxu0 %v791
    %893 = vmatprep.subr.mxu0 %v795
    %894 = vmatpush1.msra.mxu0 %v794
    %895 = vmatprep.subr.mxu0 0.0
    %896 = vmatpush1.msra.mxu0 0.0
    %897 = vmatprep.subr.mxu0 0.0
    %898 = vmatpush1.msra.mxu0 0.0
    %899 = vmatprep.subr.mxu0 0.0
    %900 = vmatpush1.msra.mxu0 0.0
    %901 = vmatprep.subr.mxu0 0.0
    %902 = vmatpush1.msra.mxu0 0.0
    %903 = vmatprep.subr.mxu0 0.0
    %904 = vmatpush1.msra.mxu0 0.0
    %905 = vmatprep.subr.mxu0 0.0
    %906 = vmatpush1.msra.mxu0 0.0
    %907 = vmatprep.subr.mxu0 0.0
    %908 = vmatpush1.msra.mxu0 0.0
    %909 = vmatprep.subr.mxu0 0.0
    %910 = vmatpush1.msra.mxu0 0.0
    %911 = vmatprep.subr.mxu0 0.0
    %912 = vmatpush1.msra.mxu0 0.0
    %913 = vmatprep.subr.mxu0 0.0
    %914 = vmatpush1.msra.mxu0 0.0
    %915 = vmatprep.subr.mxu0 0.0
    %916 = vmatpush1.msra.mxu0 0.0
    %917 = vmatprep.subr.mxu0 0.0
    %918 = vmatpush1.msra.mxu0 0.0
    %919 = vmatprep.subr.mxu0 0.0
    %920 = vmatpush1.msra.mxu0 0.0
    %921 = vmatprep.subr.mxu0 0.0
    %922 = vmatpush1.msra.mxu0 0.0
    %923 = vmatprep.subr.mxu0 0.0
    %924 = vmatpush1.msra.mxu0 0.0
    %925 = vmatprep.subr.mxu0 0.0
    %926 = vmatpush1.msra.mxu0 0.0
    %927 = vmatprep.mubr.f32.mxu0 0.0
    %928 = vmatmul.mubr.f32.gmra.mrb[0].mxu0 0.0
    %v929 = vpop.f32.mrb[0].mxu0
    %v930 = vadd.f32 %v851, %v929
    %v931 = vpop.f32.mrb[0].mxu0
    %v932 = vadd.f32 %v855, %v931
    %933 = vdwg.mxu0
    %934 = vmatprep.subr.mxu0 0.0
    %935 = vmatpush1.msra.mxu0 %v751
    %936 = vmatprep.subr.mxu0 0.0
    %937 = vmatpush1.msra.mxu0 %v754
    %938 = vmatprep.subr.mxu0 0.0
    %939 = vmatpush1.msra.mxu0 %v757
    %940 = vmatprep.subr.mxu0 0.0
    %941 = vmatpush1.msra.mxu0 %v760
    %942 = vmatprep.subr.mxu0 0.0
    %943 = vmatpush1.msra.mxu0 %v763
    %944 = vmatprep.subr.mxu0 0.0
    %945 = vmatpush1.msra.mxu0 %v766
    %946 = vmatprep.subr.mxu0 0.0
    %947 = vmatpush1.msra.mxu0 %v769
    %948 = vmatprep.subr.mxu0 0.0
    %949 = vmatpush1.msra.mxu0 %v772
    %950 = vmatprep.subr.mxu0 0.0
    %951 = vmatpush1.msra.mxu0 %v775
    %952 = vmatprep.subr.mxu0 0.0
    %953 = vmatpush1.msra.mxu0 %v778
    %954 = vmatprep.subr.mxu0 0.0
    %955 = vmatpush1.msra.mxu0 %v781
    %956 = vmatprep.subr.mxu0 0.0
    %957 = vmatpush1.msra.mxu0 %v784
    %958 = vmatprep.subr.mxu0 0.0
    %959 = vmatpush1.msra.mxu0 %v787
    %960 = vmatprep.subr.mxu0 0.0
    %961 = vmatpush1.msra.mxu0 %v790
    %962 = vmatprep.subr.mxu0 0.0
    %963 = vmatpush1.msra.mxu0 %v793
    %964 = vmatprep.subr.mxu0 0.0
    %965 = vmatpush1.msra.mxu0 %v796
    %966 = vmatprep.subr.mxu0 0.0
    %967 = vmatpush1.msra.mxu0 0.0
    %968 = vmatprep.subr.mxu0 0.0
    %969 = vmatpush1.msra.mxu0 0.0
    %970 = vmatprep.subr.mxu0 0.0
    %971 = vmatpush1.msra.mxu0 0.0
    %972 = vmatprep.subr.mxu0 0.0
    %973 = vmatpush1.msra.mxu0 0.0
    %974 = vmatprep.subr.mxu0 0.0
    %975 = vmatpush1.msra.mxu0 0.0
    %976 = vmatprep.subr.mxu0 0.0
    %977 = vmatpush1.msra.mxu0 0.0
    %978 = vmatprep.subr.mxu0 0.0
    %979 = vmatpush1.msra.mxu0 0.0
    %980 = vmatprep.subr.mxu0 0.0
    %981 = vmatpush1.msra.mxu0 0.0
    %982 = vmatprep.subr.mxu0 0.0
    %983 = vmatpush1.msra.mxu0 0.0
    %984 = vmatprep.subr.mxu0 0.0
    %985 = vmatpush1.msra.mxu0 0.0
    %986 = vmatprep.subr.mxu0 0.0
    %987 = vmatpush1.msra.mxu0 0.0
    %988 = vmatprep.subr.mxu0 0.0
    %989 = vmatpush1.msra.mxu0 0.0
    %990 = vmatprep.subr.mxu0 0.0
    %991 = vmatpush1.msra.mxu0 0.0
    %992 = vmatprep.subr.mxu0 0.0
    %993 = vmatpush1.msra.mxu0 0.0
    %994 = vmatprep.subr.mxu0 0.0
    %995 = vmatpush1.msra.mxu0 0.0
    %996 = vmatprep.subr.mxu0 0.0
    %997 = vmatpush1.msra.mxu0 0.0
    %998 = vmatprep.mubr.f32.mxu0 0.0
    %999 = vmatmul.mubr.f32.gmra.mrb[0].mxu0 0.0
    %v1000 = vpop.f32.mrb[0].mxu0
    %v1001 = vadd.f32 %v859, %v1000
    %v1002 = vpop.f32.mrb[0].mxu0
    %1003 = vdwg.mxu0
    %v1005 = vrot.slane %v930, 1
    %v1008 = vadd.f32 %v585, %v930
    %v1009 = vadd.f32 %v591, %v1005
    %v1010 = vxor.u32 %v1008, 2147483648
    %v1011 = vxor.u32 %v1009, 2147483648
    %v1012 = vmul.f32 %v1010, 1.442695
    %v1013 = vpow.pop %v1012
    %v1014 = vmul.f32 %v1011, 1.442695
    %v1015 = vpow.pop %v1014
    %v1016 = vadd.f32 %v1013, 1.0
    %v1017 = vadd.f32 %v1015, 1.0
    %v1018 = vrcp.pop %v1016
    %v1019 = vmul.f32 1.0, %v1018
    %v1020 = vrcp.pop %v1017
    %v1021 = vmul.f32 1.0, %v1020
    %v1023 = vrot.slane %v932, 1
    %v1026 = vadd.f32 %v587, %v932
    %v1027 = vadd.f32 %v593, %v1023
    %v1028 = vxor.u32 %v1026, 2147483648
    %v1029 = vxor.u32 %v1027, 2147483648
    %v1030 = vmul.f32 %v1028, 1.442695
    %v1031 = vpow.pop %v1030
    %v1032 = vmul.f32 %v1029, 1.442695
    %v1033 = vpow.pop %v1032
    %v1034 = vadd.f32 %v1031, 1.0
    %v1035 = vadd.f32 %v1033, 1.0
    %v1036 = vrcp.pop %v1034
    %v1037 = vmul.f32 1.0, %v1036
    %v1038 = vrcp.pop %v1035
    %v1039 = vmul.f32 1.0, %v1038
    %v1041 = vrot.slane %v1001, 1
    %v1044 = vmul.f32 %v1019, %v1001
    %v1045 = vmul.f32 %v1021, %v1041
    %v1046 = vadd.f32 %v662, %v1044
    %v1047 = vadd.f32 %v668, %v1045
    %v1048 = vtanh.pop %v1046
    %v1049 = vtanh.pop %v1047
    %v1050 = vsub.f32 1.0, %v1037
    %v1051 = vsub.f32 1.0, %v1039
    %v1052 = vmul.f32 %v1050, %v1048
    %v1053 = vmul.f32 %v1051, %v1049
    %v1054 = vmul.f32 %v1037, 0.0
    %v1055 = vmul.f32 %v1039, 0.0
    %v1056 = vadd.f32 %v1052, %v1054
    %v1057 = vadd.f32 %v1053, %v1055
    %v1059 = vlaneseq
    %v1060 = vshrl.u32 %v1059, 7
    %v1061 = vsub.s32 0, %v1060
    %v1062 = vrot.slane %v846, %v1061
    %v1063 = vlaneseq
    %v1064 = vshrl.u32 %v1063, 7
    %v1065 = vsub.s32 1, %v1064
    %v1066 = vrot.slane %v846, %v1065
    %v1067 = vlaneseq
    %v1068 = vshrl.u32 %v1067, 7
    %v1069 = vsub.s32 2, %v1068
    %v1070 = vrot.slane %v846, %v1069
    %1074 = vmatprep.subr.mxu0 %v799
    %1075 = vmatpush1.msra.mxu0 %v798
    %1076 = vmatprep.subr.mxu0 %v802
    %1077 = vmatpush1.msra.mxu0 %v801
    %1078 = vmatprep.subr.mxu0 %v805
    %1079 = vmatpush1.msra.mxu0 %v804
    %1080 = vmatprep.subr.mxu0 %v808
    %1081 = vmatpush1.msra.mxu0 %v807
    %1082 = vmatprep.subr.mxu0 %v811
    %1083 = vmatpush1.msra.mxu0 %v810
    %1084 = vmatprep.subr.mxu0 %v814
    %1085 = vmatpush1.msra.mxu0 %v813
    %1086 = vmatprep.subr.mxu0 %v817
    %1087 = vmatpush1.msra.mxu0 %v816
    %1088 = vmatprep.subr.mxu0 %v820
    %1089 = vmatpush1.msra.mxu0 %v819
    %1090 = vmatprep.subr.mxu0 %v823
    %1091 = vmatpush1.msra.mxu0 %v822
    %1092 = vmatprep.subr.mxu0 %v826
    %1093 = vmatpush1.msra.mxu0 %v825
    %1094 = vmatprep.subr.mxu0 %v829
    %1095 = vmatpush1.msra.mxu0 %v828
    %1096 = vmatprep.subr.mxu0 %v832
    %1097 = vmatpush1.msra.mxu0 %v831
    %1098 = vmatprep.subr.mxu0 %v835
    %1099 = vmatpush1.msra.mxu0 %v834
    %1100 = vmatprep.subr.mxu0 %v838
    %1101 = vmatpush1.msra.mxu0 %v837
    %1102 = vmatprep.subr.mxu0 %v841
    %1103 = vmatpush1.msra.mxu0 %v840
    %1104 = vmatprep.subr.mxu0 %v844
    %1105 = vmatpush1.msra.mxu0 %v843
    %1106 = vmatprep.subr.mxu0 0.0
    %1107 = vmatpush1.msra.mxu0 0.0
    %1108 = vmatprep.subr.mxu0 0.0
    %1109 = vmatpush1.msra.mxu0 0.0
    %1110 = vmatprep.subr.mxu0 0.0
    %1111 = vmatpush1.msra.mxu0 0.0
    %1112 = vmatprep.subr.mxu0 0.0
    %1113 = vmatpush1.msra.mxu0 0.0
    %1114 = vmatprep.subr.mxu0 0.0
    %1115 = vmatpush1.msra.mxu0 0.0
    %1116 = vmatprep.subr.mxu0 0.0
    %1117 = vmatpush1.msra.mxu0 0.0
    %1118 = vmatprep.subr.mxu0 0.0
    %1119 = vmatpush1.msra.mxu0 0.0
    %1120 = vmatprep.subr.mxu0 0.0
    %1121 = vmatpush1.msra.mxu0 0.0
    %1122 = vmatprep.subr.mxu0 0.0
    %1123 = vmatpush1.msra.mxu0 0.0
    %1124 = vmatprep.subr.mxu0 0.0
    %1125 = vmatpush1.msra.mxu0 0.0
    %1126 = vmatprep.subr.mxu0 0.0
    %1127 = vmatpush1.msra.mxu0 0.0
    %1128 = vmatprep.subr.mxu0 0.0
    %1129 = vmatpush1.msra.mxu0 0.0
    %1130 = vmatprep.subr.mxu0 0.0
    %1131 = vmatpush1.msra.mxu0 0.0
    %1132 = vmatprep.subr.mxu0 0.0
    %1133 = vmatpush1.msra.mxu0 0.0
    %1134 = vmatprep.subr.mxu0 0.0
    %1135 = vmatpush1.msra.mxu0 0.0
    %1136 = vmatprep.subr.mxu0 0.0
    %1137 = vmatpush1.msra.mxu0 0.0
    %1138 = vmatprep.mubr.f32.mxu0 0.0
    %1139 = vmatmul.mubr.f32.gmra.mrb[0].mxu0 0.0
    %v1140 = vpop.f32.mrb[0].mxu0
    %v1141 = vadd.f32 %v1062, %v1140
    %v1142 = vpop.f32.mrb[0].mxu0
    %v1143 = vadd.f32 %v1066, %v1142
    %1144 = vdwg.mxu0
    %1145 = vmatprep.subr.mxu0 0.0
    %1146 = vmatpush1.msra.mxu0 %v800
    %1147 = vmatprep.subr.mxu0 0.0
    %1148 = vmatpush1.msra.mxu0 %v803
    %1149 = vmatprep.subr.mxu0 0.0
    %1150 = vmatpush1.msra.mxu0 %v806
    %1151 = vmatprep.subr.mxu0 0.0
    %1152 = vmatpush1.msra.mxu0 %v809
    %1153 = vmatprep.subr.mxu0 0.0
    %1154 = vmatpush1.msra.mxu0 %v812
    %1155 = vmatprep.subr.mxu0 0.0
    %1156 = vmatpush1.msra.mxu0 %v815
    %1157 = vmatprep.subr.mxu0 0.0
    %1158 = vmatpush1.msra.mxu0 %v818
    %1159 = vmatprep.subr.mxu0 0.0
    %1160 = vmatpush1.msra.mxu0 %v821
    %1161 = vmatprep.subr.mxu0 0.0
    %1162 = vmatpush1.msra.mxu0 %v824
    %1163 = vmatprep.subr.mxu0 0.0
    %1164 = vmatpush1.msra.mxu0 %v827
    %1165 = vmatprep.subr.mxu0 0.0
    %1166 = vmatpush1.msra.mxu0 %v830
    %1167 = vmatprep.subr.mxu0 0.0
    %1168 = vmatpush1.msra.mxu0 %v833
    %1169 = vmatprep.subr.mxu0 0.0
    %1170 = vmatpush1.msra.mxu0 %v836
    %1171 = vmatprep.subr.mxu0 0.0
    %1172 = vmatpush1.msra.mxu0 %v839
    %1173 = vmatprep.subr.mxu0 0.0
    %1174 = vmatpush1.msra.mxu0 %v842
    %1175 = vmatprep.subr.mxu0 0.0
    %1176 = vmatpush1.msra.mxu0 %v845
    %1177 = vmatprep.subr.mxu0 0.0
    %1178 = vmatpush1.msra.mxu0 0.0
    %1179 = vmatprep.subr.mxu0 0.0
    %1180 = vmatpush1.msra.mxu0 0.0
    %1181 = vmatprep.subr.mxu0 0.0
    %1182 = vmatpush1.msra.mxu0 0.0
    %1183 = vmatprep.subr.mxu0 0.0
    %1184 = vmatpush1.msra.mxu0 0.0
    %1185 = vmatprep.subr.mxu0 0.0
    %1186 = vmatpush1.msra.mxu0 0.0
    %1187 = vmatprep.subr.mxu0 0.0
    %1188 = vmatpush1.msra.mxu0 0.0
    %1189 = vmatprep.subr.mxu0 0.0
    %1190 = vmatpush1.msra.mxu0 0.0
    %1191 = vmatprep.subr.mxu0 0.0
    %1192 = vmatpush1.msra.mxu0 0.0
    %1193 = vmatprep.subr.mxu0 0.0
    %1194 = vmatpush1.msra.mxu0 0.0
    %1195 = vmatprep.subr.mxu0 0.0
    %1196 = vmatpush1.msra.mxu0 0.0
    %1197 = vmatprep.subr.mxu0 0.0
    %1198 = vmatpush1.msra.mxu0 0.0
    %1199 = vmatprep.subr.mxu0 0.0
    %1200 = vmatpush1.msra.mxu0 0.0
    %1201 = vmatprep.subr.mxu0 0.0
    %1202 = vmatpush1.msra.mxu0 0.0
    %1203 = vmatprep.subr.mxu0 0.0
    %1204 = vmatpush1.msra.mxu0 0.0
    %1205 = vmatprep.subr.mxu0 0.0
    %1206 = vmatpush1.msra.mxu0 0.0
    %1207 = vmatprep.subr.mxu0 0.0
    %1208 = vmatpush1.msra.mxu0 0.0
    %1209 = vmatprep.mubr.f32.mxu0 0.0
    %1210 = vmatmul.mubr.f32.gmra.mrb[0].mxu0 0.0
    %v1211 = vpop.f32.mrb[0].mxu0
    %v1212 = vadd.f32 %v1070, %v1211
    %v1213 = vpop.f32.mrb[0].mxu0
    %1214 = vdwg.mxu0
    %v1216 = vrot.slane %v1141, 1
    %v1217 = vrot.slane %v1141, 2
    %v1220 = vadd.f32 %v664, %v1216
    %v1221 = vadd.f32 %v670, %v1217
    %v1222 = vxor.u32 %v1220, 2147483648
    %v1223 = vxor.u32 %v1221, 2147483648
    %v1224 = vmul.f32 %v1222, 1.442695
    %v1225 = vpow.pop %v1224
    %v1226 = vmul.f32 %v1223, 1.442695
    %v1227 = vpow.pop %v1226
    %v1228 = vadd.f32 %v1225, 1.0
    %v1229 = vadd.f32 %v1227, 1.0
    %v1230 = vrcp.pop %v1228
    %v1231 = vmul.f32 1.0, %v1230
    %v1232 = vrcp.pop %v1229
    %v1233 = vmul.f32 1.0, %v1232
    %v1235 = vrot.slane %v1143, 1
    %v1236 = vrot.slane %v1143, 2
    %v1239 = vadd.f32 %v739, %v1235
    %v1240 = vadd.f32 %v745, %v1236
    %v1241 = vxor.u32 %v1239, 2147483648
    %v1242 = vxor.u32 %v1240, 2147483648
    %v1243 = vmul.f32 %v1241, 1.442695
    %v1244 = vpow.pop %v1243
    %v1245 = vmul.f32 %v1242, 1.442695
    %v1246 = vpow.pop %v1245
    %v1247 = vadd.f32 %v1244, 1.0
    %v1248 = vadd.f32 %v1246, 1.0
    %v1249 = vrcp.pop %v1247
    %v1250 = vmul.f32 1.0, %v1249
    %v1251 = vrcp.pop %v1248
    %v1252 = vmul.f32 1.0, %v1251
    %v1254 = vrot.slane %v1212, 1
    %v1255 = vrot.slane %v1212, 2
    %v1258 = vmul.f32 %v1231, %v1254
    %v1259 = vmul.f32 %v1233, %v1255
    %v1260 = vadd.f32 %v741, %v1258
    %v1261 = vadd.f32 %v747, %v1259
    %v1262 = vtanh.pop %v1260
    %v1263 = vtanh.pop %v1261
    %v1264 = vsub.f32 1.0, %v1250
    %v1265 = vsub.f32 1.0, %v1252
    %v1266 = vmul.f32 %v1264, %v1262
    %v1267 = vmul.f32 %v1265, %v1263
    %v1268 = vmul.f32 %v1250, 0.0
    %v1269 = vmul.f32 %v1252, 0.0
    %v1270 = vadd.f32 %v1266, %v1268
    %v1271 = vadd.f32 %v1267, %v1269
    %v1272 = vsel %vm388, 1, 0
    %v1273 = vsel %vm389, 1, 0
    %1274 = vset.pattern.permute.xlu0 0
    %1275 = vperm.xlu0 %1274, %v1272
    %v1276 = vpop.permute.xlu0 %1275
    %1277 = vset.pattern.permute.xlu0 0
    %1278 = vperm.xlu0 %1277, %v1273
    %v1279 = vpop.permute.xlu0 %1278
    %vm1280 = vcmp.eq.s32.totalorder %v1276, 1
    %vm1281 = vcmp.eq.s32.totalorder %v1279, 1
    %v1282 = vsel %vm1280, %v1056, 0.0
    %v1283 = vsel %vm1281, %v1057, 0.0
    %v1284 = vsel %vm1280, %v1270, 0.0
    %v1285 = vsel %vm1281, %v1271, 0.0
    %v1288 = vrot.slane %v1283, 7
    %vm1289 = vcmask 1041409
    %v1290 = vsel %vm1289, %v1288, %v1282
    %1292 = vmatprep.subr.mxu0 %v750
    %1293 = vmatpush1.msra.mxu0 %v749
    %1294 = vmatprep.subr.mxu0 %v753
    %1295 = vmatpush1.msra.mxu0 %v752
    %1296 = vmatprep.subr.mxu0 %v756
    %1297 = vmatpush1.msra.mxu0 %v755
    %1298 = vmatprep.subr.mxu0 %v759
    %1299 = vmatpush1.msra.mxu0 %v758
    %1300 = vmatprep.subr.mxu0 %v762
    %1301 = vmatpush1.msra.mxu0 %v761
    %1302 = vmatprep.subr.mxu0 %v765
    %1303 = vmatpush1.msra.mxu0 %v764
    %1304 = vmatprep.subr.mxu0 %v768
    %1305 = vmatpush1.msra.mxu0 %v767
    %1306 = vmatprep.subr.mxu0 %v771
    %1307 = vmatpush1.msra.mxu0 %v770
    %1308 = vmatprep.subr.mxu0 %v774
    %1309 = vmatpush1.msra.mxu0 %v773
    %1310 = vmatprep.subr.mxu0 %v777
    %1311 = vmatpush1.msra.mxu0 %v776
    %1312 = vmatprep.subr.mxu0 %v780
    %1313 = vmatpush1.msra.mxu0 %v779
    %1314 = vmatprep.subr.mxu0 %v783
    %1315 = vmatpush1.msra.mxu0 %v782
    %1316 = vmatprep.subr.mxu0 %v786
    %1317 = vmatpush1.msra.mxu0 %v785
    %1318 = vmatprep.subr.mxu0 %v789
    %1319 = vmatpush1.msra.mxu0 %v788
    %1320 = vmatprep.subr.mxu0 %v792
    %1321 = vmatpush1.msra.mxu0 %v791
    %1322 = vmatprep.subr.mxu0 %v795
    %1323 = vmatpush1.msra.mxu0 %v794
    %1324 = vmatprep.subr.mxu0 0.0
    %1325 = vmatpush1.msra.mxu0 0.0
    %1326 = vmatprep.subr.mxu0 0.0
    %1327 = vmatpush1.msra.mxu0 0.0
    %1328 = vmatprep.subr.mxu0 0.0
    %1329 = vmatpush1.msra.mxu0 0.0
    %1330 = vmatprep.subr.mxu0 0.0
    %1331 = vmatpush1.msra.mxu0 0.0
    %1332 = vmatprep.subr.mxu0 0.0
    %1333 = vmatpush1.msra.mxu0 0.0
    %1334 = vmatprep.subr.mxu0 0.0
    %1335 = vmatpush1.msra.mxu0 0.0
    %1336 = vmatprep.subr.mxu0 0.0
    %1337 = vmatpush1.msra.mxu0 0.0
    %1338 = vmatprep.subr.mxu0 0.0
    %1339 = vmatpush1.msra.mxu0 0.0
    %1340 = vmatprep.subr.mxu0 0.0
    %1341 = vmatpush1.msra.mxu0 0.0
    %1342 = vmatprep.subr.mxu0 0.0
    %1343 = vmatpush1.msra.mxu0 0.0
    %1344 = vmatprep.subr.mxu0 0.0
    %1345 = vmatpush1.msra.mxu0 0.0
    %1346 = vmatprep.subr.mxu0 0.0
    %1347 = vmatpush1.msra.mxu0 0.0
    %1348 = vmatprep.subr.mxu0 0.0
    %1349 = vmatpush1.msra.mxu0 0.0
    %1350 = vmatprep.subr.mxu0 0.0
    %1351 = vmatpush1.msra.mxu0 0.0
    %1352 = vmatprep.subr.mxu0 0.0
    %1353 = vmatpush1.msra.mxu0 0.0
    %1354 = vmatprep.subr.mxu0 0.0
    %1355 = vmatpush1.msra.mxu0 0.0
    %1356 = vmatprep.mubr.f32.mxu0 0.0
    %1357 = vmatmul.mubr.f32.gmra.mrb[0].mxu0 %v1290
    %v1358 = vpop.f32.mrb[0].mxu0
    %v1359 = vadd.f32 %v851, %v1358
    %v1360 = vpop.f32.mrb[0].mxu0
    %v1361 = vadd.f32 %v855, %v1360
    %1362 = vdwg.mxu0
    %1363 = vmatprep.subr.mxu0 0.0
    %1364 = vmatpush1.msra.mxu0 %v751
    %1365 = vmatprep.subr.mxu0 0.0
    %1366 = vmatpush1.msra.mxu0 %v754
    %1367 = vmatprep.subr.mxu0 0.0
    %1368 = vmatpush1.msra.mxu0 %v757
    %1369 = vmatprep.subr.mxu0 0.0
    %1370 = vmatpush1.msra.mxu0 %v760
    %1371 = vmatprep.subr.mxu0 0.0
    %1372 = vmatpush1.msra.mxu0 %v763
    %1373 = vmatprep.subr.mxu0 0.0
    %1374 = vmatpush1.msra.mxu0 %v766
    %1375 = vmatprep.subr.mxu0 0.0
    %1376 = vmatpush1.msra.mxu0 %v769
    %1377 = vmatprep.subr.mxu0 0.0
    %1378 = vmatpush1.msra.mxu0 %v772
    %1379 = vmatprep.subr.mxu0 0.0
    %1380 = vmatpush1.msra.mxu0 %v775
    %1381 = vmatprep.subr.mxu0 0.0
    %1382 = vmatpush1.msra.mxu0 %v778
    %1383 = vmatprep.subr.mxu0 0.0
    %1384 = vmatpush1.msra.mxu0 %v781
    %1385 = vmatprep.subr.mxu0 0.0
    %1386 = vmatpush1.msra.mxu0 %v784
    %1387 = vmatprep.subr.mxu0 0.0
    %1388 = vmatpush1.msra.mxu0 %v787
    %1389 = vmatprep.subr.mxu0 0.0
    %1390 = vmatpush1.msra.mxu0 %v790
    %1391 = vmatprep.subr.mxu0 0.0
    %1392 = vmatpush1.msra.mxu0 %v793
    %1393 = vmatprep.subr.mxu0 0.0
    %1394 = vmatpush1.msra.mxu0 %v796
    %1395 = vmatprep.subr.mxu0 0.0
    %1396 = vmatpush1.msra.mxu0 0.0
    %1397 = vmatprep.subr.mxu0 0.0
    %1398 = vmatpush1.msra.mxu0 0.0
    %1399 = vmatprep.subr.mxu0 0.0
    %1400 = vmatpush1.msra.mxu0 0.0
    %1401 = vmatprep.subr.mxu0 0.0
    %1402 = vmatpush1.msra.mxu0 0.0
    %1403 = vmatprep.subr.mxu0 0.0
    %1404 = vmatpush1.msra.mxu0 0.0
    %1405 = vmatprep.subr.mxu0 0.0
    %1406 = vmatpush1.msra.mxu0 0.0
    %1407 = vmatprep.subr.mxu0 0.0
    %1408 = vmatpush1.msra.mxu0 0.0
    %1409 = vmatprep.subr.mxu0 0.0
    %1410 = vmatpush1.msra.mxu0 0.0
    %1411 = vmatprep.subr.mxu0 0.0
    %1412 = vmatpush1.msra.mxu0 0.0
    %1413 = vmatprep.subr.mxu0 0.0
    %1414 = vmatpush1.msra.mxu0 0.0
    %1415 = vmatprep.subr.mxu0 0.0
    %1416 = vmatpush1.msra.mxu0 0.0
    %1417 = vmatprep.subr.mxu0 0.0
    %1418 = vmatpush1.msra.mxu0 0.0
    %1419 = vmatprep.subr.mxu0 0.0
    %1420 = vmatpush1.msra.mxu0 0.0
    %1421 = vmatprep.subr.mxu0 0.0
    %1422 = vmatpush1.msra.mxu0 0.0
    %1423 = vmatprep.subr.mxu0 0.0
    %1424 = vmatpush1.msra.mxu0 0.0
    %1425 = vmatprep.subr.mxu0 0.0
    %1426 = vmatpush1.msra.mxu0 0.0
    %1427 = vmatprep.mubr.f32.mxu0 0.0
    %1428 = vmatmul.mubr.f32.gmra.mrb[0].mxu0 %v1290
    %v1429 = vpop.f32.mrb[0].mxu0
    %v1430 = vadd.f32 %v859, %v1429
    %v1431 = vpop.f32.mrb[0].mxu0
    %1432 = vdwg.mxu0
    %v1434 = vrot.slane %v1359, 7
    %v1437 = vadd.f32 %v585, %v1434
    %v1438 = vadd.f32 %v591, %v1359
    %v1439 = vxor.u32 %v1437, 2147483648
    %v1440 = vxor.u32 %v1438, 2147483648
    %v1441 = vmul.f32 %v1439, 1.442695
    %v1442 = vpow.pop %v1441
    %v1443 = vmul.f32 %v1440, 1.442695
    %v1444 = vpow.pop %v1443
    %v1445 = vadd.f32 %v1442, 1.0
    %v1446 = vadd.f32 %v1444, 1.0
    %v1447 = vrcp.pop %v1445
    %v1448 = vmul.f32 1.0, %v1447
    %v1449 = vrcp.pop %v1446
    %v1450 = vmul.f32 1.0, %v1449
    %v1452 = vrot.slane %v1361, 7
    %v1455 = vadd.f32 %v587, %v1452
    %v1456 = vadd.f32 %v593, %v1361
    %v1457 = vxor.u32 %v1455, 2147483648
    %v1458 = vxor.u32 %v1456, 2147483648
    %v1459 = vmul.f32 %v1457, 1.442695
    %v1460 = vpow.pop %v1459
    %v1461 = vmul.f32 %v1458, 1.442695
    %v1462 = vpow.pop %v1461
    %v1463 = vadd.f32 %v1460, 1.0
    %v1464 = vadd.f32 %v1462, 1.0
    %v1465 = vrcp.pop %v1463
    %v1466 = vmul.f32 1.0, %v1465
    %v1467 = vrcp.pop %v1464
    %v1468 = vmul.f32 1.0, %v1467
    %v1470 = vrot.slane %v1430, 7
    %v1473 = vmul.f32 %v1448, %v1470
    %v1474 = vmul.f32 %v1450, %v1430
    %v1475 = vadd.f32 %v662, %v1473
    %v1476 = vadd.f32 %v668, %v1474
    %v1477 = vtanh.pop %v1475
    %v1478 = vtanh.pop %v1476
    %v1479 = vsub.f32 1.0, %v1466
    %v1480 = vsub.f32 1.0, %v1468
    %v1481 = vmul.f32 %v1479, %v1477
    %v1482 = vmul.f32 %v1480, %v1478
    %v1483 = vrot.slane %v1282, 7
    %v1486 = vmul.f32 %v1466, %v1483
    %v1487 = vmul.f32 %v1468, %v1288
    %v1488 = vadd.f32 %v1481, %v1486
    %v1489 = vadd.f32 %v1482, %v1487
    %v1492 = vrot.slane %v1284, 7
    %v1493 = vrot.slane %v1285, 6
    %v1494 = vsel %vm1289, %v1493, %v1492
    %1496 = vmatprep.subr.mxu0 %v799
    %1497 = vmatpush1.msra.mxu0 %v798
    %1498 = vmatprep.subr.mxu0 %v802
    %1499 = vmatpush1.msra.mxu0 %v801
    %1500 = vmatprep.subr.mxu0 %v805
    %1501 = vmatpush1.msra.mxu0 %v804
    %1502 = vmatprep.subr.mxu0 %v808
    %1503 = vmatpush1.msra.mxu0 %v807
    %1504 = vmatprep.subr.mxu0 %v811
    %1505 = vmatpush1.msra.mxu0 %v810
    %1506 = vmatprep.subr.mxu0 %v814
    %1507 = vmatpush1.msra.mxu0 %v813
    %1508 = vmatprep.subr.mxu0 %v817
    %1509 = vmatpush1.msra.mxu0 %v816
    %1510 = vmatprep.subr.mxu0 %v820
    %1511 = vmatpush1.msra.mxu0 %v819
    %1512 = vmatprep.subr.mxu0 %v823
    %1513 = vmatpush1.msra.mxu0 %v822
    %1514 = vmatprep.subr.mxu0 %v826
    %1515 = vmatpush1.msra.mxu0 %v825
    %1516 = vmatprep.subr.mxu0 %v829
    %1517 = vmatpush1.msra.mxu0 %v828
    %1518 = vmatprep.subr.mxu0 %v832
    %1519 = vmatpush1.msra.mxu0 %v831
    %1520 = vmatprep.subr.mxu0 %v835
    %1521 = vmatpush1.msra.mxu0 %v834
    %1522 = vmatprep.subr.mxu0 %v838
    %1523 = vmatpush1.msra.mxu0 %v837
    %1524 = vmatprep.subr.mxu0 %v841
    %1525 = vmatpush1.msra.mxu0 %v840
    %1526 = vmatprep.subr.mxu0 %v844
    %1527 = vmatpush1.msra.mxu0 %v843
    %1528 = vmatprep.subr.mxu0 0.0
    %1529 = vmatpush1.msra.mxu0 0.0
    %1530 = vmatprep.subr.mxu0 0.0
    %1531 = vmatpush1.msra.mxu0 0.0
    %1532 = vmatprep.subr.mxu0 0.0
    %1533 = vmatpush1.msra.mxu0 0.0
    %1534 = vmatprep.subr.mxu0 0.0
    %1535 = vmatpush1.msra.mxu0 0.0
    %1536 = vmatprep.subr.mxu0 0.0
    %1537 = vmatpush1.msra.mxu0 0.0
    %1538 = vmatprep.subr.mxu0 0.0
    %1539 = vmatpush1.msra.mxu0 0.0
    %1540 = vmatprep.subr.mxu0 0.0
    %1541 = vmatpush1.msra.mxu0 0.0
    %1542 = vmatprep.subr.mxu0 0.0
    %1543 = vmatpush1.msra.mxu0 0.0
    %1544 = vmatprep.subr.mxu0 0.0
    %1545 = vmatpush1.msra.mxu0 0.0
    %1546 = vmatprep.subr.mxu0 0.0
    %1547 = vmatpush1.msra.mxu0 0.0
    %1548 = vmatprep.subr.mxu0 0.0
    %1549 = vmatpush1.msra.mxu0 0.0
    %1550 = vmatprep.subr.mxu0 0.0
    %1551 = vmatpush1.msra.mxu0 0.0
    %1552 = vmatprep.subr.mxu0 0.0
    %1553 = vmatpush1.msra.mxu0 0.0
    %1554 = vmatprep.subr.mxu0 0.0
    %1555 = vmatpush1.msra.mxu0 0.0
    %1556 = vmatprep.subr.mxu0 0.0
    %1557 = vmatpush1.msra.mxu0 0.0
    %1558 = vmatprep.subr.mxu0 0.0
    %1559 = vmatpush1.msra.mxu0 0.0
    %1560 = vmatprep.mubr.f32.mxu0 0.0
    %1561 = vmatmul.mubr.f32.gmra.mrb[0].mxu0 %v1494
    %v1562 = vpop.f32.mrb[0].mxu0
    %v1563 = vadd.f32 %v1062, %v1562
    %v1564 = vpop.f32.mrb[0].mxu0
    %v1565 = vadd.f32 %v1066, %v1564
    %1566 = vdwg.mxu0
    %1567 = vmatprep.subr.mxu0 0.0
    %1568 = vmatpush1.msra.mxu0 %v800
    %1569 = vmatprep.subr.mxu0 0.0
    %1570 = vmatpush1.msra.mxu0 %v803
    %1571 = vmatprep.subr.mxu0 0.0
    %1572 = vmatpush1.msra.mxu0 %v806
    %1573 = vmatprep.subr.mxu0 0.0
    %1574 = vmatpush1.msra.mxu0 %v809
    %1575 = vmatprep.subr.mxu0 0.0
    %1576 = vmatpush1.msra.mxu0 %v812
    %1577 = vmatprep.subr.mxu0 0.0
    %1578 = vmatpush1.msra.mxu0 %v815
    %1579 = vmatprep.subr.mxu0 0.0
    %1580 = vmatpush1.msra.mxu0 %v818
    %1581 = vmatprep.subr.mxu0 0.0
    %1582 = vmatpush1.msra.mxu0 %v821
    %1583 = vmatprep.subr.mxu0 0.0
    %1584 = vmatpush1.msra.mxu0 %v824
    %1585 = vmatprep.subr.mxu0 0.0
    %1586 = vmatpush1.msra.mxu0 %v827
    %1587 = vmatprep.subr.mxu0 0.0
    %1588 = vmatpush1.msra.mxu0 %v830
    %1589 = vmatprep.subr.mxu0 0.0
    %1590 = vmatpush1.msra.mxu0 %v833
    %1591 = vmatprep.subr.mxu0 0.0
    %1592 = vmatpush1.msra.mxu0 %v836
    %1593 = vmatprep.subr.mxu0 0.0
    %1594 = vmatpush1.msra.mxu0 %v839
    %1595 = vmatprep.subr.mxu0 0.0
    %1596 = vmatpush1.msra.mxu0 %v842
    %1597 = vmatprep.subr.mxu0 0.0
    %1598 = vmatpush1.msra.mxu0 %v845
    %1599 = vmatprep.subr.mxu0 0.0
    %1600 = vmatpush1.msra.mxu0 0.0
    %1601 = vmatprep.subr.mxu0 0.0
    %1602 = vmatpush1.msra.mxu0 0.0
    %1603 = vmatprep.subr.mxu0 0.0
    %1604 = vmatpush1.msra.mxu0 0.0
    %1605 = vmatprep.subr.mxu0 0.0
    %1606 = vmatpush1.msra.mxu0 0.0
    %1607 = vmatprep.subr.mxu0 0.0
    %1608 = vmatpush1.msra.mxu0 0.0
    %1609 = vmatprep.subr.mxu0 0.0
    %1610 = vmatpush1.msra.mxu0 0.0
    %1611 = vmatprep.subr.mxu0 0.0
    %1612 = vmatpush1.msra.mxu0 0.0
    %1613 = vmatprep.subr.mxu0 0.0
    %1614 = vmatpush1.msra.mxu0 0.0
    %1615 = vmatprep.subr.mxu0 0.0
    %1616 = vmatpush1.msra.mxu0 0.0
    %1617 = vmatprep.subr.mxu0 0.0
    %1618 = vmatpush1.msra.mxu0 0.0
    %1619 = vmatprep.subr.mxu0 0.0
    %1620 = vmatpush1.msra.mxu0 0.0
    %1621 = vmatprep.subr.mxu0 0.0
    %1622 = vmatpush1.msra.mxu0 0.0
    %1623 = vmatprep.subr.mxu0 0.0
    %1624 = vmatpush1.msra.mxu0 0.0
    %1625 = vmatprep.subr.mxu0 0.0
    %1626 = vmatpush1.msra.mxu0 0.0
    %1627 = vmatprep.subr.mxu0 0.0
    %1628 = vmatpush1.msra.mxu0 0.0
    %1629 = vmatprep.subr.mxu0 0.0
    %1630 = vmatpush1.msra.mxu0 0.0
    %1631 = vmatprep.mubr.f32.mxu0 0.0
    %1632 = vmatmul.mubr.f32.gmra.mrb[0].mxu0 %v1494
    %v1633 = vpop.f32.mrb[0].mxu0
    %v1634 = vadd.f32 %v1070, %v1633
    %v1635 = vpop.f32.mrb[0].mxu0
    %1636 = vdwg.mxu0
    %v1638 = vrot.slane %v1563, 2
    %v1639 = vrot.slane %v1563, 3
    %v1642 = vadd.f32 %v664, %v1638
    %v1643 = vadd.f32 %v670, %v1639
    %v1644 = vxor.u32 %v1642, 2147483648
    %v1645 = vxor.u32 %v1643, 2147483648
    %v1646 = vmul.f32 %v1644, 1.442695
    %v1647 = vpow.pop %v1646
    %v1648 = vmul.f32 %v1645, 1.442695
    %v1649 = vpow.pop %v1648
    %v1650 = vadd.f32 %v1647, 1.0
    %v1651 = vadd.f32 %v1649, 1.0
    %v1652 = vrcp.pop %v1650
    %v1653 = vmul.f32 1.0, %v1652
    %v1654 = vrcp.pop %v1651
    %v1655 = vmul.f32 1.0, %v1654
    %v1657 = vrot.slane %v1565, 2
    %v1658 = vrot.slane %v1565, 3
    %v1661 = vadd.f32 %v739, %v1657
    %v1662 = vadd.f32 %v745, %v1658
    %v1663 = vxor.u32 %v1661, 2147483648
    %v1664 = vxor.u32 %v1662, 2147483648
    %v1665 = vmul.f32 %v1663, 1.442695
    %v1666 = vpow.pop %v1665
    %v1667 = vmul.f32 %v1664, 1.442695
    %v1668 = vpow.pop %v1667
    %v1669 = vadd.f32 %v1666, 1.0
    %v1670 = vadd.f32 %v1668, 1.0
    %v1671 = vrcp.pop %v1669
    %v1672 = vmul.f32 1.0, %v1671
    %v1673 = vrcp.pop %v1670
    %v1674 = vmul.f32 1.0, %v1673
    %v1676 = vrot.slane %v1634, 2
    %v1677 = vrot.slane %v1634, 3
    %v1680 = vmul.f32 %v1653, %v1676
    %v1681 = vmul.f32 %v1655, %v1677
    %v1682 = vadd.f32 %v741, %v1680
    %v1683 = vadd.f32 %v747, %v1681
    %v1684 = vtanh.pop %v1682
    %v1685 = vtanh.pop %v1683
    %v1686 = vsub.f32 1.0, %v1672
    %v1687 = vsub.f32 1.0, %v1674
    %v1688 = vmul.f32 %v1686, %v1684
    %v1689 = vmul.f32 %v1687, %v1685
    %v1690 = vrot.slane %v1284, 1
    %v1691 = vrot.slane %v1285, 1
    %v1694 = vmul.f32 %v1672, %v1690
    %v1695 = vmul.f32 %v1674, %v1691
    %v1696 = vadd.f32 %v1688, %v1694
    %v1697 = vadd.f32 %v1689, %v1695
    %v1698 = vsel %vm1280, %v1488, %v1483
    %v1699 = vsel %vm1281, %v1489, %v1288
    %v1700 = vsel %vm1280, %v1696, %v1690
    %v1701 = vsel %vm1281, %v1697, %v1691
    %v1704 = vrot.slane %v1698, 1
    %v1705 = vsel %vm1289, %v1699, %v1704
    %1707 = vmatprep.subr.mxu0 %v750
    %1708 = vmatpush1.msra.mxu0 %v749
    %1709 = vmatprep.subr.mxu0 %v753
    %1710 = vmatpush1.msra.mxu0 %v752
    %1711 = vmatprep.subr.mxu0 %v756
    %1712 = vmatpush1.msra.mxu0 %v755
    %1713 = vmatprep.subr.mxu0 %v759
    %1714 = vmatpush1.msra.mxu0 %v758
    %1715 = vmatprep.subr.mxu0 %v762
    %1716 = vmatpush1.msra.mxu0 %v761
    %1717 = vmatprep.subr.mxu0 %v765
    %1718 = vmatpush1.msra.mxu0 %v764
    %1719 = vmatprep.subr.mxu0 %v768
    %1720 = vmatpush1.msra.mxu0 %v767
    %1721 = vmatprep.subr.mxu0 %v771
    %1722 = vmatpush1.msra.mxu0 %v770
    %1723 = vmatprep.subr.mxu0 %v774
    %1724 = vmatpush1.msra.mxu0 %v773
    %1725 = vmatprep.subr.mxu0 %v777
    %1726 = vmatpush1.msra.mxu0 %v776
    %1727 = vmatprep.subr.mxu0 %v780
    %1728 = vmatpush1.msra.mxu0 %v779
    %1729 = vmatprep.subr.mxu0 %v783
    %1730 = vmatpush1.msra.mxu0 %v782
    %1731 = vmatprep.subr.mxu0 %v786
    %1732 = vmatpush1.msra.mxu0 %v785
    %1733 = vmatprep.subr.mxu0 %v789
    %1734 = vmatpush1.msra.mxu0 %v788
    %1735 = vmatprep.subr.mxu0 %v792
    %1736 = vmatpush1.msra.mxu0 %v791
    %1737 = vmatprep.subr.mxu0 %v795
    %1738 = vmatpush1.msra.mxu0 %v794
    %1739 = vmatprep.subr.mxu0 0.0
    %1740 = vmatpush1.msra.mxu0 0.0
    %1741 = vmatprep.subr.mxu0 0.0
    %1742 = vmatpush1.msra.mxu0 0.0
    %1743 = vmatprep.subr.mxu0 0.0
    %1744 = vmatpush1.msra.mxu0 0.0
    %1745 = vmatprep.subr.mxu0 0.0
    %1746 = vmatpush1.msra.mxu0 0.0
    %1747 = vmatprep.subr.mxu0 0.0
    %1748 = vmatpush1.msra.mxu0 0.0
    %1749 = vmatprep.subr.mxu0 0.0
    %1750 = vmatpush1.msra.mxu0 0.0
    %1751 = vmatprep.subr.mxu0 0.0
    %1752 = vmatpush1.msra.mxu0 0.0
    %1753 = vmatprep.subr.mxu0 0.0
    %1754 = vmatpush1.msra.mxu0 0.0
    %1755 = vmatprep.subr.mxu0 0.0
    %1756 = vmatpush1.msra.mxu0 0.0
    %1757 = vmatprep.subr.mxu0 0.0
    %1758 = vmatpush1.msra.mxu0 0.0
    %1759 = vmatprep.subr.mxu0 0.0
    %1760 = vmatpush1.msra.mxu0 0.0
    %1761 = vmatprep.subr.mxu0 0.0
    %1762 = vmatpush1.msra.mxu0 0.0
    %1763 = vmatprep.subr.mxu0 0.0
    %1764 = vmatpush1.msra.mxu0 0.0
    %1765 = vmatprep.subr.mxu0 0.0
    %1766 = vmatpush1.msra.mxu0 0.0
    %1767 = vmatprep.subr.mxu0 0.0
    %1768 = vmatpush1.msra.mxu0 0.0
    %1769 = vmatprep.subr.mxu0 0.0
    %1770 = vmatpush1.msra.mxu0 0.0
    %1771 = vmatprep.mubr.f32.mxu0 0.0
    %1772 = vmatmul.mubr.f32.gmra.mrb[0].mxu0 %v1705
    %v1773 = vpop.f32.mrb[0].mxu0
    %v1774 = vadd.f32 %v851, %v1773
    %v1775 = vpop.f32.mrb[0].mxu0
    %v1776 = vadd.f32 %v855, %v1775
    %1777 = vdwg.mxu0
    %1778 = vmatprep.subr.mxu0 0.0
    %1779 = vmatpush1.msra.mxu0 %v751
    %1780 = vmatprep.subr.mxu0 0.0
    %1781 = vmatpush1.msra.mxu0 %v754
    %1782 = vmatprep.subr.mxu0 0.0
    %1783 = vmatpush1.msra.mxu0 %v757
    %1784 = vmatprep.subr.mxu0 0.0
    %1785 = vmatpush1.msra.mxu0 %v760
    %1786 = vmatprep.subr.mxu0 0.0
    %1787 = vmatpush1.msra.mxu0 %v763
    %1788 = vmatprep.subr.mxu0 0.0
    %1789 = vmatpush1.msra.mxu0 %v766
    %1790 = vmatprep.subr.mxu0 0.0
    %1791 = vmatpush1.msra.mxu0 %v769
    %1792 = vmatprep.subr.mxu0 0.0
    %1793 = vmatpush1.msra.mxu0 %v772
    %1794 = vmatprep.subr.mxu0 0.0
    %1795 = vmatpush1.msra.mxu0 %v775
    %1796 = vmatprep.subr.mxu0 0.0
    %1797 = vmatpush1.msra.mxu0 %v778
    %1798 = vmatprep.subr.mxu0 0.0
    %1799 = vmatpush1.msra.mxu0 %v781
    %1800 = vmatprep.subr.mxu0 0.0
    %1801 = vmatpush1.msra.mxu0 %v784
    %1802 = vmatprep.subr.mxu0 0.0
    %1803 = vmatpush1.msra.mxu0 %v787
    %1804 = vmatprep.subr.mxu0 0.0
    %1805 = vmatpush1.msra.mxu0 %v790
    %1806 = vmatprep.subr.mxu0 0.0
    %1807 = vmatpush1.msra.mxu0 %v793
    %1808 = vmatprep.subr.mxu0 0.0
    %1809 = vmatpush1.msra.mxu0 %v796
    %1810 = vmatprep.subr.mxu0 0.0
    %1811 = vmatpush1.msra.mxu0 0.0
    %1812 = vmatprep.subr.mxu0 0.0
    %1813 = vmatpush1.msra.mxu0 0.0
    %1814 = vmatprep.subr.mxu0 0.0
    %1815 = vmatpush1.msra.mxu0 0.0
    %1816 = vmatprep.subr.mxu0 0.0
    %1817 = vmatpush1.msra.mxu0 0.0
    %1818 = vmatprep.subr.mxu0 0.0
    %1819 = vmatpush1.msra.mxu0 0.0
    %1820 = vmatprep.subr.mxu0 0.0
    %1821 = vmatpush1.msra.mxu0 0.0
    %1822 = vmatprep.subr.mxu0 0.0
    %1823 = vmatpush1.msra.mxu0 0.0
    %1824 = vmatprep.subr.mxu0 0.0
    %1825 = vmatpush1.msra.mxu0 0.0
    %1826 = vmatprep.subr.mxu0 0.0
    %1827 = vmatpush1.msra.mxu0 0.0
    %1828 = vmatprep.subr.mxu0 0.0
    %1829 = vmatpush1.msra.mxu0 0.0
    %1830 = vmatprep.subr.mxu0 0.0
    %1831 = vmatpush1.msra.mxu0 0.0
    %1832 = vmatprep.subr.mxu0 0.0
    %1833 = vmatpush1.msra.mxu0 0.0
    %1834 = vmatprep.subr.mxu0 0.0
    %1835 = vmatpush1.msra.mxu0 0.0
    %1836 = vmatprep.subr.mxu0 0.0
    %1837 = vmatpush1.msra.mxu0 0.0
    %1838 = vmatprep.subr.mxu0 0.0
    %1839 = vmatpush1.msra.mxu0 0.0
    %1840 = vmatprep.subr.mxu0 0.0
    %1841 = vmatpush1.msra.mxu0 0.0
    %1842 = vmatprep.mubr.f32.mxu0 0.0
    %1843 = vmatmul.mubr.f32.gmra.mrb[0].mxu0 %v1705
    %v1844 = vpop.f32.mrb[0].mxu0
    %v1845 = vadd.f32 %v859, %v1844
    %v1846 = vpop.f32.mrb[0].mxu0
    %1847 = vdwg.mxu0
    %v1849 = vrot.slane %v1774, 6
    %v1850 = vrot.slane %v1774, 7
    %v1853 = vadd.f32 %v585, %v1849
    %v1854 = vadd.f32 %v591, %v1850
    %v1855 = vxor.u32 %v1853, 2147483648
    %v1856 = vxor.u32 %v1854, 2147483648
    %v1857 = vmul.f32 %v1855, 1.442695
    %v1858 = vpow.pop %v1857
    %v1859 = vmul.f32 %v1856, 1.442695
    %v1860 = vpow.pop %v1859
    %v1861 = vadd.f32 %v1858, 1.0
    %v1862 = vadd.f32 %v1860, 1.0
    %v1863 = vrcp.pop %v1861
    %v1864 = vmul.f32 1.0, %v1863
    %v1865 = vrcp.pop %v1862
    %v1866 = vmul.f32 1.0, %v1865
    %v1868 = vrot.slane %v1776, 6
    %v1869 = vrot.slane %v1776, 7
    %v1872 = vadd.f32 %v587, %v1868
    %v1873 = vadd.f32 %v593, %v1869
    %v1874 = vxor.u32 %v1872, 2147483648
    %v1875 = vxor.u32 %v1873, 2147483648
    %v1876 = vmul.f32 %v1874, 1.442695
    %v1877 = vpow.pop %v1876
    %v1878 = vmul.f32 %v1875, 1.442695
    %v1879 = vpow.pop %v1878
    %v1880 = vadd.f32 %v1877, 1.0
    %v1881 = vadd.f32 %v1879, 1.0
    %v1882 = vrcp.pop %v1880
    %v1883 = vmul.f32 1.0, %v1882
    %v1884 = vrcp.pop %v1881
    %v1885 = vmul.f32 1.0, %v1884
    %v1887 = vrot.slane %v1845, 6
    %v1888 = vrot.slane %v1845, 7
    %v1891 = vmul.f32 %v1864, %v1887
    %v1892 = vmul.f32 %v1866, %v1888
    %v1893 = vadd.f32 %v662, %v1891
    %v1894 = vadd.f32 %v668, %v1892
    %v1895 = vtanh.pop %v1893
    %v1896 = vtanh.pop %v1894
    %v1897 = vsub.f32 1.0, %v1883
    %v1898 = vsub.f32 1.0, %v1885
    %v1899 = vmul.f32 %v1897, %v1895
    %v1900 = vmul.f32 %v1898, %v1896
    %v1901 = vrot.slane %v1698, 7
    %v1902 = vrot.slane %v1699, 7
    %v1905 = vmul.f32 %v1883, %v1901
    %v1906 = vmul.f32 %v1885, %v1902
    %v1907 = vadd.f32 %v1899, %v1905
    %v1908 = vadd.f32 %v1900, %v1906
    %v1911 = vrot.slane %v1700, 6
    %v1912 = vrot.slane %v1701, 5
    %v1913 = vsel %vm1289, %v1912, %v1911
    %1915 = vmatprep.subr.mxu0 %v799
    %1916 = vmatpush1.msra.mxu0 %v798
    %1917 = vmatprep.subr.mxu0 %v802
    %1918 = vmatpush1.msra.mxu0 %v801
    %1919 = vmatprep.subr.mxu0 %v805
    %1920 = vmatpush1.msra.mxu0 %v804
    %1921 = vmatprep.subr.mxu0 %v808
    %1922 = vmatpush1.msra.mxu0 %v807
    %1923 = vmatprep.subr.mxu0 %v811
    %1924 = vmatpush1.msra.mxu0 %v810
    %1925 = vmatprep.subr.mxu0 %v814
    %1926 = vmatpush1.msra.mxu0 %v813
    %1927 = vmatprep.subr.mxu0 %v817
    %1928 = vmatpush1.msra.mxu0 %v816
    %1929 = vmatprep.subr.mxu0 %v820
    %1930 = vmatpush1.msra.mxu0 %v819
    %1931 = vmatprep.subr.mxu0 %v823
    %1932 = vmatpush1.msra.mxu0 %v822
    %1933 = vmatprep.subr.mxu0 %v826
    %1934 = vmatpush1.msra.mxu0 %v825
    %1935 = vmatprep.subr.mxu0 %v829
    %1936 = vmatpush1.msra.mxu0 %v828
    %1937 = vmatprep.subr.mxu0 %v832
    %1938 = vmatpush1.msra.mxu0 %v831
    %1939 = vmatprep.subr.mxu0 %v835
    %1940 = vmatpush1.msra.mxu0 %v834
    %1941 = vmatprep.subr.mxu0 %v838
    %1942 = vmatpush1.msra.mxu0 %v837
    %1943 = vmatprep.subr.mxu0 %v841
    %1944 = vmatpush1.msra.mxu0 %v840
    %1945 = vmatprep.subr.mxu0 %v844
    %1946 = vmatpush1.msra.mxu0 %v843
    %1947 = vmatprep.subr.mxu0 0.0
    %1948 = vmatpush1.msra.mxu0 0.0
    %1949 = vmatprep.subr.mxu0 0.0
    %1950 = vmatpush1.msra.mxu0 0.0
    %1951 = vmatprep.subr.mxu0 0.0
    %1952 = vmatpush1.msra.mxu0 0.0
    %1953 = vmatprep.subr.mxu0 0.0
    %1954 = vmatpush1.msra.mxu0 0.0
    %1955 = vmatprep.subr.mxu0 0.0
    %1956 = vmatpush1.msra.mxu0 0.0
    %1957 = vmatprep.subr.mxu0 0.0
    %1958 = vmatpush1.msra.mxu0 0.0
    %1959 = vmatprep.subr.mxu0 0.0
    %1960 = vmatpush1.msra.mxu0 0.0
    %1961 = vmatprep.subr.mxu0 0.0
    %1962 = vmatpush1.msra.mxu0 0.0
    %1963 = vmatprep.subr.mxu0 0.0
    %1964 = vmatpush1.msra.mxu0 0.0
    %1965 = vmatprep.subr.mxu0 0.0
    %1966 = vmatpush1.msra.mxu0 0.0
    %1967 = vmatprep.subr.mxu0 0.0
    %1968 = vmatpush1.msra.mxu0 0.0
    %1969 = vmatprep.subr.mxu0 0.0
    %1970 = vmatpush1.msra.mxu0 0.0
    %1971 = vmatprep.subr.mxu0 0.0
    %1972 = vmatpush1.msra.mxu0 0.0
    %1973 = vmatprep.subr.mxu0 0.0
    %1974 = vmatpush1.msra.mxu0 0.0
    %1975 = vmatprep.subr.mxu0 0.0
    %1976 = vmatpush1.msra.mxu0 0.0
    %1977 = vmatprep.subr.mxu0 0.0
    %1978 = vmatpush1.msra.mxu0 0.0
    %1979 = vmatprep.mubr.f32.mxu0 0.0
    %1980 = vmatmul.mubr.f32.gmra.mrb[0].mxu0 %v1913
    %v1981 = vpop.f32.mrb[0].mxu0
    %v1982 = vadd.f32 %v1062, %v1981
    %v1983 = vpop.f32.mrb[0].mxu0
    %v1984 = vadd.f32 %v1066, %v1983
    %1985 = vdwg.mxu0
    %1986 = vmatprep.subr.mxu0 0.0
    %1987 = vmatpush1.msra.mxu0 %v800
    %1988 = vmatprep.subr.mxu0 0.0
    %1989 = vmatpush1.msra.mxu0 %v803
    %1990 = vmatprep.subr.mxu0 0.0
    %1991 = vmatpush1.msra.mxu0 %v806
    %1992 = vmatprep.subr.mxu0 0.0
    %1993 = vmatpush1.msra.mxu0 %v809
    %1994 = vmatprep.subr.mxu0 0.0
    %1995 = vmatpush1.msra.mxu0 %v812
    %1996 = vmatprep.subr.mxu0 0.0
    %1997 = vmatpush1.msra.mxu0 %v815
    %1998 = vmatprep.subr.mxu0 0.0
    %1999 = vmatpush1.msra.mxu0 %v818
    %2000 = vmatprep.subr.mxu0 0.0
    %2001 = vmatpush1.msra.mxu0 %v821
    %2002 = vmatprep.subr.mxu0 0.0
    %2003 = vmatpush1.msra.mxu0 %v824
    %2004 = vmatprep.subr.mxu0 0.0
    %2005 = vmatpush1.msra.mxu0 %v827
    %2006 = vmatprep.subr.mxu0 0.0
    %2007 = vmatpush1.msra.mxu0 %v830
    %2008 = vmatprep.subr.mxu0 0.0
    %2009 = vmatpush1.msra.mxu0 %v833
    %2010 = vmatprep.subr.mxu0 0.0
    %2011 = vmatpush1.msra.mxu0 %v836
    %2012 = vmatprep.subr.mxu0 0.0
    %2013 = vmatpush1.msra.mxu0 %v839
    %2014 = vmatprep.subr.mxu0 0.0
    %2015 = vmatpush1.msra.mxu0 %v842
    %2016 = vmatprep.subr.mxu0 0.0
    %2017 = vmatpush1.msra.mxu0 %v845
    %2018 = vmatprep.subr.mxu0 0.0
    %2019 = vmatpush1.msra.mxu0 0.0
    %2020 = vmatprep.subr.mxu0 0.0
    %2021 = vmatpush1.msra.mxu0 0.0
    %2022 = vmatprep.subr.mxu0 0.0
    %2023 = vmatpush1.msra.mxu0 0.0
    %2024 = vmatprep.subr.mxu0 0.0
    %2025 = vmatpush1.msra.mxu0 0.0
    %2026 = vmatprep.subr.mxu0 0.0
    %2027 = vmatpush1.msra.mxu0 0.0
    %2028 = vmatprep.subr.mxu0 0.0
    %2029 = vmatpush1.msra.mxu0 0.0
    %2030 = vmatprep.subr.mxu0 0.0
    %2031 = vmatpush1.msra.mxu0 0.0
    %2032 = vmatprep.subr.mxu0 0.0
    %2033 = vmatpush1.msra.mxu0 0.0
    %2034 = vmatprep.subr.mxu0 0.0
    %2035 = vmatpush1.msra.mxu0 0.0
    %2036 = vmatprep.subr.mxu0 0.0
    %2037 = vmatpush1.msra.mxu0 0.0
    %2038 = vmatprep.subr.mxu0 0.0
    %2039 = vmatpush1.msra.mxu0 0.0
    %2040 = vmatprep.subr.mxu0 0.0
    %2041 = vmatpush1.msra.mxu0 0.0
    %2042 = vmatprep.subr.mxu0 0.0
    %2043 = vmatpush1.msra.mxu0 0.0
    %2044 = vmatprep.subr.mxu0 0.0
    %2045 = vmatpush1.msra.mxu0 0.0
    %2046 = vmatprep.subr.mxu0 0.0
    %2047 = vmatpush1.msra.mxu0 0.0
    %2048 = vmatprep.subr.mxu0 0.0
    %2049 = vmatpush1.msra.mxu0 0.0
    %2050 = vmatprep.mubr.f32.mxu0 0.0
    %2051 = vmatmul.mubr.f32.gmra.mrb[0].mxu0 %v1913
    %v2052 = vpop.f32.mrb[0].mxu0
    %v2053 = vadd.f32 %v1070, %v2052
    %v2054 = vpop.f32.mrb[0].mxu0
    %2055 = vdwg.mxu0
    %v2057 = vrot.slane %v1982, 3
    %v2058 = vrot.slane %v1982, 4
    %v2061 = vadd.f32 %v664, %v2057
    %v2062 = vadd.f32 %v670, %v2058
    %v2063 = vxor.u32 %v2061, 2147483648
    %v2064 = vxor.u32 %v2062, 2147483648
    %v2065 = vmul.f32 %v2063, 1.442695
    %v2066 = vpow.pop %v2065
    %v2067 = vmul.f32 %v2064, 1.442695
    %v2068 = vpow.pop %v2067
    %v2069 = vadd.f32 %v2066, 1.0
    %v2070 = vadd.f32 %v2068, 1.0
    %v2071 = vrcp.pop %v2069
    %v2072 = vmul.f32 1.0, %v2071
    %v2073 = vrcp.pop %v2070
    %v2074 = vmul.f32 1.0, %v2073
    %v2076 = vrot.slane %v1984, 3
    %v2077 = vrot.slane %v1984, 4
    %v2080 = vadd.f32 %v739, %v2076
    %v2081 = vadd.f32 %v745, %v2077
    %v2082 = vxor.u32 %v2080, 2147483648
    %v2083 = vxor.u32 %v2081, 2147483648
    %v2084 = vmul.f32 %v2082, 1.442695
    %v2085 = vpow.pop %v2084
    %v2086 = vmul.f32 %v2083, 1.442695
    %v2087 = vpow.pop %v2086
    %v2088 = vadd.f32 %v2085, 1.0
    %v2089 = vadd.f32 %v2087, 1.0
    %v2090 = vrcp.pop %v2088
    %v2091 = vmul.f32 1.0, %v2090
    %v2092 = vrcp.pop %v2089
    %v2093 = vmul.f32 1.0, %v2092
    %v2095 = vrot.slane %v2053, 3
    %v2096 = vrot.slane %v2053, 4
    %v2099 = vmul.f32 %v2072, %v2095
    %v2100 = vmul.f32 %v2074, %v2096
    %v2101 = vadd.f32 %v741, %v2099
    %v2102 = vadd.f32 %v747, %v2100
    %v2103 = vtanh.pop %v2101
    %v2104 = vtanh.pop %v2102
    %v2105 = vsub.f32 1.0, %v2091
    %v2106 = vsub.f32 1.0, %v2093
    %v2107 = vmul.f32 %v2105, %v2103
    %v2108 = vmul.f32 %v2106, %v2104
    %v2109 = vrot.slane %v1700, 1
    %v2110 = vrot.slane %v1701, 1
    %v2113 = vmul.f32 %v2091, %v2109
    %v2114 = vmul.f32 %v2093, %v2110
    %v2115 = vadd.f32 %v2107, %v2113
    %v2116 = vadd.f32 %v2108, %v2114
    %v2117 = vsel %vm1280, %v1907, %v1901
    %v2118 = vsel %vm1281, %v1908, %v1902
    %v2119 = vsel %vm1280, %v2115, %v2109
    %v2120 = vsel %vm1281, %v2116, %v2110
    %v2123 = vrot.slane %v2117, 2
    %v2124 = vrot.slane %v2118, 1
    %v2125 = vsel %vm1289, %v2124, %v2123
    %2127 = vmatprep.subr.mxu0 %v750
    %2128 = vmatpush1.msra.mxu0 %v749
    %2129 = vmatprep.subr.mxu0 %v753
    %2130 = vmatpush1.msra.mxu0 %v752
    %2131 = vmatprep.subr.mxu0 %v756
    %2132 = vmatpush1.msra.mxu0 %v755
    %2133 = vmatprep.subr.mxu0 %v759
    %2134 = vmatpush1.msra.mxu0 %v758
    %2135 = vmatprep.subr.mxu0 %v762
    %2136 = vmatpush1.msra.mxu0 %v761
    %2137 = vmatprep.subr.mxu0 %v765
    %2138 = vmatpush1.msra.mxu0 %v764
    %2139 = vmatprep.subr.mxu0 %v768
    %2140 = vmatpush1.msra.mxu0 %v767
    %2141 = vmatprep.subr.mxu0 %v771
    %2142 = vmatpush1.msra.mxu0 %v770
    %2143 = vmatprep.subr.mxu0 %v774
    %2144 = vmatpush1.msra.mxu0 %v773
    %2145 = vmatprep.subr.mxu0 %v777
    %2146 = vmatpush1.msra.mxu0 %v776
    %2147 = vmatprep.subr.mxu0 %v780
    %2148 = vmatpush1.msra.mxu0 %v779
    %2149 = vmatprep.subr.mxu0 %v783
    %2150 = vmatpush1.msra.mxu0 %v782
    %2151 = vmatprep.subr.mxu0 %v786
    %2152 = vmatpush1.msra.mxu0 %v785
    %2153 = vmatprep.subr.mxu0 %v789
    %2154 = vmatpush1.msra.mxu0 %v788
    %2155 = vmatprep.subr.mxu0 %v792
    %2156 = vmatpush1.msra.mxu0 %v791
    %2157 = vmatprep.subr.mxu0 %v795
    %2158 = vmatpush1.msra.mxu0 %v794
    %2159 = vmatprep.subr.mxu0 0.0
    %2160 = vmatpush1.msra.mxu0 0.0
    %2161 = vmatprep.subr.mxu0 0.0
    %2162 = vmatpush1.msra.mxu0 0.0
    %2163 = vmatprep.subr.mxu0 0.0
    %2164 = vmatpush1.msra.mxu0 0.0
    %2165 = vmatprep.subr.mxu0 0.0
    %2166 = vmatpush1.msra.mxu0 0.0
    %2167 = vmatprep.subr.mxu0 0.0
    %2168 = vmatpush1.msra.mxu0 0.0
    %2169 = vmatprep.subr.mxu0 0.0
    %2170 = vmatpush1.msra.mxu0 0.0
    %2171 = vmatprep.subr.mxu0 0.0
    %2172 = vmatpush1.msra.mxu0 0.0
    %2173 = vmatprep.subr.mxu0 0.0
    %2174 = vmatpush1.msra.mxu0 0.0
    %2175 = vmatprep.subr.mxu0 0.0
    %2176 = vmatpush1.msra.mxu0 0.0
    %2177 = vmatprep.subr.mxu0 0.0
    %2178 = vmatpush1.msra.mxu0 0.0
    %2179 = vmatprep.subr.mxu0 0.0
    %2180 = vmatpush1.msra.mxu0 0.0
    %2181 = vmatprep.subr.mxu0 0.0
    %2182 = vmatpush1.msra.mxu0 0.0
    %2183 = vmatprep.subr.mxu0 0.0
    %2184 = vmatpush1.msra.mxu0 0.0
    %2185 = vmatprep.subr.mxu0 0.0
    %2186 = vmatpush1.msra.mxu0 0.0
    %2187 = vmatprep.subr.mxu0 0.0
    %2188 = vmatpush1.msra.mxu0 0.0
    %2189 = vmatprep.subr.mxu0 0.0
    %2190 = vmatpush1.msra.mxu0 0.0
    %2191 = vmatprep.mubr.f32.mxu0 0.0
    %2192 = vmatmul.mubr.f32.gmra.mrb[0].mxu0 %v2125
    %v2193 = vpop.f32.mrb[0].mxu0
    %v2194 = vadd.f32 %v851, %v2193
    %v2195 = vpop.f32.mrb[0].mxu0
    %v2196 = vadd.f32 %v855, %v2195
    %2197 = vdwg.mxu0
    %2198 = vmatprep.subr.mxu0 0.0
    %2199 = vmatpush1.msra.mxu0 %v751
    %2200 = vmatprep.subr.mxu0 0.0
    %2201 = vmatpush1.msra.mxu0 %v754
    %2202 = vmatprep.subr.mxu0 0.0
    %2203 = vmatpush1.msra.mxu0 %v757
    %2204 = vmatprep.subr.mxu0 0.0
    %2205 = vmatpush1.msra.mxu0 %v760
    %2206 = vmatprep.subr.mxu0 0.0
    %2207 = vmatpush1.msra.mxu0 %v763
    %2208 = vmatprep.subr.mxu0 0.0
    %2209 = vmatpush1.msra.mxu0 %v766
    %2210 = vmatprep.subr.mxu0 0.0
    %2211 = vmatpush1.msra.mxu0 %v769
    %2212 = vmatprep.subr.mxu0 0.0
    %2213 = vmatpush1.msra.mxu0 %v772
    %2214 = vmatprep.subr.mxu0 0.0
    %2215 = vmatpush1.msra.mxu0 %v775
    %2216 = vmatprep.subr.mxu0 0.0
    %2217 = vmatpush1.msra.mxu0 %v778
    %2218 = vmatprep.subr.mxu0 0.0
    %2219 = vmatpush1.msra.mxu0 %v781
    %2220 = vmatprep.subr.mxu0 0.0
    %2221 = vmatpush1.msra.mxu0 %v784
    %2222 = vmatprep.subr.mxu0 0.0
    %2223 = vmatpush1.msra.mxu0 %v787
    %2224 = vmatprep.subr.mxu0 0.0
    %2225 = vmatpush1.msra.mxu0 %v790
    %2226 = vmatprep.subr.mxu0 0.0
    %2227 = vmatpush1.msra.mxu0 %v793
    %2228 = vmatprep.subr.mxu0 0.0
    %2229 = vmatpush1.msra.mxu0 %v796
    %2230 = vmatprep.subr.mxu0 0.0
    %2231 = vmatpush1.msra.mxu0 0.0
    %2232 = vmatprep.subr.mxu0 0.0
    %2233 = vmatpush1.msra.mxu0 0.0
    %2234 = vmatprep.subr.mxu0 0.0
    %2235 = vmatpush1.msra.mxu0 0.0
    %2236 = vmatprep.subr.mxu0 0.0
    %2237 = vmatpush1.msra.mxu0 0.0
    %2238 = vmatprep.subr.mxu0 0.0
    %2239 = vmatpush1.msra.mxu0 0.0
    %2240 = vmatprep.subr.mxu0 0.0
    %2241 = vmatpush1.msra.mxu0 0.0
    %2242 = vmatprep.subr.mxu0 0.0
    %2243 = vmatpush1.msra.mxu0 0.0
    %2244 = vmatprep.subr.mxu0 0.0
    %2245 = vmatpush1.msra.mxu0 0.0
    %2246 = vmatprep.subr.mxu0 0.0
    %2247 = vmatpush1.msra.mxu0 0.0
    %2248 = vmatprep.subr.mxu0 0.0
    %2249 = vmatpush1.msra.mxu0 0.0
    %2250 = vmatprep.subr.mxu0 0.0
    %2251 = vmatpush1.msra.mxu0 0.0
    %2252 = vmatprep.subr.mxu0 0.0
    %2253 = vmatpush1.msra.mxu0 0.0
    %2254 = vmatprep.subr.mxu0 0.0
    %2255 = vmatpush1.msra.mxu0 0.0
    %2256 = vmatprep.subr.mxu0 0.0
    %2257 = vmatpush1.msra.mxu0 0.0
    %2258 = vmatprep.subr.mxu0 0.0
    %2259 = vmatpush1.msra.mxu0 0.0
    %2260 = vmatprep.subr.mxu0 0.0
    %2261 = vmatpush1.msra.mxu0 0.0
    %2262 = vmatprep.mubr.f32.mxu0 0.0
    %2263 = vmatmul.mubr.f32.gmra.mrb[0].mxu0 %v2125
    %v2264 = vpop.f32.mrb[0].mxu0
    %v2265 = vadd.f32 %v859, %v2264
    %v2266 = vpop.f32.mrb[0].mxu0
    %2267 = vdwg.mxu0
    %v2269 = vrot.slane %v2194, 5
    %v2270 = vrot.slane %v2194, 6
    %v2273 = vadd.f32 %v585, %v2269
    %v2274 = vadd.f32 %v591, %v2270
    %v2275 = vxor.u32 %v2273, 2147483648
    %v2276 = vxor.u32 %v2274, 2147483648
    %v2277 = vmul.f32 %v2275, 1.442695
    %v2278 = vpow.pop %v2277
    %v2279 = vmul.f32 %v2276, 1.442695
    %v2280 = vpow.pop %v2279
    %v2281 = vadd.f32 %v2278, 1.0
    %v2282 = vadd.f32 %v2280, 1.0
    %v2283 = vrcp.pop %v2281
    %v2284 = vmul.f32 1.0, %v2283
    %v2285 = vrcp.pop %v2282
    %v2286 = vmul.f32 1.0, %v2285
    %v2288 = vrot.slane %v2196, 5
    %v2289 = vrot.slane %v2196, 6
    %v2292 = vadd.f32 %v587, %v2288
    %v2293 = vadd.f32 %v593, %v2289
    %v2294 = vxor.u32 %v2292, 2147483648
    %v2295 = vxor.u32 %v2293, 2147483648
    %v2296 = vmul.f32 %v2294, 1.442695
    %v2297 = vpow.pop %v2296
    %v2298 = vmul.f32 %v2295, 1.442695
    %v2299 = vpow.pop %v2298
    %v2300 = vadd.f32 %v2297, 1.0
    %v2301 = vadd.f32 %v2299, 1.0
    %v2302 = vrcp.pop %v2300
    %v2303 = vmul.f32 1.0, %v2302
    %v2304 = vrcp.pop %v2301
    %v2305 = vmul.f32 1.0, %v2304
    %v2307 = vrot.slane %v2265, 5
    %v2308 = vrot.slane %v2265, 6
    %v2311 = vmul.f32 %v2284, %v2307
    %v2312 = vmul.f32 %v2286, %v2308
    %v2313 = vadd.f32 %v662, %v2311
    %v2314 = vadd.f32 %v668, %v2312
    %v2315 = vtanh.pop %v2313
    %v2316 = vtanh.pop %v2314
    %v2317 = vsub.f32 1.0, %v2303
    %v2318 = vsub.f32 1.0, %v2305
    %v2319 = vmul.f32 %v2317, %v2315
    %v2320 = vmul.f32 %v2318, %v2316
    %v2321 = vrot.slane %v2117, 7
    %v2322 = vrot.slane %v2118, 7
    %v2325 = vmul.f32 %v2303, %v2321
    %v2326 = vmul.f32 %v2305, %v2322
    %v2327 = vadd.f32 %v2319, %v2325
    %v2328 = vadd.f32 %v2320, %v2326
    %v2331 = vrot.slane %v2119, 5
    %v2332 = vrot.slane %v2120, 4
    %v2333 = vsel %vm1289, %v2332, %v2331
    %2335 = vmatprep.subr.mxu0 %v799
    %2336 = vmatpush1.msra.mxu0 %v798
    %2337 = vmatprep.subr.mxu0 %v802
    %2338 = vmatpush1.msra.mxu0 %v801
    %2339 = vmatprep.subr.mxu0 %v805
    %2340 = vmatpush1.msra.mxu0 %v804
    %2341 = vmatprep.subr.mxu0 %v808
    %2342 = vmatpush1.msra.mxu0 %v807
    %2343 = vmatprep.subr.mxu0 %v811
    %2344 = vmatpush1.msra.mxu0 %v810
    %2345 = vmatprep.subr.mxu0 %v814
    %2346 = vmatpush1.msra.mxu0 %v813
    %2347 = vmatprep.subr.mxu0 %v817
    %2348 = vmatpush1.msra.mxu0 %v816
    %2349 = vmatprep.subr.mxu0 %v820
    %2350 = vmatpush1.msra.mxu0 %v819
    %2351 = vmatprep.subr.mxu0 %v823
    %2352 = vmatpush1.msra.mxu0 %v822
    %2353 = vmatprep.subr.mxu0 %v826
    %2354 = vmatpush1.msra.mxu0 %v825
    %2355 = vmatprep.subr.mxu0 %v829
    %2356 = vmatpush1.msra.mxu0 %v828
    %2357 = vmatprep.subr.mxu0 %v832
    %2358 = vmatpush1.msra.mxu0 %v831
    %2359 = vmatprep.subr.mxu0 %v835
    %2360 = vmatpush1.msra.mxu0 %v834
    %2361 = vmatprep.subr.mxu0 %v838
    %2362 = vmatpush1.msra.mxu0 %v837
    %2363 = vmatprep.subr.mxu0 %v841
    %2364 = vmatpush1.msra.mxu0 %v840
    %2365 = vmatprep.subr.mxu0 %v844
    %2366 = vmatpush1.msra.mxu0 %v843
    %2367 = vmatprep.subr.mxu0 0.0
    %2368 = vmatpush1.msra.mxu0 0.0
    %2369 = vmatprep.subr.mxu0 0.0
    %2370 = vmatpush1.msra.mxu0 0.0
    %2371 = vmatprep.subr.mxu0 0.0
    %2372 = vmatpush1.msra.mxu0 0.0
    %2373 = vmatprep.subr.mxu0 0.0
    %2374 = vmatpush1.msra.mxu0 0.0
    %2375 = vmatprep.subr.mxu0 0.0
    %2376 = vmatpush1.msra.mxu0 0.0
    %2377 = vmatprep.subr.mxu0 0.0
    %2378 = vmatpush1.msra.mxu0 0.0
    %2379 = vmatprep.subr.mxu0 0.0
    %2380 = vmatpush1.msra.mxu0 0.0
    %2381 = vmatprep.subr.mxu0 0.0
    %2382 = vmatpush1.msra.mxu0 0.0
    %2383 = vmatprep.subr.mxu0 0.0
    %2384 = vmatpush1.msra.mxu0 0.0
    %2385 = vmatprep.subr.mxu0 0.0
    %2386 = vmatpush1.msra.mxu0 0.0
    %2387 = vmatprep.subr.mxu0 0.0
    %2388 = vmatpush1.msra.mxu0 0.0
    %2389 = vmatprep.subr.mxu0 0.0
    %2390 = vmatpush1.msra.mxu0 0.0
    %2391 = vmatprep.subr.mxu0 0.0
    %2392 = vmatpush1.msra.mxu0 0.0
    %2393 = vmatprep.subr.mxu0 0.0
    %2394 = vmatpush1.msra.mxu0 0.0
    %2395 = vmatprep.subr.mxu0 0.0
    %2396 = vmatpush1.msra.mxu0 0.0
    %2397 = vmatprep.subr.mxu0 0.0
    %2398 = vmatpush1.msra.mxu0 0.0
    %2399 = vmatprep.mubr.f32.mxu0 0.0
    %2400 = vmatmul.mubr.f32.gmra.mrb[0].mxu0 %v2333
    %v2401 = vpop.f32.mrb[0].mxu0
    %v2402 = vadd.f32 %v1062, %v2401
    %v2403 = vpop.f32.mrb[0].mxu0
    %v2404 = vadd.f32 %v1066, %v2403
    %2405 = vdwg.mxu0
    %2406 = vmatprep.subr.mxu0 0.0
    %2407 = vmatpush1.msra.mxu0 %v800
    %2408 = vmatprep.subr.mxu0 0.0
    %2409 = vmatpush1.msra.mxu0 %v803
    %2410 = vmatprep.subr.mxu0 0.0
    %2411 = vmatpush1.msra.mxu0 %v806
    %2412 = vmatprep.subr.mxu0 0.0
    %2413 = vmatpush1.msra.mxu0 %v809
    %2414 = vmatprep.subr.mxu0 0.0
    %2415 = vmatpush1.msra.mxu0 %v812
    %2416 = vmatprep.subr.mxu0 0.0
    %2417 = vmatpush1.msra.mxu0 %v815
    %2418 = vmatprep.subr.mxu0 0.0
    %2419 = vmatpush1.msra.mxu0 %v818
    %2420 = vmatprep.subr.mxu0 0.0
    %2421 = vmatpush1.msra.mxu0 %v821
    %2422 = vmatprep.subr.mxu0 0.0
    %2423 = vmatpush1.msra.mxu0 %v824
    %2424 = vmatprep.subr.mxu0 0.0
    %2425 = vmatpush1.msra.mxu0 %v827
    %2426 = vmatprep.subr.mxu0 0.0
    %2427 = vmatpush1.msra.mxu0 %v830
    %2428 = vmatprep.subr.mxu0 0.0
    %2429 = vmatpush1.msra.mxu0 %v833
    %2430 = vmatprep.subr.mxu0 0.0
    %2431 = vmatpush1.msra.mxu0 %v836
    %2432 = vmatprep.subr.mxu0 0.0
    %2433 = vmatpush1.msra.mxu0 %v839
    %2434 = vmatprep.subr.mxu0 0.0
    %2435 = vmatpush1.msra.mxu0 %v842
    %2436 = vmatprep.subr.mxu0 0.0
    %2437 = vmatpush1.msra.mxu0 %v845
    %2438 = vmatprep.subr.mxu0 0.0
    %2439 = vmatpush1.msra.mxu0 0.0
    %2440 = vmatprep.subr.mxu0 0.0
    %2441 = vmatpush1.msra.mxu0 0.0
    %2442 = vmatprep.subr.mxu0 0.0
    %2443 = vmatpush1.msra.mxu0 0.0
    %2444 = vmatprep.subr.mxu0 0.0
    %2445 = vmatpush1.msra.mxu0 0.0
    %2446 = vmatprep.subr.mxu0 0.0
    %2447 = vmatpush1.msra.mxu0 0.0
    %2448 = vmatprep.subr.mxu0 0.0
    %2449 = vmatpush1.msra.mxu0 0.0
    %2450 = vmatprep.subr.mxu0 0.0
    %2451 = vmatpush1.msra.mxu0 0.0
    %2452 = vmatprep.subr.mxu0 0.0
    %2453 = vmatpush1.msra.mxu0 0.0
    %2454 = vmatprep.subr.mxu0 0.0
    %2455 = vmatpush1.msra.mxu0 0.0
    %2456 = vmatprep.subr.mxu0 0.0
    %2457 = vmatpush1.msra.mxu0 0.0
    %2458 = vmatprep.subr.mxu0 0.0
    %2459 = vmatpush1.msra.mxu0 0.0
    %2460 = vmatprep.subr.mxu0 0.0
    %2461 = vmatpush1.msra.mxu0 0.0
    %2462 = vmatprep.subr.mxu0 0.0
    %2463 = vmatpush1.msra.mxu0 0.0
    %2464 = vmatprep.subr.mxu0 0.0
    %2465 = vmatpush1.msra.mxu0 0.0
    %2466 = vmatprep.subr.mxu0 0.0
    %2467 = vmatpush1.msra.mxu0 0.0
    %2468 = vmatprep.subr.mxu0 0.0
    %2469 = vmatpush1.msra.mxu0 0.0
    %2470 = vmatprep.mubr.f32.mxu0 0.0
    %2471 = vmatmul.mubr.f32.gmra.mrb[0].mxu0 %v2333
    %v2472 = vpop.f32.mrb[0].mxu0
    %v2473 = vadd.f32 %v1070, %v2472
    %v2474 = vpop.f32.mrb[0].mxu0
    %2475 = vdwg.mxu0
    %v2477 = vrot.slane %v2402, 4
    %v2478 = vrot.slane %v2402, 5
    %v2481 = vadd.f32 %v664, %v2477
    %v2482 = vadd.f32 %v670, %v2478
    %v2483 = vxor.u32 %v2481, 2147483648
    %v2484 = vxor.u32 %v2482, 2147483648
    %v2485 = vmul.f32 %v2483, 1.442695
    %v2486 = vpow.pop %v2485
    %v2487 = vmul.f32 %v2484, 1.442695
    %v2488 = vpow.pop %v2487
    %v2489 = vadd.f32 %v2486, 1.0
    %v2490 = vadd.f32 %v2488, 1.0
    %v2491 = vrcp.pop %v2489
    %v2492 = vmul.f32 1.0, %v2491
    %v2493 = vrcp.pop %v2490
    %v2494 = vmul.f32 1.0, %v2493
    %v2496 = vrot.slane %v2404, 4
    %v2497 = vrot.slane %v2404, 5
    %v2500 = vadd.f32 %v739, %v2496
    %v2501 = vadd.f32 %v745, %v2497
    %v2502 = vxor.u32 %v2500, 2147483648
    %v2503 = vxor.u32 %v2501, 2147483648
    %v2504 = vmul.f32 %v2502, 1.442695
    %v2505 = vpow.pop %v2504
    %v2506 = vmul.f32 %v2503, 1.442695
    %v2507 = vpow.pop %v2506
    %v2508 = vadd.f32 %v2505, 1.0
    %v2509 = vadd.f32 %v2507, 1.0
    %v2510 = vrcp.pop %v2508
    %v2511 = vmul.f32 1.0, %v2510
    %v2512 = vrcp.pop %v2509
    %v2513 = vmul.f32 1.0, %v2512
    %v2515 = vrot.slane %v2473, 4
    %v2516 = vrot.slane %v2473, 5
    %v2519 = vmul.f32 %v2492, %v2515
    %v2520 = vmul.f32 %v2494, %v2516
    %v2521 = vadd.f32 %v741, %v2519
    %v2522 = vadd.f32 %v747, %v2520
    %v2523 = vtanh.pop %v2521
    %v2524 = vtanh.pop %v2522
    %v2525 = vsub.f32 1.0, %v2511
    %v2526 = vsub.f32 1.0, %v2513
    %v2527 = vmul.f32 %v2525, %v2523
    %v2528 = vmul.f32 %v2526, %v2524
    %v2529 = vrot.slane %v2119, 1
    %v2530 = vrot.slane %v2120, 1
    %v2533 = vmul.f32 %v2511, %v2529
    %v2534 = vmul.f32 %v2513, %v2530
    %v2535 = vadd.f32 %v2527, %v2533
    %v2536 = vadd.f32 %v2528, %v2534
    %v2537 = vsel %vm1280, %v2327, %v2321
    %v2538 = vsel %vm1281, %v2328, %v2322
    %v2539 = vsel %vm1280, %v2535, %v2529
    %v2540 = vsel %vm1281, %v2536, %v2530
    %v2543 = vrot.slane %v2537, 3
    %v2544 = vrot.slane %v2538, 2
    %v2545 = vsel %vm1289, %v2544, %v2543
    %2547 = vmatprep.subr.mxu0 %v750
    %2548 = vmatpush1.msra.mxu0 %v749
    %2549 = vmatprep.subr.mxu0 %v753
    %2550 = vmatpush1.msra.mxu0 %v752
    %2551 = vmatprep.subr.mxu0 %v756
    %2552 = vmatpush1.msra.mxu0 %v755
    %2553 = vmatprep.subr.mxu0 %v759
    %2554 = vmatpush1.msra.mxu0 %v758
    %2555 = vmatprep.subr.mxu0 %v762
    %2556 = vmatpush1.msra.mxu0 %v761
    %2557 = vmatprep.subr.mxu0 %v765
    %2558 = vmatpush1.msra.mxu0 %v764
    %2559 = vmatprep.subr.mxu0 %v768
    %2560 = vmatpush1.msra.mxu0 %v767
    %2561 = vmatprep.subr.mxu0 %v771
    %2562 = vmatpush1.msra.mxu0 %v770
    %2563 = vmatprep.subr.mxu0 %v774
    %2564 = vmatpush1.msra.mxu0 %v773
    %2565 = vmatprep.subr.mxu0 %v777
    %2566 = vmatpush1.msra.mxu0 %v776
    %2567 = vmatprep.subr.mxu0 %v780
    %2568 = vmatpush1.msra.mxu0 %v779
    %2569 = vmatprep.subr.mxu0 %v783
    %2570 = vmatpush1.msra.mxu0 %v782
    %2571 = vmatprep.subr.mxu0 %v786
    %2572 = vmatpush1.msra.mxu0 %v785
    %2573 = vmatprep.subr.mxu0 %v789
    %2574 = vmatpush1.msra.mxu0 %v788
    %2575 = vmatprep.subr.mxu0 %v792
    %2576 = vmatpush1.msra.mxu0 %v791
    %2577 = vmatprep.subr.mxu0 %v795
    %2578 = vmatpush1.msra.mxu0 %v794
    %2579 = vmatprep.subr.mxu0 0.0
    %2580 = vmatpush1.msra.mxu0 0.0
    %2581 = vmatprep.subr.mxu0 0.0
    %2582 = vmatpush1.msra.mxu0 0.0
    %2583 = vmatprep.subr.mxu0 0.0
    %2584 = vmatpush1.msra.mxu0 0.0
    %2585 = vmatprep.subr.mxu0 0.0
    %2586 = vmatpush1.msra.mxu0 0.0
    %2587 = vmatprep.subr.mxu0 0.0
    %2588 = vmatpush1.msra.mxu0 0.0
    %2589 = vmatprep.subr.mxu0 0.0
    %2590 = vmatpush1.msra.mxu0 0.0
    %2591 = vmatprep.subr.mxu0 0.0
    %2592 = vmatpush1.msra.mxu0 0.0
    %2593 = vmatprep.subr.mxu0 0.0
    %2594 = vmatpush1.msra.mxu0 0.0
    %2595 = vmatprep.subr.mxu0 0.0
    %2596 = vmatpush1.msra.mxu0 0.0
    %2597 = vmatprep.subr.mxu0 0.0
    %2598 = vmatpush1.msra.mxu0 0.0
    %2599 = vmatprep.subr.mxu0 0.0
    %2600 = vmatpush1.msra.mxu0 0.0
    %2601 = vmatprep.subr.mxu0 0.0
    %2602 = vmatpush1.msra.mxu0 0.0
    %2603 = vmatprep.subr.mxu0 0.0
    %2604 = vmatpush1.msra.mxu0 0.0
    %2605 = vmatprep.subr.mxu0 0.0
    %2606 = vmatpush1.msra.mxu0 0.0
    %2607 = vmatprep.subr.mxu0 0.0
    %2608 = vmatpush1.msra.mxu0 0.0
    %2609 = vmatprep.subr.mxu0 0.0
    %2610 = vmatpush1.msra.mxu0 0.0
    %2611 = vmatprep.mubr.f32.mxu0 0.0
    %2612 = vmatmul.mubr.f32.gmra.mrb[0].mxu0 %v2545
    %v2613 = vpop.f32.mrb[0].mxu0
    %v2614 = vadd.f32 %v851, %v2613
    %v2615 = vpop.f32.mrb[0].mxu0
    %v2616 = vadd.f32 %v855, %v2615
    %2617 = vdwg.mxu0
    %2618 = vmatprep.subr.mxu0 0.0
    %2619 = vmatpush1.msra.mxu0 %v751
    %2620 = vmatprep.subr.mxu0 0.0
    %2621 = vmatpush1.msra.mxu0 %v754
    %2622 = vmatprep.subr.mxu0 0.0
    %2623 = vmatpush1.msra.mxu0 %v757
    %2624 = vmatprep.subr.mxu0 0.0
    %2625 = vmatpush1.msra.mxu0 %v760
    %2626 = vmatprep.subr.mxu0 0.0
    %2627 = vmatpush1.msra.mxu0 %v763
    %2628 = vmatprep.subr.mxu0 0.0
    %2629 = vmatpush1.msra.mxu0 %v766
    %2630 = vmatprep.subr.mxu0 0.0
    %2631 = vmatpush1.msra.mxu0 %v769
    %2632 = vmatprep.subr.mxu0 0.0
    %2633 = vmatpush1.msra.mxu0 %v772
    %2634 = vmatprep.subr.mxu0 0.0
    %2635 = vmatpush1.msra.mxu0 %v775
    %2636 = vmatprep.subr.mxu0 0.0
    %2637 = vmatpush1.msra.mxu0 %v778
    %2638 = vmatprep.subr.mxu0 0.0
    %2639 = vmatpush1.msra.mxu0 %v781
    %2640 = vmatprep.subr.mxu0 0.0
    %2641 = vmatpush1.msra.mxu0 %v784
    %2642 = vmatprep.subr.mxu0 0.0
    %2643 = vmatpush1.msra.mxu0 %v787
    %2644 = vmatprep.subr.mxu0 0.0
    %2645 = vmatpush1.msra.mxu0 %v790
    %2646 = vmatprep.subr.mxu0 0.0
    %2647 = vmatpush1.msra.mxu0 %v793
    %2648 = vmatprep.subr.mxu0 0.0
    %2649 = vmatpush1.msra.mxu0 %v796
    %2650 = vmatprep.subr.mxu0 0.0
    %2651 = vmatpush1.msra.mxu0 0.0
    %2652 = vmatprep.subr.mxu0 0.0
    %2653 = vmatpush1.msra.mxu0 0.0
    %2654 = vmatprep.subr.mxu0 0.0
    %2655 = vmatpush1.msra.mxu0 0.0
    %2656 = vmatprep.subr.mxu0 0.0
    %2657 = vmatpush1.msra.mxu0 0.0
    %2658 = vmatprep.subr.mxu0 0.0
    %2659 = vmatpush1.msra.mxu0 0.0
    %2660 = vmatprep.subr.mxu0 0.0
    %2661 = vmatpush1.msra.mxu0 0.0
    %2662 = vmatprep.subr.mxu0 0.0
    %2663 = vmatpush1.msra.mxu0 0.0
    %2664 = vmatprep.subr.mxu0 0.0
    %2665 = vmatpush1.msra.mxu0 0.0
    %2666 = vmatprep.subr.mxu0 0.0
    %2667 = vmatpush1.msra.mxu0 0.0
    %2668 = vmatprep.subr.mxu0 0.0
    %2669 = vmatpush1.msra.mxu0 0.0
    %2670 = vmatprep.subr.mxu0 0.0
    %2671 = vmatpush1.msra.mxu0 0.0
    %2672 = vmatprep.subr.mxu0 0.0
    %2673 = vmatpush1.msra.mxu0 0.0
    %2674 = vmatprep.subr.mxu0 0.0
    %2675 = vmatpush1.msra.mxu0 0.0
    %2676 = vmatprep.subr.mxu0 0.0
    %2677 = vmatpush1.msra.mxu0 0.0
    %2678 = vmatprep.subr.mxu0 0.0
    %2679 = vmatpush1.msra.mxu0 0.0
    %2680 = vmatprep.subr.mxu0 0.0
    %2681 = vmatpush1.msra.mxu0 0.0
    %2682 = vmatprep.mubr.f32.mxu0 0.0
    %2683 = vmatmul.mubr.f32.gmra.mrb[0].mxu0 %v2545
    %v2684 = vpop.f32.mrb[0].mxu0
    %v2685 = vadd.f32 %v859, %v2684
    %v2686 = vpop.f32.mrb[0].mxu0
    %2687 = vdwg.mxu0
    %v2689 = vrot.slane %v2614, 4
    %v2690 = vrot.slane %v2614, 5
    %v2693 = vadd.f32 %v585, %v2689
    %v2694 = vadd.f32 %v591, %v2690
    %v2695 = vxor.u32 %v2693, 2147483648
    %v2696 = vxor.u32 %v2694, 2147483648
    %v2697 = vmul.f32 %v2695, 1.442695
    %v2698 = vpow.pop %v2697
    %v2699 = vmul.f32 %v2696, 1.442695
    %v2700 = vpow.pop %v2699
    %v2701 = vadd.f32 %v2698, 1.0
    %v2702 = vadd.f32 %v2700, 1.0
    %v2703 = vrcp.pop %v2701
    %v2704 = vmul.f32 1.0, %v2703
    %v2705 = vrcp.pop %v2702
    %v2706 = vmul.f32 1.0, %v2705
    %v2708 = vrot.slane %v2616, 4
    %v2709 = vrot.slane %v2616, 5
    %v2712 = vadd.f32 %v587, %v2708
    %v2713 = vadd.f32 %v593, %v2709
    %v2714 = vxor.u32 %v2712, 2147483648
    %v2715 = vxor.u32 %v2713, 2147483648
    %v2716 = vmul.f32 %v2714, 1.442695
    %v2717 = vpow.pop %v2716
    %v2718 = vmul.f32 %v2715, 1.442695
    %v2719 = vpow.pop %v2718
    %v2720 = vadd.f32 %v2717, 1.0
    %v2721 = vadd.f32 %v2719, 1.0
    %v2722 = vrcp.pop %v2720
    %v2723 = vmul.f32 1.0, %v2722
    %v2724 = vrcp.pop %v2721
    %v2725 = vmul.f32 1.0, %v2724
    %v2727 = vrot.slane %v2685, 4
    %v2728 = vrot.slane %v2685, 5
    %v2731 = vmul.f32 %v2704, %v2727
    %v2732 = vmul.f32 %v2706, %v2728
    %v2733 = vadd.f32 %v662, %v2731
    %v2734 = vadd.f32 %v668, %v2732
    %v2735 = vtanh.pop %v2733
    %v2736 = vtanh.pop %v2734
    %v2737 = vsub.f32 1.0, %v2723
    %v2738 = vsub.f32 1.0, %v2725
    %v2739 = vmul.f32 %v2737, %v2735
    %v2740 = vmul.f32 %v2738, %v2736
    %v2741 = vrot.slane %v2537, 7
    %v2742 = vrot.slane %v2538, 7
    %v2745 = vmul.f32 %v2723, %v2741
    %v2746 = vmul.f32 %v2725, %v2742
    %v2747 = vadd.f32 %v2739, %v2745
    %v2748 = vadd.f32 %v2740, %v2746
    %v2751 = vrot.slane %v2539, 4
    %v2752 = vrot.slane %v2540, 3
    %v2753 = vsel %vm1289, %v2752, %v2751
    %2755 = vmatprep.subr.mxu0 %v799
    %2756 = vmatpush1.msra.mxu0 %v798
    %2757 = vmatprep.subr.mxu0 %v802
    %2758 = vmatpush1.msra.mxu0 %v801
    %2759 = vmatprep.subr.mxu0 %v805
    %2760 = vmatpush1.msra.mxu0 %v804
    %2761 = vmatprep.subr.mxu0 %v808
    %2762 = vmatpush1.msra.mxu0 %v807
    %2763 = vmatprep.subr.mxu0 %v811
    %2764 = vmatpush1.msra.mxu0 %v810
    %2765 = vmatprep.subr.mxu0 %v814
    %2766 = vmatpush1.msra.mxu0 %v813
    %2767 = vmatprep.subr.mxu0 %v817
    %2768 = vmatpush1.msra.mxu0 %v816
    %2769 = vmatprep.subr.mxu0 %v820
    %2770 = vmatpush1.msra.mxu0 %v819
    %2771 = vmatprep.subr.mxu0 %v823
    %2772 = vmatpush1.msra.mxu0 %v822
    %2773 = vmatprep.subr.mxu0 %v826
    %2774 = vmatpush1.msra.mxu0 %v825
    %2775 = vmatprep.subr.mxu0 %v829
    %2776 = vmatpush1.msra.mxu0 %v828
    %2777 = vmatprep.subr.mxu0 %v832
    %2778 = vmatpush1.msra.mxu0 %v831
    %2779 = vmatprep.subr.mxu0 %v835
    %2780 = vmatpush1.msra.mxu0 %v834
    %2781 = vmatprep.subr.mxu0 %v838
    %2782 = vmatpush1.msra.mxu0 %v837
    %2783 = vmatprep.subr.mxu0 %v841
    %2784 = vmatpush1.msra.mxu0 %v840
    %2785 = vmatprep.subr.mxu0 %v844
    %2786 = vmatpush1.msra.mxu0 %v843
    %2787 = vmatprep.subr.mxu0 0.0
    %2788 = vmatpush1.msra.mxu0 0.0
    %2789 = vmatprep.subr.mxu0 0.0
    %2790 = vmatpush1.msra.mxu0 0.0
    %2791 = vmatprep.subr.mxu0 0.0
    %2792 = vmatpush1.msra.mxu0 0.0
    %2793 = vmatprep.subr.mxu0 0.0
    %2794 = vmatpush1.msra.mxu0 0.0
    %2795 = vmatprep.subr.mxu0 0.0
    %2796 = vmatpush1.msra.mxu0 0.0
    %2797 = vmatprep.subr.mxu0 0.0
    %2798 = vmatpush1.msra.mxu0 0.0
    %2799 = vmatprep.subr.mxu0 0.0
    %2800 = vmatpush1.msra.mxu0 0.0
    %2801 = vmatprep.subr.mxu0 0.0
    %2802 = vmatpush1.msra.mxu0 0.0
    %2803 = vmatprep.subr.mxu0 0.0
    %2804 = vmatpush1.msra.mxu0 0.0
    %2805 = vmatprep.subr.mxu0 0.0
    %2806 = vmatpush1.msra.mxu0 0.0
    %2807 = vmatprep.subr.mxu0 0.0
    %2808 = vmatpush1.msra.mxu0 0.0
    %2809 = vmatprep.subr.mxu0 0.0
    %2810 = vmatpush1.msra.mxu0 0.0
    %2811 = vmatprep.subr.mxu0 0.0
    %2812 = vmatpush1.msra.mxu0 0.0
    %2813 = vmatprep.subr.mxu0 0.0
    %2814 = vmatpush1.msra.mxu0 0.0
    %2815 = vmatprep.subr.mxu0 0.0
    %2816 = vmatpush1.msra.mxu0 0.0
    %2817 = vmatprep.subr.mxu0 0.0
    %2818 = vmatpush1.msra.mxu0 0.0
    %2819 = vmatprep.mubr.f32.mxu0 0.0
    %2820 = vmatmul.mubr.f32.gmra.mrb[0].mxu0 %v2753
    %v2821 = vpop.f32.mrb[0].mxu0
    %v2822 = vadd.f32 %v1062, %v2821
    %v2823 = vpop.f32.mrb[0].mxu0
    %v2824 = vadd.f32 %v1066, %v2823
    %2825 = vdwg.mxu0
    %2826 = vmatprep.subr.mxu0 0.0
    %2827 = vmatpush1.msra.mxu0 %v800
    %2828 = vmatprep.subr.mxu0 0.0
    %2829 = vmatpush1.msra.mxu0 %v803
    %2830 = vmatprep.subr.mxu0 0.0
    %2831 = vmatpush1.msra.mxu0 %v806
    %2832 = vmatprep.subr.mxu0 0.0
    %2833 = vmatpush1.msra.mxu0 %v809
    %2834 = vmatprep.subr.mxu0 0.0
    %2835 = vmatpush1.msra.mxu0 %v812
    %2836 = vmatprep.subr.mxu0 0.0
    %2837 = vmatpush1.msra.mxu0 %v815
    %2838 = vmatprep.subr.mxu0 0.0
    %2839 = vmatpush1.msra.mxu0 %v818
    %2840 = vmatprep.subr.mxu0 0.0
    %2841 = vmatpush1.msra.mxu0 %v821
    %2842 = vmatprep.subr.mxu0 0.0
    %2843 = vmatpush1.msra.mxu0 %v824
    %2844 = vmatprep.subr.mxu0 0.0
    %2845 = vmatpush1.msra.mxu0 %v827
    %2846 = vmatprep.subr.mxu0 0.0
    %2847 = vmatpush1.msra.mxu0 %v830
    %2848 = vmatprep.subr.mxu0 0.0
    %2849 = vmatpush1.msra.mxu0 %v833
    %2850 = vmatprep.subr.mxu0 0.0
    %2851 = vmatpush1.msra.mxu0 %v836
    %2852 = vmatprep.subr.mxu0 0.0
    %2853 = vmatpush1.msra.mxu0 %v839
    %2854 = vmatprep.subr.mxu0 0.0
    %2855 = vmatpush1.msra.mxu0 %v842
    %2856 = vmatprep.subr.mxu0 0.0
    %2857 = vmatpush1.msra.mxu0 %v845
    %2858 = vmatprep.subr.mxu0 0.0
    %2859 = vmatpush1.msra.mxu0 0.0
    %2860 = vmatprep.subr.mxu0 0.0
    %2861 = vmatpush1.msra.mxu0 0.0
    %2862 = vmatprep.subr.mxu0 0.0
    %2863 = vmatpush1.msra.mxu0 0.0
    %2864 = vmatprep.subr.mxu0 0.0
    %2865 = vmatpush1.msra.mxu0 0.0
    %2866 = vmatprep.subr.mxu0 0.0
    %2867 = vmatpush1.msra.mxu0 0.0
    %2868 = vmatprep.subr.mxu0 0.0
    %2869 = vmatpush1.msra.mxu0 0.0
    %2870 = vmatprep.subr.mxu0 0.0
    %2871 = vmatpush1.msra.mxu0 0.0
    %2872 = vmatprep.subr.mxu0 0.0
    %2873 = vmatpush1.msra.mxu0 0.0
    %2874 = vmatprep.subr.mxu0 0.0
    %2875 = vmatpush1.msra.mxu0 0.0
    %2876 = vmatprep.subr.mxu0 0.0
    %2877 = vmatpush1.msra.mxu0 0.0
    %2878 = vmatprep.subr.mxu0 0.0
    %2879 = vmatpush1.msra.mxu0 0.0
    %2880 = vmatprep.subr.mxu0 0.0
    %2881 = vmatpush1.msra.mxu0 0.0
    %2882 = vmatprep.subr.mxu0 0.0
    %2883 = vmatpush1.msra.mxu0 0.0
    %2884 = vmatprep.subr.mxu0 0.0
    %2885 = vmatpush1.msra.mxu0 0.0
    %2886 = vmatprep.subr.mxu0 0.0
    %2887 = vmatpush1.msra.mxu0 0.0
    %2888 = vmatprep.subr.mxu0 0.0
    %2889 = vmatpush1.msra.mxu0 0.0
    %2890 = vmatprep.mubr.f32.mxu0 0.0
    %2891 = vmatmul.mubr.f32.gmra.mrb[0].mxu0 %v2753
    %v2892 = vpop.f32.mrb[0].mxu0
    %v2893 = vadd.f32 %v1070, %v2892
    %v2894 = vpop.f32.mrb[0].mxu0
    %2895 = vdwg.mxu0
    %v2897 = vrot.slane %v2822, 5
    %v2898 = vrot.slane %v2822, 6
    %v2901 = vadd.f32 %v664, %v2897
    %v2902 = vadd.f32 %v670, %v2898
    %v2903 = vxor.u32 %v2901, 2147483648
    %v2904 = vxor.u32 %v2902, 2147483648
    %v2905 = vmul.f32 %v2903, 1.442695
    %v2906 = vpow.pop %v2905
    %v2907 = vmul.f32 %v2904, 1.442695
    %v2908 = vpow.pop %v2907
    %v2909 = vadd.f32 %v2906, 1.0
    %v2910 = vadd.f32 %v2908, 1.0
    %v2911 = vrcp.pop %v2909
    %v2912 = vmul.f32 1.0, %v2911
    %v2913 = vrcp.pop %v2910
    %v2914 = vmul.f32 1.0, %v2913
    %v2916 = vrot.slane %v2824, 5
    %v2917 = vrot.slane %v2824, 6
    %v2920 = vadd.f32 %v739, %v2916
    %v2921 = vadd.f32 %v745, %v2917
    %v2922 = vxor.u32 %v2920, 2147483648
    %v2923 = vxor.u32 %v2921, 2147483648
    %v2924 = vmul.f32 %v2922, 1.442695
    %v2925 = vpow.pop %v2924
    %v2926 = vmul.f32 %v2923, 1.442695
    %v2927 = vpow.pop %v2926
    %v2928 = vadd.f32 %v2925, 1.0
    %v2929 = vadd.f32 %v2927, 1.0
    %v2930 = vrcp.pop %v2928
    %v2931 = vmul.f32 1.0, %v2930
    %v2932 = vrcp.pop %v2929
    %v2933 = vmul.f32 1.0, %v2932
    %v2935 = vrot.slane %v2893, 5
    %v2936 = vrot.slane %v2893, 6
    %v2939 = vmul.f32 %v2912, %v2935
    %v2940 = vmul.f32 %v2914, %v2936
    %v2941 = vadd.f32 %v741, %v2939
    %v2942 = vadd.f32 %v747, %v2940
    %v2943 = vtanh.pop %v2941
    %v2944 = vtanh.pop %v2942
    %v2945 = vsub.f32 1.0, %v2931
    %v2946 = vsub.f32 1.0, %v2933
    %v2947 = vmul.f32 %v2945, %v2943
    %v2948 = vmul.f32 %v2946, %v2944
    %v2949 = vrot.slane %v2539, 1
    %v2950 = vrot.slane %v2540, 1
    %v2953 = vmul.f32 %v2931, %v2949
    %v2954 = vmul.f32 %v2933, %v2950
    %v2955 = vadd.f32 %v2947, %v2953
    %v2956 = vadd.f32 %v2948, %v2954
    %v2957 = vsel %vm1280, %v2747, %v2741
    %v2958 = vsel %vm1281, %v2748, %v2742
    %v2959 = vsel %vm1280, %v2955, %v2949
    %v2960 = vsel %vm1281, %v2956, %v2950
    %v2963 = vrot.slane %v2957, 4
    %v2964 = vrot.slane %v2958, 3
    %v2965 = vsel %vm1289, %v2964, %v2963
    %2967 = vmatprep.subr.mxu0 %v750
    %2968 = vmatpush1.msra.mxu0 %v749
    %2969 = vmatprep.subr.mxu0 %v753
    %2970 = vmatpush1.msra.mxu0 %v752
    %2971 = vmatprep.subr.mxu0 %v756
    %2972 = vmatpush1.msra.mxu0 %v755
    %2973 = vmatprep.subr.mxu0 %v759
    %2974 = vmatpush1.msra.mxu0 %v758
    %2975 = vmatprep.subr.mxu0 %v762
    %2976 = vmatpush1.msra.mxu0 %v761
    %2977 = vmatprep.subr.mxu0 %v765
    %2978 = vmatpush1.msra.mxu0 %v764
    %2979 = vmatprep.subr.mxu0 %v768
    %2980 = vmatpush1.msra.mxu0 %v767
    %2981 = vmatprep.subr.mxu0 %v771
    %2982 = vmatpush1.msra.mxu0 %v770
    %2983 = vmatprep.subr.mxu0 %v774
    %2984 = vmatpush1.msra.mxu0 %v773
    %2985 = vmatprep.subr.mxu0 %v777
    %2986 = vmatpush1.msra.mxu0 %v776
    %2987 = vmatprep.subr.mxu0 %v780
    %2988 = vmatpush1.msra.mxu0 %v779
    %2989 = vmatprep.subr.mxu0 %v783
    %2990 = vmatpush1.msra.mxu0 %v782
    %2991 = vmatprep.subr.mxu0 %v786
    %2992 = vmatpush1.msra.mxu0 %v785
    %2993 = vmatprep.subr.mxu0 %v789
    %2994 = vmatpush1.msra.mxu0 %v788
    %2995 = vmatprep.subr.mxu0 %v792
    %2996 = vmatpush1.msra.mxu0 %v791
    %2997 = vmatprep.subr.mxu0 %v795
    %2998 = vmatpush1.msra.mxu0 %v794
    %2999 = vmatprep.subr.mxu0 0.0
    %3000 = vmatpush1.msra.mxu0 0.0
    %3001 = vmatprep.subr.mxu0 0.0
    %3002 = vmatpush1.msra.mxu0 0.0
    %3003 = vmatprep.subr.mxu0 0.0
    %3004 = vmatpush1.msra.mxu0 0.0
    %3005 = vmatprep.subr.mxu0 0.0
    %3006 = vmatpush1.msra.mxu0 0.0
    %3007 = vmatprep.subr.mxu0 0.0
    %3008 = vmatpush1.msra.mxu0 0.0
    %3009 = vmatprep.subr.mxu0 0.0
    %3010 = vmatpush1.msra.mxu0 0.0
    %3011 = vmatprep.subr.mxu0 0.0
    %3012 = vmatpush1.msra.mxu0 0.0
    %3013 = vmatprep.subr.mxu0 0.0
    %3014 = vmatpush1.msra.mxu0 0.0
    %3015 = vmatprep.subr.mxu0 0.0
    %3016 = vmatpush1.msra.mxu0 0.0
    %3017 = vmatprep.subr.mxu0 0.0
    %3018 = vmatpush1.msra.mxu0 0.0
    %3019 = vmatprep.subr.mxu0 0.0
    %3020 = vmatpush1.msra.mxu0 0.0
    %3021 = vmatprep.subr.mxu0 0.0
    %3022 = vmatpush1.msra.mxu0 0.0
    %3023 = vmatprep.subr.mxu0 0.0
    %3024 = vmatpush1.msra.mxu0 0.0
    %3025 = vmatprep.subr.mxu0 0.0
    %3026 = vmatpush1.msra.mxu0 0.0
    %3027 = vmatprep.subr.mxu0 0.0
    %3028 = vmatpush1.msra.mxu0 0.0
    %3029 = vmatprep.subr.mxu0 0.0
    %3030 = vmatpush1.msra.mxu0 0.0
    %3031 = vmatprep.mubr.f32.mxu0 0.0
    %3032 = vmatmul.mubr.f32.gmra.mrb[0].mxu0 %v2965
    %v3033 = vpop.f32.mrb[0].mxu0
    %v3034 = vadd.f32 %v851, %v3033
    %v3035 = vpop.f32.mrb[0].mxu0
    %v3036 = vadd.f32 %v855, %v3035
    %3037 = vdwg.mxu0
    %3038 = vmatprep.subr.mxu0 0.0
    %3039 = vmatpush1.msra.mxu0 %v751
    %3040 = vmatprep.subr.mxu0 0.0
    %3041 = vmatpush1.msra.mxu0 %v754
    %3042 = vmatprep.subr.mxu0 0.0
    %3043 = vmatpush1.msra.mxu0 %v757
    %3044 = vmatprep.subr.mxu0 0.0
    %3045 = vmatpush1.msra.mxu0 %v760
    %3046 = vmatprep.subr.mxu0 0.0
    %3047 = vmatpush1.msra.mxu0 %v763
    %3048 = vmatprep.subr.mxu0 0.0
    %3049 = vmatpush1.msra.mxu0 %v766
    %3050 = vmatprep.subr.mxu0 0.0
    %3051 = vmatpush1.msra.mxu0 %v769
    %3052 = vmatprep.subr.mxu0 0.0
    %3053 = vmatpush1.msra.mxu0 %v772
    %3054 = vmatprep.subr.mxu0 0.0
    %3055 = vmatpush1.msra.mxu0 %v775
    %3056 = vmatprep.subr.mxu0 0.0
    %3057 = vmatpush1.msra.mxu0 %v778
    %3058 = vmatprep.subr.mxu0 0.0
    %3059 = vmatpush1.msra.mxu0 %v781
    %3060 = vmatprep.subr.mxu0 0.0
    %3061 = vmatpush1.msra.mxu0 %v784
    %3062 = vmatprep.subr.mxu0 0.0
    %3063 = vmatpush1.msra.mxu0 %v787
    %3064 = vmatprep.subr.mxu0 0.0
    %3065 = vmatpush1.msra.mxu0 %v790
    %3066 = vmatprep.subr.mxu0 0.0
    %3067 = vmatpush1.msra.mxu0 %v793
    %3068 = vmatprep.subr.mxu0 0.0
    %3069 = vmatpush1.msra.mxu0 %v796
    %3070 = vmatprep.subr.mxu0 0.0
    %3071 = vmatpush1.msra.mxu0 0.0
    %3072 = vmatprep.subr.mxu0 0.0
    %3073 = vmatpush1.msra.mxu0 0.0
    %3074 = vmatprep.subr.mxu0 0.0
    %3075 = vmatpush1.msra.mxu0 0.0
    %3076 = vmatprep.subr.mxu0 0.0
    %3077 = vmatpush1.msra.mxu0 0.0
    %3078 = vmatprep.subr.mxu0 0.0
    %3079 = vmatpush1.msra.mxu0 0.0
    %3080 = vmatprep.subr.mxu0 0.0
    %3081 = vmatpush1.msra.mxu0 0.0
    %3082 = vmatprep.subr.mxu0 0.0
    %3083 = vmatpush1.msra.mxu0 0.0
    %3084 = vmatprep.subr.mxu0 0.0
    %3085 = vmatpush1.msra.mxu0 0.0
    %3086 = vmatprep.subr.mxu0 0.0
    %3087 = vmatpush1.msra.mxu0 0.0
    %3088 = vmatprep.subr.mxu0 0.0
    %3089 = vmatpush1.msra.mxu0 0.0
    %3090 = vmatprep.subr.mxu0 0.0
    %3091 = vmatpush1.msra.mxu0 0.0
    %3092 = vmatprep.subr.mxu0 0.0
    %3093 = vmatpush1.msra.mxu0 0.0
    %3094 = vmatprep.subr.mxu0 0.0
    %3095 = vmatpush1.msra.mxu0 0.0
    %3096 = vmatprep.subr.mxu0 0.0
    %3097 = vmatpush1.msra.mxu0 0.0
    %3098 = vmatprep.subr.mxu0 0.0
    %3099 = vmatpush1.msra.mxu0 0.0
    %3100 = vmatprep.subr.mxu0 0.0
    %3101 = vmatpush1.msra.mxu0 0.0
    %3102 = vmatprep.mubr.f32.mxu0 0.0
    %3103 = vmatmul.mubr.f32.gmra.mrb[0].mxu0 %v2965
    %v3104 = vpop.f32.mrb[0].mxu0
    %v3105 = vadd.f32 %v859, %v3104
    %v3106 = vpop.f32.mrb[0].mxu0
    %3107 = vdwg.mxu0
    %v3109 = vrot.slane %v3034, 3
    %v3110 = vrot.slane %v3034, 4
    %v3113 = vadd.f32 %v585, %v3109
    %v3114 = vadd.f32 %v591, %v3110
    %v3115 = vxor.u32 %v3113, 2147483648
    %v3116 = vxor.u32 %v3114, 2147483648
    %v3117 = vmul.f32 %v3115, 1.442695
    %v3118 = vpow.pop %v3117
    %v3119 = vmul.f32 %v3116, 1.442695
    %v3120 = vpow.pop %v3119
    %v3121 = vadd.f32 %v3118, 1.0
    %v3122 = vadd.f32 %v3120, 1.0
    %v3123 = vrcp.pop %v3121
    %v3124 = vmul.f32 1.0, %v3123
    %v3125 = vrcp.pop %v3122
    %v3126 = vmul.f32 1.0, %v3125
    %v3128 = vrot.slane %v3036, 3
    %v3129 = vrot.slane %v3036, 4
    %v3132 = vadd.f32 %v587, %v3128
    %v3133 = vadd.f32 %v593, %v3129
    %v3134 = vxor.u32 %v3132, 2147483648
    %v3135 = vxor.u32 %v3133, 2147483648
    %v3136 = vmul.f32 %v3134, 1.442695
    %v3137 = vpow.pop %v3136
    %v3138 = vmul.f32 %v3135, 1.442695
    %v3139 = vpow.pop %v3138
    %v3140 = vadd.f32 %v3137, 1.0
    %v3141 = vadd.f32 %v3139, 1.0
    %v3142 = vrcp.pop %v3140
    %v3143 = vmul.f32 1.0, %v3142
    %v3144 = vrcp.pop %v3141
    %v3145 = vmul.f32 1.0, %v3144
    %v3147 = vrot.slane %v3105, 3
    %v3148 = vrot.slane %v3105, 4
    %v3151 = vmul.f32 %v3124, %v3147
    %v3152 = vmul.f32 %v3126, %v3148
    %v3153 = vadd.f32 %v662, %v3151
    %v3154 = vadd.f32 %v668, %v3152
    %v3155 = vtanh.pop %v3153
    %v3156 = vtanh.pop %v3154
    %v3157 = vsub.f32 1.0, %v3143
    %v3158 = vsub.f32 1.0, %v3145
    %v3159 = vmul.f32 %v3157, %v3155
    %v3160 = vmul.f32 %v3158, %v3156
    %v3161 = vrot.slane %v2957, 7
    %v3162 = vrot.slane %v2958, 7
    %v3165 = vmul.f32 %v3143, %v3161
    %v3166 = vmul.f32 %v3145, %v3162
    %v3167 = vadd.f32 %v3159, %v3165
    %v3168 = vadd.f32 %v3160, %v3166
    %v3171 = vrot.slane %v2959, 3
    %v3172 = vrot.slane %v2960, 2
    %v3173 = vsel %vm1289, %v3172, %v3171
    %3175 = vmatprep.subr.mxu0 %v799
    %3176 = vmatpush1.msra.mxu0 %v798
    %3177 = vmatprep.subr.mxu0 %v802
    %3178 = vmatpush1.msra.mxu0 %v801
    %3179 = vmatprep.subr.mxu0 %v805
    %3180 = vmatpush1.msra.mxu0 %v804
    %3181 = vmatprep.subr.mxu0 %v808
    %3182 = vmatpush1.msra.mxu0 %v807
    %3183 = vmatprep.subr.mxu0 %v811
    %3184 = vmatpush1.msra.mxu0 %v810
    %3185 = vmatprep.subr.mxu0 %v814
    %3186 = vmatpush1.msra.mxu0 %v813
    %3187 = vmatprep.subr.mxu0 %v817
    %3188 = vmatpush1.msra.mxu0 %v816
    %3189 = vmatprep.subr.mxu0 %v820
    %3190 = vmatpush1.msra.mxu0 %v819
    %3191 = vmatprep.subr.mxu0 %v823
    %3192 = vmatpush1.msra.mxu0 %v822
    %3193 = vmatprep.subr.mxu0 %v826
    %3194 = vmatpush1.msra.mxu0 %v825
    %3195 = vmatprep.subr.mxu0 %v829
    %3196 = vmatpush1.msra.mxu0 %v828
    %3197 = vmatprep.subr.mxu0 %v832
    %3198 = vmatpush1.msra.mxu0 %v831
    %3199 = vmatprep.subr.mxu0 %v835
    %3200 = vmatpush1.msra.mxu0 %v834
    %3201 = vmatprep.subr.mxu0 %v838
    %3202 = vmatpush1.msra.mxu0 %v837
    %3203 = vmatprep.subr.mxu0 %v841
    %3204 = vmatpush1.msra.mxu0 %v840
    %3205 = vmatprep.subr.mxu0 %v844
    %3206 = vmatpush1.msra.mxu0 %v843
    %3207 = vmatprep.subr.mxu0 0.0
    %3208 = vmatpush1.msra.mxu0 0.0
    %3209 = vmatprep.subr.mxu0 0.0
    %3210 = vmatpush1.msra.mxu0 0.0
    %3211 = vmatprep.subr.mxu0 0.0
    %3212 = vmatpush1.msra.mxu0 0.0
    %3213 = vmatprep.subr.mxu0 0.0
    %3214 = vmatpush1.msra.mxu0 0.0
    %3215 = vmatprep.subr.mxu0 0.0
    %3216 = vmatpush1.msra.mxu0 0.0
    %3217 = vmatprep.subr.mxu0 0.0
    %3218 = vmatpush1.msra.mxu0 0.0
    %3219 = vmatprep.subr.mxu0 0.0
    %3220 = vmatpush1.msra.mxu0 0.0
    %3221 = vmatprep.subr.mxu0 0.0
    %3222 = vmatpush1.msra.mxu0 0.0
    %3223 = vmatprep.subr.mxu0 0.0
    %3224 = vmatpush1.msra.mxu0 0.0
    %3225 = vmatprep.subr.mxu0 0.0
    %3226 = vmatpush1.msra.mxu0 0.0
    %3227 = vmatprep.subr.mxu0 0.0
    %3228 = vmatpush1.msra.mxu0 0.0
    %3229 = vmatprep.subr.mxu0 0.0
    %3230 = vmatpush1.msra.mxu0 0.0
    %3231 = vmatprep.subr.mxu0 0.0
    %3232 = vmatpush1.msra.mxu0 0.0
    %3233 = vmatprep.subr.mxu0 0.0
    %3234 = vmatpush1.msra.mxu0 0.0
    %3235 = vmatprep.subr.mxu0 0.0
    %3236 = vmatpush1.msra.mxu0 0.0
    %3237 = vmatprep.subr.mxu0 0.0
    %3238 = vmatpush1.msra.mxu0 0.0
    %3239 = vmatprep.mubr.f32.mxu0 0.0
    %3240 = vmatmul.mubr.f32.gmra.mrb[0].mxu0 %v3173
    %v3241 = vpop.f32.mrb[0].mxu0
    %v3242 = vadd.f32 %v1062, %v3241
    %v3243 = vpop.f32.mrb[0].mxu0
    %v3244 = vadd.f32 %v1066, %v3243
    %3245 = vdwg.mxu0
    %3246 = vmatprep.subr.mxu0 0.0
    %3247 = vmatpush1.msra.mxu0 %v800
    %3248 = vmatprep.subr.mxu0 0.0
    %3249 = vmatpush1.msra.mxu0 %v803
    %3250 = vmatprep.subr.mxu0 0.0
    %3251 = vmatpush1.msra.mxu0 %v806
    %3252 = vmatprep.subr.mxu0 0.0
    %3253 = vmatpush1.msra.mxu0 %v809
    %3254 = vmatprep.subr.mxu0 0.0
    %3255 = vmatpush1.msra.mxu0 %v812
    %3256 = vmatprep.subr.mxu0 0.0
    %3257 = vmatpush1.msra.mxu0 %v815
    %3258 = vmatprep.subr.mxu0 0.0
    %3259 = vmatpush1.msra.mxu0 %v818
    %3260 = vmatprep.subr.mxu0 0.0
    %3261 = vmatpush1.msra.mxu0 %v821
    %3262 = vmatprep.subr.mxu0 0.0
    %3263 = vmatpush1.msra.mxu0 %v824
    %3264 = vmatprep.subr.mxu0 0.0
    %3265 = vmatpush1.msra.mxu0 %v827
    %3266 = vmatprep.subr.mxu0 0.0
    %3267 = vmatpush1.msra.mxu0 %v830
    %3268 = vmatprep.subr.mxu0 0.0
    %3269 = vmatpush1.msra.mxu0 %v833
    %3270 = vmatprep.subr.mxu0 0.0
    %3271 = vmatpush1.msra.mxu0 %v836
    %3272 = vmatprep.subr.mxu0 0.0
    %3273 = vmatpush1.msra.mxu0 %v839
    %3274 = vmatprep.subr.mxu0 0.0
    %3275 = vmatpush1.msra.mxu0 %v842
    %3276 = vmatprep.subr.mxu0 0.0
    %3277 = vmatpush1.msra.mxu0 %v845
    %3278 = vmatprep.subr.mxu0 0.0
    %3279 = vmatpush1.msra.mxu0 0.0
    %3280 = vmatprep.subr.mxu0 0.0
    %3281 = vmatpush1.msra.mxu0 0.0
    %3282 = vmatprep.subr.mxu0 0.0
    %3283 = vmatpush1.msra.mxu0 0.0
    %3284 = vmatprep.subr.mxu0 0.0
    %3285 = vmatpush1.msra.mxu0 0.0
    %3286 = vmatprep.subr.mxu0 0.0
    %3287 = vmatpush1.msra.mxu0 0.0
    %3288 = vmatprep.subr.mxu0 0.0
    %3289 = vmatpush1.msra.mxu0 0.0
    %3290 = vmatprep.subr.mxu0 0.0
    %3291 = vmatpush1.msra.mxu0 0.0
    %3292 = vmatprep.subr.mxu0 0.0
    %3293 = vmatpush1.msra.mxu0 0.0
    %3294 = vmatprep.subr.mxu0 0.0
    %3295 = vmatpush1.msra.mxu0 0.0
    %3296 = vmatprep.subr.mxu0 0.0
    %3297 = vmatpush1.msra.mxu0 0.0
    %3298 = vmatprep.subr.mxu0 0.0
    %3299 = vmatpush1.msra.mxu0 0.0
    %3300 = vmatprep.subr.mxu0 0.0
    %3301 = vmatpush1.msra.mxu0 0.0
    %3302 = vmatprep.subr.mxu0 0.0
    %3303 = vmatpush1.msra.mxu0 0.0
    %3304 = vmatprep.subr.mxu0 0.0
    %3305 = vmatpush1.msra.mxu0 0.0
    %3306 = vmatprep.subr.mxu0 0.0
    %3307 = vmatpush1.msra.mxu0 0.0
    %3308 = vmatprep.subr.mxu0 0.0
    %3309 = vmatpush1.msra.mxu0 0.0
    %3310 = vmatprep.mubr.f32.mxu0 0.0
    %3311 = vmatmul.mubr.f32.gmra.mrb[0].mxu0 %v3173
    %v3312 = vpop.f32.mrb[0].mxu0
    %v3313 = vadd.f32 %v1070, %v3312
    %v3314 = vpop.f32.mrb[0].mxu0
    %3315 = vdwg.mxu0
    %v3317 = vrot.slane %v3242, 6
    %v3318 = vrot.slane %v3242, 7
    %v3321 = vadd.f32 %v664, %v3317
    %v3322 = vadd.f32 %v670, %v3318
    %v3323 = vxor.u32 %v3321, 2147483648
    %v3324 = vxor.u32 %v3322, 2147483648
    %v3325 = vmul.f32 %v3323, 1.442695
    %v3326 = vpow.pop %v3325
    %v3327 = vmul.f32 %v3324, 1.442695
    %v3328 = vpow.pop %v3327
    %v3329 = vadd.f32 %v3326, 1.0
    %v3330 = vadd.f32 %v3328, 1.0
    %v3331 = vrcp.pop %v3329
    %v3332 = vmul.f32 1.0, %v3331
    %v3333 = vrcp.pop %v3330
    %v3334 = vmul.f32 1.0, %v3333
    %v3336 = vrot.slane %v3244, 6
    %v3337 = vrot.slane %v3244, 7
    %v3340 = vadd.f32 %v739, %v3336
    %v3341 = vadd.f32 %v745, %v3337
    %v3342 = vxor.u32 %v3340, 2147483648
    %v3343 = vxor.u32 %v3341, 2147483648
    %v3344 = vmul.f32 %v3342, 1.442695
    %v3345 = vpow.pop %v3344
    %v3346 = vmul.f32 %v3343, 1.442695
    %v3347 = vpow.pop %v3346
    %v3348 = vadd.f32 %v3345, 1.0
    %v3349 = vadd.f32 %v3347, 1.0
    %v3350 = vrcp.pop %v3348
    %v3351 = vmul.f32 1.0, %v3350
    %v3352 = vrcp.pop %v3349
    %v3353 = vmul.f32 1.0, %v3352
    %v3355 = vrot.slane %v3313, 6
    %v3356 = vrot.slane %v3313, 7
    %v3359 = vmul.f32 %v3332, %v3355
    %v3360 = vmul.f32 %v3334, %v3356
    %v3361 = vadd.f32 %v741, %v3359
    %v3362 = vadd.f32 %v747, %v3360
    %v3363 = vtanh.pop %v3361
    %v3364 = vtanh.pop %v3362
    %v3365 = vsub.f32 1.0, %v3351
    %v3366 = vsub.f32 1.0, %v3353
    %v3367 = vmul.f32 %v3365, %v3363
    %v3368 = vmul.f32 %v3366, %v3364
    %v3369 = vrot.slane %v2959, 1
    %v3370 = vrot.slane %v2960, 1
    %v3373 = vmul.f32 %v3351, %v3369
    %v3374 = vmul.f32 %v3353, %v3370
    %v3375 = vadd.f32 %v3367, %v3373
    %v3376 = vadd.f32 %v3368, %v3374
    %v3377 = vsel %vm1280, %v3167, %v3161
    %v3378 = vsel %vm1281, %v3168, %v3162
    %v3379 = vsel %vm1280, %v3375, %v3369
    %v3380 = vsel %vm1281, %v3376, %v3370
    %v3383 = vrot.slane %v3377, 5
    %v3384 = vrot.slane %v3378, 4
    %v3385 = vsel %vm1289, %v3384, %v3383
    %3387 = vmatprep.subr.mxu0 %v750
    %3388 = vmatpush1.msra.mxu0 %v749
    %3389 = vmatprep.subr.mxu0 %v753
    %3390 = vmatpush1.msra.mxu0 %v752
    %3391 = vmatprep.subr.mxu0 %v756
    %3392 = vmatpush1.msra.mxu0 %v755
    %3393 = vmatprep.subr.mxu0 %v759
    %3394 = vmatpush1.msra.mxu0 %v758
    %3395 = vmatprep.subr.mxu0 %v762
    %3396 = vmatpush1.msra.mxu0 %v761
    %3397 = vmatprep.subr.mxu0 %v765
    %3398 = vmatpush1.msra.mxu0 %v764
    %3399 = vmatprep.subr.mxu0 %v768
    %3400 = vmatpush1.msra.mxu0 %v767
    %3401 = vmatprep.subr.mxu0 %v771
    %3402 = vmatpush1.msra.mxu0 %v770
    %3403 = vmatprep.subr.mxu0 %v774
    %3404 = vmatpush1.msra.mxu0 %v773
    %3405 = vmatprep.subr.mxu0 %v777
    %3406 = vmatpush1.msra.mxu0 %v776
    %3407 = vmatprep.subr.mxu0 %v780
    %3408 = vmatpush1.msra.mxu0 %v779
    %3409 = vmatprep.subr.mxu0 %v783
    %3410 = vmatpush1.msra.mxu0 %v782
    %3411 = vmatprep.subr.mxu0 %v786
    %3412 = vmatpush1.msra.mxu0 %v785
    %3413 = vmatprep.subr.mxu0 %v789
    %3414 = vmatpush1.msra.mxu0 %v788
    %3415 = vmatprep.subr.mxu0 %v792
    %3416 = vmatpush1.msra.mxu0 %v791
    %3417 = vmatprep.subr.mxu0 %v795
    %3418 = vmatpush1.msra.mxu0 %v794
    %3419 = vmatprep.subr.mxu0 0.0
    %3420 = vmatpush1.msra.mxu0 0.0
    %3421 = vmatprep.subr.mxu0 0.0
    %3422 = vmatpush1.msra.mxu0 0.0
    %3423 = vmatprep.subr.mxu0 0.0
    %3424 = vmatpush1.msra.mxu0 0.0
    %3425 = vmatprep.subr.mxu0 0.0
    %3426 = vmatpush1.msra.mxu0 0.0
    %3427 = vmatprep.subr.mxu0 0.0
    %3428 = vmatpush1.msra.mxu0 0.0
    %3429 = vmatprep.subr.mxu0 0.0
    %3430 = vmatpush1.msra.mxu0 0.0
    %3431 = vmatprep.subr.mxu0 0.0
    %3432 = vmatpush1.msra.mxu0 0.0
    %3433 = vmatprep.subr.mxu0 0.0
    %3434 = vmatpush1.msra.mxu0 0.0
    %3435 = vmatprep.subr.mxu0 0.0
    %3436 = vmatpush1.msra.mxu0 0.0
    %3437 = vmatprep.subr.mxu0 0.0
    %3438 = vmatpush1.msra.mxu0 0.0
    %3439 = vmatprep.subr.mxu0 0.0
    %3440 = vmatpush1.msra.mxu0 0.0
    %3441 = vmatprep.subr.mxu0 0.0
    %3442 = vmatpush1.msra.mxu0 0.0
    %3443 = vmatprep.subr.mxu0 0.0
    %3444 = vmatpush1.msra.mxu0 0.0
    %3445 = vmatprep.subr.mxu0 0.0
    %3446 = vmatpush1.msra.mxu0 0.0
    %3447 = vmatprep.subr.mxu0 0.0
    %3448 = vmatpush1.msra.mxu0 0.0
    %3449 = vmatprep.subr.mxu0 0.0
    %3450 = vmatpush1.msra.mxu0 0.0
    %3451 = vmatprep.mubr.f32.mxu0 0.0
    %3452 = vmatmul.mubr.f32.gmra.mrb[0].mxu0 %v3385
    %v3453 = vpop.f32.mrb[0].mxu0
    %v3454 = vadd.f32 %v851, %v3453
    %v3455 = vpop.f32.mrb[0].mxu0
    %v3456 = vadd.f32 %v855, %v3455
    %3457 = vdwg.mxu0
    %3458 = vmatprep.subr.mxu0 0.0
    %3459 = vmatpush1.msra.mxu0 %v751
    %3460 = vmatprep.subr.mxu0 0.0
    %3461 = vmatpush1.msra.mxu0 %v754
    %3462 = vmatprep.subr.mxu0 0.0
    %3463 = vmatpush1.msra.mxu0 %v757
    %3464 = vmatprep.subr.mxu0 0.0
    %3465 = vmatpush1.msra.mxu0 %v760
    %3466 = vmatprep.subr.mxu0 0.0
    %3467 = vmatpush1.msra.mxu0 %v763
    %3468 = vmatprep.subr.mxu0 0.0
    %3469 = vmatpush1.msra.mxu0 %v766
    %3470 = vmatprep.subr.mxu0 0.0
    %3471 = vmatpush1.msra.mxu0 %v769
    %3472 = vmatprep.subr.mxu0 0.0
    %3473 = vmatpush1.msra.mxu0 %v772
    %3474 = vmatprep.subr.mxu0 0.0
    %3475 = vmatpush1.msra.mxu0 %v775
    %3476 = vmatprep.subr.mxu0 0.0
    %3477 = vmatpush1.msra.mxu0 %v778
    %3478 = vmatprep.subr.mxu0 0.0
    %3479 = vmatpush1.msra.mxu0 %v781
    %3480 = vmatprep.subr.mxu0 0.0
    %3481 = vmatpush1.msra.mxu0 %v784
    %3482 = vmatprep.subr.mxu0 0.0
    %3483 = vmatpush1.msra.mxu0 %v787
    %3484 = vmatprep.subr.mxu0 0.0
    %3485 = vmatpush1.msra.mxu0 %v790
    %3486 = vmatprep.subr.mxu0 0.0
    %3487 = vmatpush1.msra.mxu0 %v793
    %3488 = vmatprep.subr.mxu0 0.0
    %3489 = vmatpush1.msra.mxu0 %v796
    %3490 = vmatprep.subr.mxu0 0.0
    %3491 = vmatpush1.msra.mxu0 0.0
    %3492 = vmatprep.subr.mxu0 0.0
    %3493 = vmatpush1.msra.mxu0 0.0
    %3494 = vmatprep.subr.mxu0 0.0
    %3495 = vmatpush1.msra.mxu0 0.0
    %3496 = vmatprep.subr.mxu0 0.0
    %3497 = vmatpush1.msra.mxu0 0.0
    %3498 = vmatprep.subr.mxu0 0.0
    %3499 = vmatpush1.msra.mxu0 0.0
    %3500 = vmatprep.subr.mxu0 0.0
    %3501 = vmatpush1.msra.mxu0 0.0
    %3502 = vmatprep.subr.mxu0 0.0
    %3503 = vmatpush1.msra.mxu0 0.0
    %3504 = vmatprep.subr.mxu0 0.0
    %3505 = vmatpush1.msra.mxu0 0.0
    %3506 = vmatprep.subr.mxu0 0.0
    %3507 = vmatpush1.msra.mxu0 0.0
    %3508 = vmatprep.subr.mxu0 0.0
    %3509 = vmatpush1.msra.mxu0 0.0
    %3510 = vmatprep.subr.mxu0 0.0
    %3511 = vmatpush1.msra.mxu0 0.0
    %3512 = vmatprep.subr.mxu0 0.0
    %3513 = vmatpush1.msra.mxu0 0.0
    %3514 = vmatprep.subr.mxu0 0.0
    %3515 = vmatpush1.msra.mxu0 0.0
    %3516 = vmatprep.subr.mxu0 0.0
    %3517 = vmatpush1.msra.mxu0 0.0
    %3518 = vmatprep.subr.mxu0 0.0
    %3519 = vmatpush1.msra.mxu0 0.0
    %3520 = vmatprep.subr.mxu0 0.0
    %3521 = vmatpush1.msra.mxu0 0.0
    %3522 = vmatprep.mubr.f32.mxu0 0.0
    %3523 = vmatmul.mubr.f32.gmra.mrb[0].mxu0 %v3385
    %v3524 = vpop.f32.mrb[0].mxu0
    %v3525 = vadd.f32 %v859, %v3524
    %v3526 = vpop.f32.mrb[0].mxu0
    %3527 = vdwg.mxu0
    %v3529 = vrot.slane %v3454, 2
    %v3530 = vrot.slane %v3454, 3
    %v3533 = vadd.f32 %v585, %v3529
    %v3534 = vadd.f32 %v591, %v3530
    %v3535 = vxor.u32 %v3533, 2147483648
    %v3536 = vxor.u32 %v3534, 2147483648
    %v3537 = vmul.f32 %v3535, 1.442695
    %v3538 = vpow.pop %v3537
    %v3539 = vmul.f32 %v3536, 1.442695
    %v3540 = vpow.pop %v3539
    %v3541 = vadd.f32 %v3538, 1.0
    %v3542 = vadd.f32 %v3540, 1.0
    %v3543 = vrcp.pop %v3541
    %v3544 = vmul.f32 1.0, %v3543
    %v3545 = vrcp.pop %v3542
    %v3546 = vmul.f32 1.0, %v3545
    %v3548 = vrot.slane %v3456, 2
    %v3549 = vrot.slane %v3456, 3
    %v3552 = vadd.f32 %v587, %v3548
    %v3553 = vadd.f32 %v593, %v3549
    %v3554 = vxor.u32 %v3552, 2147483648
    %v3555 = vxor.u32 %v3553, 2147483648
    %v3556 = vmul.f32 %v3554, 1.442695
    %v3557 = vpow.pop %v3556
    %v3558 = vmul.f32 %v3555, 1.442695
    %v3559 = vpow.pop %v3558
    %v3560 = vadd.f32 %v3557, 1.0
    %v3561 = vadd.f32 %v3559, 1.0
    %v3562 = vrcp.pop %v3560
    %v3563 = vmul.f32 1.0, %v3562
    %v3564 = vrcp.pop %v3561
    %v3565 = vmul.f32 1.0, %v3564
    %v3567 = vrot.slane %v3525, 2
    %v3568 = vrot.slane %v3525, 3
    %v3571 = vmul.f32 %v3544, %v3567
    %v3572 = vmul.f32 %v3546, %v3568
    %v3573 = vadd.f32 %v662, %v3571
    %v3574 = vadd.f32 %v668, %v3572
    %v3575 = vtanh.pop %v3573
    %v3576 = vtanh.pop %v3574
    %v3577 = vsub.f32 1.0, %v3563
    %v3578 = vsub.f32 1.0, %v3565
    %v3579 = vmul.f32 %v3577, %v3575
    %v3580 = vmul.f32 %v3578, %v3576
    %v3581 = vrot.slane %v3377, 7
    %v3582 = vrot.slane %v3378, 7
    %v3585 = vmul.f32 %v3563, %v3581
    %v3586 = vmul.f32 %v3565, %v3582
    %v3587 = vadd.f32 %v3579, %v3585
    %v3588 = vadd.f32 %v3580, %v3586
    %v3591 = vrot.slane %v3379, 2
    %v3592 = vrot.slane %v3380, 1
    %v3593 = vsel %vm1289, %v3592, %v3591
    %3595 = vmatprep.subr.mxu0 %v799
    %3596 = vmatpush1.msra.mxu0 %v798
    %3597 = vmatprep.subr.mxu0 %v802
    %3598 = vmatpush1.msra.mxu0 %v801
    %3599 = vmatprep.subr.mxu0 %v805
    %3600 = vmatpush1.msra.mxu0 %v804
    %3601 = vmatprep.subr.mxu0 %v808
    %3602 = vmatpush1.msra.mxu0 %v807
    %3603 = vmatprep.subr.mxu0 %v811
    %3604 = vmatpush1.msra.mxu0 %v810
    %3605 = vmatprep.subr.mxu0 %v814
    %3606 = vmatpush1.msra.mxu0 %v813
    %3607 = vmatprep.subr.mxu0 %v817
    %3608 = vmatpush1.msra.mxu0 %v816
    %3609 = vmatprep.subr.mxu0 %v820
    %3610 = vmatpush1.msra.mxu0 %v819
    %3611 = vmatprep.subr.mxu0 %v823
    %3612 = vmatpush1.msra.mxu0 %v822
    %3613 = vmatprep.subr.mxu0 %v826
    %3614 = vmatpush1.msra.mxu0 %v825
    %3615 = vmatprep.subr.mxu0 %v829
    %3616 = vmatpush1.msra.mxu0 %v828
    %3617 = vmatprep.subr.mxu0 %v832
    %3618 = vmatpush1.msra.mxu0 %v831
    %3619 = vmatprep.subr.mxu0 %v835
    %3620 = vmatpush1.msra.mxu0 %v834
    %3621 = vmatprep.subr.mxu0 %v838
    %3622 = vmatpush1.msra.mxu0 %v837
    %3623 = vmatprep.subr.mxu0 %v841
    %3624 = vmatpush1.msra.mxu0 %v840
    %3625 = vmatprep.subr.mxu0 %v844
    %3626 = vmatpush1.msra.mxu0 %v843
    %3627 = vmatprep.subr.mxu0 0.0
    %3628 = vmatpush1.msra.mxu0 0.0
    %3629 = vmatprep.subr.mxu0 0.0
    %3630 = vmatpush1.msra.mxu0 0.0
    %3631 = vmatprep.subr.mxu0 0.0
    %3632 = vmatpush1.msra.mxu0 0.0
    %3633 = vmatprep.subr.mxu0 0.0
    %3634 = vmatpush1.msra.mxu0 0.0
    %3635 = vmatprep.subr.mxu0 0.0
    %3636 = vmatpush1.msra.mxu0 0.0
    %3637 = vmatprep.subr.mxu0 0.0
    %3638 = vmatpush1.msra.mxu0 0.0
    %3639 = vmatprep.subr.mxu0 0.0
    %3640 = vmatpush1.msra.mxu0 0.0
    %3641 = vmatprep.subr.mxu0 0.0
    %3642 = vmatpush1.msra.mxu0 0.0
    %3643 = vmatprep.subr.mxu0 0.0
    %3644 = vmatpush1.msra.mxu0 0.0
    %3645 = vmatprep.subr.mxu0 0.0
    %3646 = vmatpush1.msra.mxu0 0.0
    %3647 = vmatprep.subr.mxu0 0.0
    %3648 = vmatpush1.msra.mxu0 0.0
    %3649 = vmatprep.subr.mxu0 0.0
    %3650 = vmatpush1.msra.mxu0 0.0
    %3651 = vmatprep.subr.mxu0 0.0
    %3652 = vmatpush1.msra.mxu0 0.0
    %3653 = vmatprep.subr.mxu0 0.0
    %3654 = vmatpush1.msra.mxu0 0.0
    %3655 = vmatprep.subr.mxu0 0.0
    %3656 = vmatpush1.msra.mxu0 0.0
    %3657 = vmatprep.subr.mxu0 0.0
    %3658 = vmatpush1.msra.mxu0 0.0
    %3659 = vmatprep.mubr.f32.mxu0 0.0
    %3660 = vmatmul.mubr.f32.gmra.mrb[0].mxu0 %v3593
    %v3661 = vpop.f32.mrb[0].mxu0
    %v3662 = vadd.f32 %v1062, %v3661
    %v3663 = vpop.f32.mrb[0].mxu0
    %v3664 = vadd.f32 %v1066, %v3663
    %3665 = vdwg.mxu0
    %3666 = vmatprep.subr.mxu0 0.0
    %3667 = vmatpush1.msra.mxu0 %v800
    %3668 = vmatprep.subr.mxu0 0.0
    %3669 = vmatpush1.msra.mxu0 %v803
    %3670 = vmatprep.subr.mxu0 0.0
    %3671 = vmatpush1.msra.mxu0 %v806
    %3672 = vmatprep.subr.mxu0 0.0
    %3673 = vmatpush1.msra.mxu0 %v809
    %3674 = vmatprep.subr.mxu0 0.0
    %3675 = vmatpush1.msra.mxu0 %v812
    %3676 = vmatprep.subr.mxu0 0.0
    %3677 = vmatpush1.msra.mxu0 %v815
    %3678 = vmatprep.subr.mxu0 0.0
    %3679 = vmatpush1.msra.mxu0 %v818
    %3680 = vmatprep.subr.mxu0 0.0
    %3681 = vmatpush1.msra.mxu0 %v821
    %3682 = vmatprep.subr.mxu0 0.0
    %3683 = vmatpush1.msra.mxu0 %v824
    %3684 = vmatprep.subr.mxu0 0.0
    %3685 = vmatpush1.msra.mxu0 %v827
    %3686 = vmatprep.subr.mxu0 0.0
    %3687 = vmatpush1.msra.mxu0 %v830
    %3688 = vmatprep.subr.mxu0 0.0
    %3689 = vmatpush1.msra.mxu0 %v833
    %3690 = vmatprep.subr.mxu0 0.0
    %3691 = vmatpush1.msra.mxu0 %v836
    %3692 = vmatprep.subr.mxu0 0.0
    %3693 = vmatpush1.msra.mxu0 %v839
    %3694 = vmatprep.subr.mxu0 0.0
    %3695 = vmatpush1.msra.mxu0 %v842
    %3696 = vmatprep.subr.mxu0 0.0
    %3697 = vmatpush1.msra.mxu0 %v845
    %3698 = vmatprep.subr.mxu0 0.0
    %3699 = vmatpush1.msra.mxu0 0.0
    %3700 = vmatprep.subr.mxu0 0.0
    %3701 = vmatpush1.msra.mxu0 0.0
    %3702 = vmatprep.subr.mxu0 0.0
    %3703 = vmatpush1.msra.mxu0 0.0
    %3704 = vmatprep.subr.mxu0 0.0
    %3705 = vmatpush1.msra.mxu0 0.0
    %3706 = vmatprep.subr.mxu0 0.0
    %3707 = vmatpush1.msra.mxu0 0.0
    %3708 = vmatprep.subr.mxu0 0.0
    %3709 = vmatpush1.msra.mxu0 0.0
    %3710 = vmatprep.subr.mxu0 0.0
    %3711 = vmatpush1.msra.mxu0 0.0
    %3712 = vmatprep.subr.mxu0 0.0
    %3713 = vmatpush1.msra.mxu0 0.0
    %3714 = vmatprep.subr.mxu0 0.0
    %3715 = vmatpush1.msra.mxu0 0.0
    %3716 = vmatprep.subr.mxu0 0.0
    %3717 = vmatpush1.msra.mxu0 0.0
    %3718 = vmatprep.subr.mxu0 0.0
    %3719 = vmatpush1.msra.mxu0 0.0
    %3720 = vmatprep.subr.mxu0 0.0
    %3721 = vmatpush1.msra.mxu0 0.0
    %3722 = vmatprep.subr.mxu0 0.0
    %3723 = vmatpush1.msra.mxu0 0.0
    %3724 = vmatprep.subr.mxu0 0.0
    %3725 = vmatpush1.msra.mxu0 0.0
    %3726 = vmatprep.subr.mxu0 0.0
    %3727 = vmatpush1.msra.mxu0 0.0
    %3728 = vmatprep.subr.mxu0 0.0
    %3729 = vmatpush1.msra.mxu0 0.0
    %3730 = vmatprep.mubr.f32.mxu0 0.0
    %3731 = vmatmul.mubr.f32.gmra.mrb[0].mxu0 %v3593
    %v3732 = vpop.f32.mrb[0].mxu0
    %v3733 = vadd.f32 %v1070, %v3732
    %v3734 = vpop.f32.mrb[0].mxu0
    %3735 = vdwg.mxu0
    %v3737 = vrot.slane %v3662, 7
    %v3740 = vadd.f32 %v664, %v3737
    %v3741 = vadd.f32 %v670, %v3662
    %v3742 = vxor.u32 %v3740, 2147483648
    %v3743 = vxor.u32 %v3741, 2147483648
    %v3744 = vmul.f32 %v3742, 1.442695
    %v3745 = vpow.pop %v3744
    %v3746 = vmul.f32 %v3743, 1.442695
    %v3747 = vpow.pop %v3746
    %v3748 = vadd.f32 %v3745, 1.0
    %v3749 = vadd.f32 %v3747, 1.0
    %v3750 = vrcp.pop %v3748
    %v3751 = vmul.f32 1.0, %v3750
    %v3752 = vrcp.pop %v3749
    %v3753 = vmul.f32 1.0, %v3752
    %v3755 = vrot.slane %v3664, 7
    %v3758 = vadd.f32 %v739, %v3755
    %v3759 = vadd.f32 %v745, %v3664
    %v3760 = vxor.u32 %v3758, 2147483648
    %v3761 = vxor.u32 %v3759, 2147483648
    %v3762 = vmul.f32 %v3760, 1.442695
    %v3763 = vpow.pop %v3762
    %v3764 = vmul.f32 %v3761, 1.442695
    %v3765 = vpow.pop %v3764
    %v3766 = vadd.f32 %v3763, 1.0
    %v3767 = vadd.f32 %v3765, 1.0
    %v3768 = vrcp.pop %v3766
    %v3769 = vmul.f32 1.0, %v3768
    %v3770 = vrcp.pop %v3767
    %v3771 = vmul.f32 1.0, %v3770
    %v3773 = vrot.slane %v3733, 7
    %v3776 = vmul.f32 %v3751, %v3773
    %v3777 = vmul.f32 %v3753, %v3733
    %v3778 = vadd.f32 %v741, %v3776
    %v3779 = vadd.f32 %v747, %v3777
    %v3780 = vtanh.pop %v3778
    %v3781 = vtanh.pop %v3779
    %v3782 = vsub.f32 1.0, %v3769
    %v3783 = vsub.f32 1.0, %v3771
    %v3784 = vmul.f32 %v3782, %v3780
    %v3785 = vmul.f32 %v3783, %v3781
    %v3786 = vrot.slane %v3379, 1
    %v3789 = vmul.f32 %v3769, %v3786
    %v3790 = vmul.f32 %v3771, %v3592
    %v3791 = vadd.f32 %v3784, %v3789
    %v3792 = vadd.f32 %v3785, %v3790
    %v3793 = vsel %vm1280, %v3587, %v3581
    %v3794 = vsel %vm1281, %v3588, %v3582
    %v3795 = vsel %vm1280, %v3791, %v3786
    %v3796 = vsel %vm1281, %v3792, %v3592
    %v3799 = vrot.slane %v3793, 6
    %v3800 = vrot.slane %v3794, 5
    %v3801 = vsel %vm1289, %v3800, %v3799
    %3803 = vmatprep.subr.mxu0 %v750
    %3804 = vmatpush1.msra.mxu0 %v749
    %3805 = vmatprep.subr.mxu0 %v753
    %3806 = vmatpush1.msra.mxu0 %v752
    %3807 = vmatprep.subr.mxu0 %v756
    %3808 = vmatpush1.msra.mxu0 %v755
    %3809 = vmatprep.subr.mxu0 %v759
    %3810 = vmatpush1.msra.mxu0 %v758
    %3811 = vmatprep.subr.mxu0 %v762
    %3812 = vmatpush1.msra.mxu0 %v761
    %3813 = vmatprep.subr.mxu0 %v765
    %3814 = vmatpush1.msra.mxu0 %v764
    %3815 = vmatprep.subr.mxu0 %v768
    %3816 = vmatpush1.msra.mxu0 %v767
    %3817 = vmatprep.subr.mxu0 %v771
    %3818 = vmatpush1.msra.mxu0 %v770
    %3819 = vmatprep.subr.mxu0 %v774
    %3820 = vmatpush1.msra.mxu0 %v773
    %3821 = vmatprep.subr.mxu0 %v777
    %3822 = vmatpush1.msra.mxu0 %v776
    %3823 = vmatprep.subr.mxu0 %v780
    %3824 = vmatpush1.msra.mxu0 %v779
    %3825 = vmatprep.subr.mxu0 %v783
    %3826 = vmatpush1.msra.mxu0 %v782
    %3827 = vmatprep.subr.mxu0 %v786
    %3828 = vmatpush1.msra.mxu0 %v785
    %3829 = vmatprep.subr.mxu0 %v789
    %3830 = vmatpush1.msra.mxu0 %v788
    %3831 = vmatprep.subr.mxu0 %v792
    %3832 = vmatpush1.msra.mxu0 %v791
    %3833 = vmatprep.subr.mxu0 %v795
    %3834 = vmatpush1.msra.mxu0 %v794
    %3835 = vmatprep.subr.mxu0 0.0
    %3836 = vmatpush1.msra.mxu0 0.0
    %3837 = vmatprep.subr.mxu0 0.0
    %3838 = vmatpush1.msra.mxu0 0.0
    %3839 = vmatprep.subr.mxu0 0.0
    %3840 = vmatpush1.msra.mxu0 0.0
    %3841 = vmatprep.subr.mxu0 0.0
    %3842 = vmatpush1.msra.mxu0 0.0
    %3843 = vmatprep.subr.mxu0 0.0
    %3844 = vmatpush1.msra.mxu0 0.0
    %3845 = vmatprep.subr.mxu0 0.0
    %3846 = vmatpush1.msra.mxu0 0.0
    %3847 = vmatprep.subr.mxu0 0.0
    %3848 = vmatpush1.msra.mxu0 0.0
    %3849 = vmatprep.subr.mxu0 0.0
    %3850 = vmatpush1.msra.mxu0 0.0
    %3851 = vmatprep.subr.mxu0 0.0
    %3852 = vmatpush1.msra.mxu0 0.0
    %3853 = vmatprep.subr.mxu0 0.0
    %3854 = vmatpush1.msra.mxu0 0.0
    %3855 = vmatprep.subr.mxu0 0.0
    %3856 = vmatpush1.msra.mxu0 0.0
    %3857 = vmatprep.subr.mxu0 0.0
    %3858 = vmatpush1.msra.mxu0 0.0
    %3859 = vmatprep.subr.mxu0 0.0
    %3860 = vmatpush1.msra.mxu0 0.0
    %3861 = vmatprep.subr.mxu0 0.0
    %3862 = vmatpush1.msra.mxu0 0.0
    %3863 = vmatprep.subr.mxu0 0.0
    %3864 = vmatpush1.msra.mxu0 0.0
    %3865 = vmatprep.subr.mxu0 0.0
    %3866 = vmatpush1.msra.mxu0 0.0
    %3867 = vmatprep.mubr.f32.mxu0 0.0
    %3868 = vmatmul.mubr.f32.gmra.mrb[0].mxu0 %v3801
    %v3869 = vpop.f32.mrb[0].mxu0
    %v3870 = vadd.f32 %v851, %v3869
    %v3871 = vpop.f32.mrb[0].mxu0
    %v3872 = vadd.f32 %v855, %v3871
    %3873 = vdwg.mxu0
    %3874 = vmatprep.subr.mxu0 0.0
    %3875 = vmatpush1.msra.mxu0 %v751
    %3876 = vmatprep.subr.mxu0 0.0
    %3877 = vmatpush1.msra.mxu0 %v754
    %3878 = vmatprep.subr.mxu0 0.0
    %3879 = vmatpush1.msra.mxu0 %v757
    %3880 = vmatprep.subr.mxu0 0.0
    %3881 = vmatpush1.msra.mxu0 %v760
    %3882 = vmatprep.subr.mxu0 0.0
    %3883 = vmatpush1.msra.mxu0 %v763
    %3884 = vmatprep.subr.mxu0 0.0
    %3885 = vmatpush1.msra.mxu0 %v766
    %3886 = vmatprep.subr.mxu0 0.0
    %3887 = vmatpush1.msra.mxu0 %v769
    %3888 = vmatprep.subr.mxu0 0.0
    %3889 = vmatpush1.msra.mxu0 %v772
    %3890 = vmatprep.subr.mxu0 0.0
    %3891 = vmatpush1.msra.mxu0 %v775
    %3892 = vmatprep.subr.mxu0 0.0
    %3893 = vmatpush1.msra.mxu0 %v778
    %3894 = vmatprep.subr.mxu0 0.0
    %3895 = vmatpush1.msra.mxu0 %v781
    %3896 = vmatprep.subr.mxu0 0.0
    %3897 = vmatpush1.msra.mxu0 %v784
    %3898 = vmatprep.subr.mxu0 0.0
    %3899 = vmatpush1.msra.mxu0 %v787
    %3900 = vmatprep.subr.mxu0 0.0
    %3901 = vmatpush1.msra.mxu0 %v790
    %3902 = vmatprep.subr.mxu0 0.0
    %3903 = vmatpush1.msra.mxu0 %v793
    %3904 = vmatprep.subr.mxu0 0.0
    %3905 = vmatpush1.msra.mxu0 %v796
    %3906 = vmatprep.subr.mxu0 0.0
    %3907 = vmatpush1.msra.mxu0 0.0
    %3908 = vmatprep.subr.mxu0 0.0
    %3909 = vmatpush1.msra.mxu0 0.0
    %3910 = vmatprep.subr.mxu0 0.0
    %3911 = vmatpush1.msra.mxu0 0.0
    %3912 = vmatprep.subr.mxu0 0.0
    %3913 = vmatpush1.msra.mxu0 0.0
    %3914 = vmatprep.subr.mxu0 0.0
    %3915 = vmatpush1.msra.mxu0 0.0
    %3916 = vmatprep.subr.mxu0 0.0
    %3917 = vmatpush1.msra.mxu0 0.0
    %3918 = vmatprep.subr.mxu0 0.0
    %3919 = vmatpush1.msra.mxu0 0.0
    %3920 = vmatprep.subr.mxu0 0.0
    %3921 = vmatpush1.msra.mxu0 0.0
    %3922 = vmatprep.subr.mxu0 0.0
    %3923 = vmatpush1.msra.mxu0 0.0
    %3924 = vmatprep.subr.mxu0 0.0
    %3925 = vmatpush1.msra.mxu0 0.0
    %3926 = vmatprep.subr.mxu0 0.0
    %3927 = vmatpush1.msra.mxu0 0.0
    %3928 = vmatprep.subr.mxu0 0.0
    %3929 = vmatpush1.msra.mxu0 0.0
    %3930 = vmatprep.subr.mxu0 0.0
    %3931 = vmatpush1.msra.mxu0 0.0
    %3932 = vmatprep.subr.mxu0 0.0
    %3933 = vmatpush1.msra.mxu0 0.0
    %3934 = vmatprep.subr.mxu0 0.0
    %3935 = vmatpush1.msra.mxu0 0.0
    %3936 = vmatprep.subr.mxu0 0.0
    %3937 = vmatpush1.msra.mxu0 0.0
    %3938 = vmatprep.mubr.f32.mxu0 0.0
    %3939 = vmatmul.mubr.f32.gmra.mrb[0].mxu0 %v3801
    %v3940 = vpop.f32.mrb[0].mxu0
    %v3941 = vadd.f32 %v859, %v3940
    %v3942 = vpop.f32.mrb[0].mxu0
    %3943 = vdwg.mxu0
    %v3945 = vrot.slane %v3870, 1
    %v3946 = vrot.slane %v3870, 2
    %v3949 = vadd.f32 %v585, %v3945
    %v3950 = vadd.f32 %v591, %v3946
    %v3951 = vxor.u32 %v3949, 2147483648
    %v3952 = vxor.u32 %v3950, 2147483648
    %v3953 = vmul.f32 %v3951, 1.442695
    %v3954 = vpow.pop %v3953
    %v3955 = vmul.f32 %v3952, 1.442695
    %v3956 = vpow.pop %v3955
    %v3957 = vadd.f32 %v3954, 1.0
    %v3958 = vadd.f32 %v3956, 1.0
    %v3959 = vrcp.pop %v3957
    %v3960 = vmul.f32 1.0, %v3959
    %v3961 = vrcp.pop %v3958
    %v3962 = vmul.f32 1.0, %v3961
    %v3964 = vrot.slane %v3872, 1
    %v3965 = vrot.slane %v3872, 2
    %v3968 = vadd.f32 %v587, %v3964
    %v3969 = vadd.f32 %v593, %v3965
    %v3970 = vxor.u32 %v3968, 2147483648
    %v3971 = vxor.u32 %v3969, 2147483648
    %v3972 = vmul.f32 %v3970, 1.442695
    %v3973 = vpow.pop %v3972
    %v3974 = vmul.f32 %v3971, 1.442695
    %v3975 = vpow.pop %v3974
    %v3976 = vadd.f32 %v3973, 1.0
    %v3977 = vadd.f32 %v3975, 1.0
    %v3978 = vrcp.pop %v3976
    %v3979 = vmul.f32 1.0, %v3978
    %v3980 = vrcp.pop %v3977
    %v3981 = vmul.f32 1.0, %v3980
    %v3983 = vrot.slane %v3941, 1
    %v3984 = vrot.slane %v3941, 2
    %v3987 = vmul.f32 %v3960, %v3983
    %v3988 = vmul.f32 %v3962, %v3984
    %v3989 = vadd.f32 %v662, %v3987
    %v3990 = vadd.f32 %v668, %v3988
    %v3991 = vtanh.pop %v3989
    %v3992 = vtanh.pop %v3990
    %v3993 = vsub.f32 1.0, %v3979
    %v3994 = vsub.f32 1.0, %v3981
    %v3995 = vmul.f32 %v3993, %v3991
    %v3996 = vmul.f32 %v3994, %v3992
    %v3997 = vrot.slane %v3793, 7
    %v3998 = vrot.slane %v3794, 7
    %v4001 = vmul.f32 %v3979, %v3997
    %v4002 = vmul.f32 %v3981, %v3998
    %v4003 = vadd.f32 %v3995, %v4001
    %v4004 = vadd.f32 %v3996, %v4002
    %v4007 = vrot.slane %v3795, 1
    %v4008 = vsel %vm1289, %v3796, %v4007
    %4010 = vmatprep.subr.mxu0 %v799
    %4011 = vmatpush1.msra.mxu0 %v798
    %4012 = vmatprep.subr.mxu0 %v802
    %4013 = vmatpush1.msra.mxu0 %v801
    %4014 = vmatprep.subr.mxu0 %v805
    %4015 = vmatpush1.msra.mxu0 %v804
    %4016 = vmatprep.subr.mxu0 %v808
    %4017 = vmatpush1.msra.mxu0 %v807
    %4018 = vmatprep.subr.mxu0 %v811
    %4019 = vmatpush1.msra.mxu0 %v810
    %4020 = vmatprep.subr.mxu0 %v814
    %4021 = vmatpush1.msra.mxu0 %v813
    %4022 = vmatprep.subr.mxu0 %v817
    %4023 = vmatpush1.msra.mxu0 %v816
    %4024 = vmatprep.subr.mxu0 %v820
    %4025 = vmatpush1.msra.mxu0 %v819
    %4026 = vmatprep.subr.mxu0 %v823
    %4027 = vmatpush1.msra.mxu0 %v822
    %4028 = vmatprep.subr.mxu0 %v826
    %4029 = vmatpush1.msra.mxu0 %v825
    %4030 = vmatprep.subr.mxu0 %v829
    %4031 = vmatpush1.msra.mxu0 %v828
    %4032 = vmatprep.subr.mxu0 %v832
    %4033 = vmatpush1.msra.mxu0 %v831
    %4034 = vmatprep.subr.mxu0 %v835
    %4035 = vmatpush1.msra.mxu0 %v834
    %4036 = vmatprep.subr.mxu0 %v838
    %4037 = vmatpush1.msra.mxu0 %v837
    %4038 = vmatprep.subr.mxu0 %v841
    %4039 = vmatpush1.msra.mxu0 %v840
    %4040 = vmatprep.subr.mxu0 %v844
    %4041 = vmatpush1.msra.mxu0 %v843
    %4042 = vmatprep.subr.mxu0 0.0
    %4043 = vmatpush1.msra.mxu0 0.0
    %4044 = vmatprep.subr.mxu0 0.0
    %4045 = vmatpush1.msra.mxu0 0.0
    %4046 = vmatprep.subr.mxu0 0.0
    %4047 = vmatpush1.msra.mxu0 0.0
    %4048 = vmatprep.subr.mxu0 0.0
    %4049 = vmatpush1.msra.mxu0 0.0
    %4050 = vmatprep.subr.mxu0 0.0
    %4051 = vmatpush1.msra.mxu0 0.0
    %4052 = vmatprep.subr.mxu0 0.0
    %4053 = vmatpush1.msra.mxu0 0.0
    %4054 = vmatprep.subr.mxu0 0.0
    %4055 = vmatpush1.msra.mxu0 0.0
    %4056 = vmatprep.subr.mxu0 0.0
    %4057 = vmatpush1.msra.mxu0 0.0
    %4058 = vmatprep.subr.mxu0 0.0
    %4059 = vmatpush1.msra.mxu0 0.0
    %4060 = vmatprep.subr.mxu0 0.0
    %4061 = vmatpush1.msra.mxu0 0.0
    %4062 = vmatprep.subr.mxu0 0.0
    %4063 = vmatpush1.msra.mxu0 0.0
    %4064 = vmatprep.subr.mxu0 0.0
    %4065 = vmatpush1.msra.mxu0 0.0
    %4066 = vmatprep.subr.mxu0 0.0
    %4067 = vmatpush1.msra.mxu0 0.0
    %4068 = vmatprep.subr.mxu0 0.0
    %4069 = vmatpush1.msra.mxu0 0.0
    %4070 = vmatprep.subr.mxu0 0.0
    %4071 = vmatpush1.msra.mxu0 0.0
    %4072 = vmatprep.subr.mxu0 0.0
    %4073 = vmatpush1.msra.mxu0 0.0
    %4074 = vmatprep.mubr.f32.mxu0 0.0
    %4075 = vmatmul.mubr.f32.gmra.mrb[0].mxu0 %v4008
    %v4076 = vpop.f32.mrb[0].mxu0
    %v4077 = vadd.f32 %v1062, %v4076
    %v4078 = vpop.f32.mrb[0].mxu0
    %v4079 = vadd.f32 %v1066, %v4078
    %4080 = vdwg.mxu0
    %4081 = vmatprep.subr.mxu0 0.0
    %4082 = vmatpush1.msra.mxu0 %v800
    %4083 = vmatprep.subr.mxu0 0.0
    %4084 = vmatpush1.msra.mxu0 %v803
    %4085 = vmatprep.subr.mxu0 0.0
    %4086 = vmatpush1.msra.mxu0 %v806
    %4087 = vmatprep.subr.mxu0 0.0
    %4088 = vmatpush1.msra.mxu0 %v809
    %4089 = vmatprep.subr.mxu0 0.0
    %4090 = vmatpush1.msra.mxu0 %v812
    %4091 = vmatprep.subr.mxu0 0.0
    %4092 = vmatpush1.msra.mxu0 %v815
    %4093 = vmatprep.subr.mxu0 0.0
    %4094 = vmatpush1.msra.mxu0 %v818
    %4095 = vmatprep.subr.mxu0 0.0
    %4096 = vmatpush1.msra.mxu0 %v821
    %4097 = vmatprep.subr.mxu0 0.0
    %4098 = vmatpush1.msra.mxu0 %v824
    %4099 = vmatprep.subr.mxu0 0.0
    %4100 = vmatpush1.msra.mxu0 %v827
    %4101 = vmatprep.subr.mxu0 0.0
    %4102 = vmatpush1.msra.mxu0 %v830
    %4103 = vmatprep.subr.mxu0 0.0
    %4104 = vmatpush1.msra.mxu0 %v833
    %4105 = vmatprep.subr.mxu0 0.0
    %4106 = vmatpush1.msra.mxu0 %v836
    %4107 = vmatprep.subr.mxu0 0.0
    %4108 = vmatpush1.msra.mxu0 %v839
    %4109 = vmatprep.subr.mxu0 0.0
    %4110 = vmatpush1.msra.mxu0 %v842
    %4111 = vmatprep.subr.mxu0 0.0
    %4112 = vmatpush1.msra.mxu0 %v845
    %4113 = vmatprep.subr.mxu0 0.0
    %4114 = vmatpush1.msra.mxu0 0.0
    %4115 = vmatprep.subr.mxu0 0.0
    %4116 = vmatpush1.msra.mxu0 0.0
    %4117 = vmatprep.subr.mxu0 0.0
    %4118 = vmatpush1.msra.mxu0 0.0
    %4119 = vmatprep.subr.mxu0 0.0
    %4120 = vmatpush1.msra.mxu0 0.0
    %4121 = vmatprep.subr.mxu0 0.0
    %4122 = vmatpush1.msra.mxu0 0.0
    %4123 = vmatprep.subr.mxu0 0.0
    %4124 = vmatpush1.msra.mxu0 0.0
    %4125 = vmatprep.subr.mxu0 0.0
    %4126 = vmatpush1.msra.mxu0 0.0
    %4127 = vmatprep.subr.mxu0 0.0
    %4128 = vmatpush1.msra.mxu0 0.0
    %4129 = vmatprep.subr.mxu0 0.0
    %4130 = vmatpush1.msra.mxu0 0.0
    %4131 = vmatprep.subr.mxu0 0.0
    %4132 = vmatpush1.msra.mxu0 0.0
    %4133 = vmatprep.subr.mxu0 0.0
    %4134 = vmatpush1.msra.mxu0 0.0
    %4135 = vmatprep.subr.mxu0 0.0
    %4136 = vmatpush1.msra.mxu0 0.0
    %4137 = vmatprep.subr.mxu0 0.0
    %4138 = vmatpush1.msra.mxu0 0.0
    %4139 = vmatprep.subr.mxu0 0.0
    %4140 = vmatpush1.msra.mxu0 0.0
    %4141 = vmatprep.subr.mxu0 0.0
    %4142 = vmatpush1.msra.mxu0 0.0
    %4143 = vmatprep.subr.mxu0 0.0
    %4144 = vmatpush1.msra.mxu0 0.0
    %4145 = vmatprep.mubr.f32.mxu0 0.0
    %4146 = vmatmul.mubr.f32.gmra.mrb[0].mxu0 %v4008
    %v4147 = vpop.f32.mrb[0].mxu0
    %v4148 = vadd.f32 %v1070, %v4147
    %v4149 = vpop.f32.mrb[0].mxu0
    %4150 = vdwg.mxu0
    %v4152 = vrot.slane %v4077, 1
    %v4155 = vadd.f32 %v664, %v4077
    %v4156 = vadd.f32 %v670, %v4152
    %v4157 = vxor.u32 %v4155, 2147483648
    %v4158 = vxor.u32 %v4156, 2147483648
    %v4159 = vmul.f32 %v4157, 1.442695
    %v4160 = vpow.pop %v4159
    %v4161 = vmul.f32 %v4158, 1.442695
    %v4162 = vpow.pop %v4161
    %v4163 = vadd.f32 %v4160, 1.0
    %v4164 = vadd.f32 %v4162, 1.0
    %v4165 = vrcp.pop %v4163
    %v4166 = vmul.f32 1.0, %v4165
    %v4167 = vrcp.pop %v4164
    %v4168 = vmul.f32 1.0, %v4167
    %v4170 = vrot.slane %v4079, 1
    %v4173 = vadd.f32 %v739, %v4079
    %v4174 = vadd.f32 %v745, %v4170
    %v4175 = vxor.u32 %v4173, 2147483648
    %v4176 = vxor.u32 %v4174, 2147483648
    %v4177 = vmul.f32 %v4175, 1.442695
    %v4178 = vpow.pop %v4177
    %v4179 = vmul.f32 %v4176, 1.442695
    %v4180 = vpow.pop %v4179
    %v4181 = vadd.f32 %v4178, 1.0
    %v4182 = vadd.f32 %v4180, 1.0
    %v4183 = vrcp.pop %v4181
    %v4184 = vmul.f32 1.0, %v4183
    %v4185 = vrcp.pop %v4182
    %v4186 = vmul.f32 1.0, %v4185
    %v4188 = vrot.slane %v4148, 1
    %v4191 = vmul.f32 %v4166, %v4148
    %v4192 = vmul.f32 %v4168, %v4188
    %v4193 = vadd.f32 %v741, %v4191
    %v4194 = vadd.f32 %v747, %v4192
    %v4195 = vtanh.pop %v4193
    %v4196 = vtanh.pop %v4194
    %v4197 = vsub.f32 1.0, %v4184
    %v4198 = vsub.f32 1.0, %v4186
    %v4199 = vmul.f32 %v4197, %v4195
    %v4200 = vmul.f32 %v4198, %v4196
    %v4201 = vrot.slane %v3796, 1
    %v4204 = vmul.f32 %v4184, %v4007
    %v4205 = vmul.f32 %v4186, %v4201
    %v4206 = vadd.f32 %v4199, %v4204
    %v4207 = vadd.f32 %v4200, %v4205
    %v4208 = vsel %vm1280, %v4003, %v3997
    %v4209 = vsel %vm1281, %v4004, %v3998
    %v4210 = vsel %vm1280, %v4206, %v4007
    %v4211 = vsel %vm1281, %v4207, %v4201
    %v4214 = vrot.slane %v4209, 7
    %v4219 = vrot.slane %v4210, 1
    %v4222 = vld [vmem:[%s33] sm:$0xff]
    %v4223 = vld [vmem:[%s33 + $0x8] sm:$0xff]
    %v4224 = vld [vmem:[%s33 + $0x10] sm:$0xff]
    %v4225 = vld [vmem:[%s33 + $0x18] sm:$0xff]
    %v4226 = vld [vmem:[%s33 + $0x20] sm:$0xff]
    %v4227 = vld [vmem:[%s33 + $0x28] sm:$0xff]
    %v4228 = vld [vmem:[%s33 + $0x30] sm:$0xff]
    %v4229 = vld [vmem:[%s33 + $0x38] sm:$0xff]
    %v4230 = vld [vmem:[%s33 + $0x40] sm:$0xff]
    %v4231 = vld [vmem:[%s33 + $0x48] sm:$0xff]
    %v4232 = vld [vmem:[%s33 + $0x50] sm:$0xff]
    %v4233 = vld [vmem:[%s33 + $0x58] sm:$0xff]
    %v4234 = vld [vmem:[%s33 + $0x60] sm:$0xff]
    %v4235 = vld [vmem:[%s33 + $0x68] sm:$0xff]
    %v4236 = vld [vmem:[%s33 + $0x70] sm:$0xff]
    %v4237 = vld [vmem:[%s33 + $0x78] sm:$0xff]
    %4238 = vmatprep.subr.mxu0 0.0
    %4239 = vmatpush1.msra.mxu0 %v4222
    %4240 = vmatprep.subr.mxu0 0.0
    %4241 = vmatpush1.msra.mxu0 %v4223
    %4242 = vmatprep.subr.mxu0 0.0
    %4243 = vmatpush1.msra.mxu0 %v4224
    %4244 = vmatprep.subr.mxu0 0.0
    %4245 = vmatpush1.msra.mxu0 %v4225
    %4246 = vmatprep.subr.mxu0 0.0
    %4247 = vmatpush1.msra.mxu0 %v4226
    %4248 = vmatprep.subr.mxu0 0.0
    %4249 = vmatpush1.msra.mxu0 %v4227
    %4250 = vmatprep.subr.mxu0 0.0
    %4251 = vmatpush1.msra.mxu0 %v4228
    %4252 = vmatprep.subr.mxu0 0.0
    %4253 = vmatpush1.msra.mxu0 %v4229
    %4254 = vmatprep.subr.mxu0 0.0
    %4255 = vmatpush1.msra.mxu0 %v4230
    %4256 = vmatprep.subr.mxu0 0.0
    %4257 = vmatpush1.msra.mxu0 %v4231
    %4258 = vmatprep.subr.mxu0 0.0
    %4259 = vmatpush1.msra.mxu0 %v4232
    %4260 = vmatprep.subr.mxu0 0.0
    %4261 = vmatpush1.msra.mxu0 %v4233
    %4262 = vmatprep.subr.mxu0 0.0
    %4263 = vmatpush1.msra.mxu0 %v4234
    %4264 = vmatprep.subr.mxu0 0.0
    %4265 = vmatpush1.msra.mxu0 %v4235
    %4266 = vmatprep.subr.mxu0 0.0
    %4267 = vmatpush1.msra.mxu0 %v4236
    %4268 = vmatprep.subr.mxu0 0.0
    %4269 = vmatpush1.msra.mxu0 %v4237
    %4270 = vmatprep.subr.mxu0 0.0
    %4271 = vmatpush1.msra.mxu0 0.0
    %4272 = vmatprep.subr.mxu0 0.0
    %4273 = vmatpush1.msra.mxu0 0.0
    %4274 = vmatprep.subr.mxu0 0.0
    %4275 = vmatpush1.msra.mxu0 0.0
    %4276 = vmatprep.subr.mxu0 0.0
    %4277 = vmatpush1.msra.mxu0 0.0
    %4278 = vmatprep.subr.mxu0 0.0
    %4279 = vmatpush1.msra.mxu0 0.0
    %4280 = vmatprep.subr.mxu0 0.0
    %4281 = vmatpush1.msra.mxu0 0.0
    %4282 = vmatprep.subr.mxu0 0.0
    %4283 = vmatpush1.msra.mxu0 0.0
    %4284 = vmatprep.subr.mxu0 0.0
    %4285 = vmatpush1.msra.mxu0 0.0
    %4286 = vmatprep.subr.mxu0 0.0
    %4287 = vmatpush1.msra.mxu0 0.0
    %4288 = vmatprep.subr.mxu0 0.0
    %4289 = vmatpush1.msra.mxu0 0.0
    %4290 = vmatprep.subr.mxu0 0.0
    %4291 = vmatpush1.msra.mxu0 0.0
    %4292 = vmatprep.subr.mxu0 0.0
    %4293 = vmatpush1.msra.mxu0 0.0
    %4294 = vmatprep.subr.mxu0 0.0
    %4295 = vmatpush1.msra.mxu0 0.0
    %4296 = vmatprep.subr.mxu0 0.0
    %4297 = vmatpush1.msra.mxu0 0.0
    %4298 = vmatprep.subr.mxu0 0.0
    %4299 = vmatpush1.msra.mxu0 0.0
    %4300 = vmatprep.subr.mxu0 0.0
    %4301 = vmatpush1.msra.mxu0 0.0
    %4302 = vmatprep.mubr.f32.mxu0 0.0
    %4303 = vmatmul.mubr.f32.gmra.mrb[0].mxu0 %v353
    %v4304 = vpop.f32.mrb[0].mxu0
    %v4305 = vadd.f32 0.0, %v4304
    %v4306 = vpop.f32.mrb[0].mxu0
    %4307 = vmatprep.mubr.f32.mxu0 0.0
    %4308 = vmatmul.mubr.f32.gmra.mrb[0].mxu0 %v354
    %v4309 = vpop.f32.mrb[0].mxu0
    %v4310 = vadd.f32 0.0, %v4309
    %v4311 = vpop.f32.mrb[0].mxu0
    %4312 = vdwg.mxu0
    %v4313 = vtanh.pop %v4305
    %v4314 = vtanh.pop %v4310
    %v4315 = vld [vmem:[%s35] sm:$0x1]
    %v4317 = vlaneseq
    %v4318 = vshrl.u32 %v4317, 7
    %v4319 = vsub.s32 0, %v4318
    %v4320 = vrot.slane %v4315, %v4319
    %v4322 = vmul.f32 %v4313, %v4320
    %v4323 = vmul.f32 %v4314, %v4320
    %vm4324 = vcmask 523264
    %v4325 = vsel %vm4324, %v4322, 0.0
    %4326 = vadd.xlane.f32.xlu0 %v4325
    %v4327 = vpop.xlane.xlu0 %4326
    %v4328 = vsel %vm4324, %v4323, 0.0
    %4329 = vadd.xlane.f32.xlu0 %v4328
    %v4330 = vpop.xlane.xlu0 %4329
    %v4331 = vsel %vm388, %v4327, -inf
    %v4332 = vsel %vm389, %v4330, -inf
    %v4333 = vsel %vm121, %v4331, -inf
    %v4334 = vrot.slane %v4333, 4
    %v4335 = vmax.f32 %v4333, %v4334
    %v4336 = vrot.slane %v4335, 2
    %v4337 = vmax.f32 %v4335, %v4336
    %v4338 = vrot.slane %v4337, 1
    %v4339 = vmax.f32 %v4337, %v4338
    %v4340 = vsel %vm121, %v4332, -inf
    %v4341 = vrot.slane %v4340, 4
    %v4342 = vmax.f32 %v4340, %v4341
    %v4343 = vrot.slane %v4342, 2
    %v4344 = vmax.f32 %v4342, %v4343
    %v4345 = vrot.slane %v4344, 1
    %v4346 = vmax.f32 %v4344, %v4345
    %v4347 = vsub.f32 %v4331, %v4339
    %v4348 = vsub.f32 %v4332, %v4346
    %v4349 = vmul.f32 %v4347, 1.442695
    %v4350 = vpow.pop %v4349
    %v4351 = vmul.f32 %v4348, 1.442695
    %v4352 = vpow.pop %v4351
    %v4353 = vsel %vm121, %v4350, 0.0
    %v4354 = vrot.slane %v4353, 4
    %v4355 = vadd.f32 %v4353, %v4354
    %v4356 = vrot.slane %v4355, 2
    %v4357 = vadd.f32 %v4355, %v4356
    %v4358 = vrot.slane %v4357, 1
    %v4359 = vadd.f32 %v4357, %v4358
    %v4360 = vsel %vm121, %v4352, 0.0
    %v4361 = vrot.slane %v4360, 4
    %v4362 = vadd.f32 %v4360, %v4361
    %v4363 = vrot.slane %v4362, 2
    %v4364 = vadd.f32 %v4362, %v4363
    %v4365 = vrot.slane %v4364, 1
    %v4366 = vadd.f32 %v4364, %v4365
    %v4367 = vrcp.pop %v4359
    %v4368 = vmul.f32 %v4350, %v4367
    %v4369 = vrcp.pop %v4366
    %v4370 = vmul.f32 %v4352, %v4369
    %4371 = vst.msk [vmem:[%s57] sm:$0xff] %vm121, %v4368
    %4372 = vst.msk [vmem:[%s57 + $0x8] sm:$0xff] %vm121, %v4370
    %4374 = vset.pattern.permute.xlu0 0
    %4375 = vperm.xlu0 %4374, %v4368
    %v4376 = vpop.permute.xlu0 %4375
    %4379 = vset.pattern.permute.xlu0 0
    %4380 = vperm.xlu0 %4379, %v4370
    %v4381 = vpop.permute.xlu0 %4380
    %v4383 = vmul.f32 %v4376, %v353
    %v4384 = vmul.f32 %v4381, %v354
    %v4385 = vrot.slane %v4383, 4
    %v4386 = vadd.f32 %v4383, %v4385
    %v4387 = vrot.slane %v4386, 2
    %v4388 = vadd.f32 %v4386, %v4387
    %v4389 = vrot.slane %v4388, 1
    %v4390 = vadd.f32 %v4388, %v4389
    %v4391 = vrot.slane %v4384, 4
    %v4392 = vadd.f32 %v4384, %v4391
    %v4393 = vrot.slane %v4392, 2
    %v4394 = vadd.f32 %v4392, %v4393
    %v4395 = vrot.slane %v4394, 1
    %v4396 = vadd.f32 %v4394, %v4395
    %v4397 = vld [vmem:[%s37] sm:$0xff]
    %v4398 = vld [vmem:[%s37 + $0x8] sm:$0xff]
    %v4399 = vld [vmem:[%s37 + $0x10] sm:$0xff]
    %v4400 = vld [vmem:[%s37 + $0x18] sm:$0xff]
    %v4401 = vld [vmem:[%s37 + $0x20] sm:$0xff]
    %v4402 = vld [vmem:[%s37 + $0x28] sm:$0xff]
    %v4403 = vld [vmem:[%s37 + $0x30] sm:$0xff]
    %v4404 = vld [vmem:[%s37 + $0x38] sm:$0xff]
    %v4405 = vld [vmem:[%s37 + $0x40] sm:$0xff]
    %v4406 = vld [vmem:[%s37 + $0x48] sm:$0xff]
    %v4407 = vld [vmem:[%s37 + $0x50] sm:$0xff]
    %v4408 = vld [vmem:[%s37 + $0x58] sm:$0xff]
    %v4409 = vld [vmem:[%s37 + $0x60] sm:$0xff]
    %v4410 = vld [vmem:[%s37 + $0x68] sm:$0xff]
    %v4411 = vld [vmem:[%s37 + $0x70] sm:$0xff]
    %v4412 = vld [vmem:[%s37 + $0x78] sm:$0xff]
    %v4413 = vld [vmem:[%s37 + $0x80] sm:$0xff]
    %v4414 = vld [vmem:[%s37 + $0x88] sm:$0xff]
    %v4415 = vld [vmem:[%s37 + $0x90] sm:$0xff]
    %v4416 = vld [vmem:[%s37 + $0x98] sm:$0xff]
    %v4417 = vld [vmem:[%s37 + $0xa0] sm:$0xff]
    %v4418 = vld [vmem:[%s37 + $0xa8] sm:$0xff]
    %v4419 = vld [vmem:[%s37 + $0xb0] sm:$0xff]
    %v4420 = vld [vmem:[%s37 + $0xb8] sm:$0xff]
    %v4421 = vld [vmem:[%s37 + $0xc0] sm:$0xff]
    %v4422 = vld [vmem:[%s37 + $0xc8] sm:$0xff]
    %v4423 = vld [vmem:[%s37 + $0xd0] sm:$0xff]
    %v4424 = vld [vmem:[%s37 + $0xd8] sm:$0xff]
    %v4425 = vld [vmem:[%s37 + $0xe0] sm:$0xff]
    %v4426 = vld [vmem:[%s37 + $0xe8] sm:$0xff]
    %v4427 = vld [vmem:[%s37 + $0xf0] sm:$0xff]
    %v4428 = vld [vmem:[%s37 + $0xf8] sm:$0xff]
    %v4429 = vld [vmem:[%s39] sm:$0x3]
    %v4431 = vlaneseq
    %v4432 = vshrl.u32 %v4431, 7
    %v4433 = vsub.s32 0, %v4432
    %v4434 = vrot.slane %v4429, %v4433
    %v4435 = vlaneseq
    %v4436 = vshrl.u32 %v4435, 7
    %v4437 = vsub.s32 1, %v4436
    %v4438 = vrot.slane %v4429, %v4437
    %v4443 = vsel %vm1289, %v4396, %v4390
    %4445 = vmatprep.subr.mxu0 %v4398
    %4446 = vmatpush1.msra.mxu0 %v4397
    %4447 = vmatprep.subr.mxu0 %v4400
    %4448 = vmatpush1.msra.mxu0 %v4399
    %4449 = vmatprep.subr.mxu0 %v4402
    %4450 = vmatpush1.msra.mxu0 %v4401
    %4451 = vmatprep.subr.mxu0 %v4404
    %4452 = vmatpush1.msra.mxu0 %v4403
    %4453 = vmatprep.subr.mxu0 %v4406
    %4454 = vmatpush1.msra.mxu0 %v4405
    %4455 = vmatprep.subr.mxu0 %v4408
    %4456 = vmatpush1.msra.mxu0 %v4407
    %4457 = vmatprep.subr.mxu0 %v4410
    %4458 = vmatpush1.msra.mxu0 %v4409
    %4459 = vmatprep.subr.mxu0 %v4412
    %4460 = vmatpush1.msra.mxu0 %v4411
    %4461 = vmatprep.subr.mxu0 %v4414
    %4462 = vmatpush1.msra.mxu0 %v4413
    %4463 = vmatprep.subr.mxu0 %v4416
    %4464 = vmatpush1.msra.mxu0 %v4415
    %4465 = vmatprep.subr.mxu0 %v4418
    %4466 = vmatpush1.msra.mxu0 %v4417
    %4467 = vmatprep.subr.mxu0 %v4420
    %4468 = vmatpush1.msra.mxu0 %v4419
    %4469 = vmatprep.subr.mxu0 %v4422
    %4470 = vmatpush1.msra.mxu0 %v4421
    %4471 = vmatprep.subr.mxu0 %v4424
    %4472 = vmatpush1.msra.mxu0 %v4423
    %4473 = vmatprep.subr.mxu0 %v4426
    %4474 = vmatpush1.msra.mxu0 %v4425
    %4475 = vmatprep.subr.mxu0 %v4428
    %4476 = vmatpush1.msra.mxu0 %v4427
    %4477 = vmatprep.subr.mxu0 0.0
    %4478 = vmatpush1.msra.mxu0 0.0
    %4479 = vmatprep.subr.mxu0 0.0
    %4480 = vmatpush1.msra.mxu0 0.0
    %4481 = vmatprep.subr.mxu0 0.0
    %4482 = vmatpush1.msra.mxu0 0.0
    %4483 = vmatprep.subr.mxu0 0.0
    %4484 = vmatpush1.msra.mxu0 0.0
    %4485 = vmatprep.subr.mxu0 0.0
    %4486 = vmatpush1.msra.mxu0 0.0
    %4487 = vmatprep.subr.mxu0 0.0
    %4488 = vmatpush1.msra.mxu0 0.0
    %4489 = vmatprep.subr.mxu0 0.0
    %4490 = vmatpush1.msra.mxu0 0.0
    %4491 = vmatprep.subr.mxu0 0.0
    %4492 = vmatpush1.msra.mxu0 0.0
    %4493 = vmatprep.subr.mxu0 0.0
    %4494 = vmatpush1.msra.mxu0 0.0
    %4495 = vmatprep.subr.mxu0 0.0
    %4496 = vmatpush1.msra.mxu0 0.0
    %4497 = vmatprep.subr.mxu0 0.0
    %4498 = vmatpush1.msra.mxu0 0.0
    %4499 = vmatprep.subr.mxu0 0.0
    %4500 = vmatpush1.msra.mxu0 0.0
    %4501 = vmatprep.subr.mxu0 0.0
    %4502 = vmatpush1.msra.mxu0 0.0
    %4503 = vmatprep.subr.mxu0 0.0
    %4504 = vmatpush1.msra.mxu0 0.0
    %4505 = vmatprep.subr.mxu0 0.0
    %4506 = vmatpush1.msra.mxu0 0.0
    %4507 = vmatprep.subr.mxu0 0.0
    %4508 = vmatpush1.msra.mxu0 0.0
    %4509 = vmatprep.mubr.f32.mxu0 0.0
    %4510 = vmatmul.mubr.f32.gmra.mrb[0].mxu0 %v4443
    %v4511 = vpop.f32.mrb[0].mxu0
    %v4512 = vadd.f32 %v4434, %v4511
    %v4513 = vpop.f32.mrb[0].mxu0
    %v4514 = vadd.f32 %v4438, %v4513
    %4515 = vdwg.mxu0
    %v4516 = vxor.u32 %v4512, 2147483648
    %v4517 = vxor.u32 %v4514, 2147483648
    %v4518 = vmul.f32 %v4516, 1.442695
    %v4519 = vpow.pop %v4518
    %v4520 = vmul.f32 %v4517, 1.442695
    %v4521 = vpow.pop %v4520
    %v4522 = vadd.f32 %v4519, 1.0
    %v4523 = vadd.f32 %v4521, 1.0
    %v4524 = vrcp.pop %v4522
    %v4525 = vmul.f32 1.0, %v4524
    %v4526 = vrcp.pop %v4523
    %v4527 = vmul.f32 1.0, %v4526
    %v4530 = vcombine.low %v4525, %v4527
    %v4532 = vunpack.c.l.s4 1983009808
    %v4533 = vunpack.c.0.s8 %v4532
    %v4534 = vlaneseq
    %v4535 = vshrl.u32 %v4534, 7
    %v4536 = vsub.s32 %v4533, %v4535
    %v4537 = vrot.slane %v4530, %v4536
    %4539 = vst [vmem:[#allocation6] sm:$0xf] %v4537
    %v4540 = vrot.slane %v4525, 1
    %v4541 = vrot.slane %v4527, 1
    %v4544 = vadd.f32 %v4208, %v4540
    %v4545 = vadd.f32 %v4219, %v4541
    %v4546 = vadd.f32 %v4214, %v4540
    %v4547 = vadd.f32 %v4211, %v4541
    %v4548 = vld [vmem:[%s41] sm:$0x3]
    %v4549 = vld [vmem:[%s43] sm:$0x3]
    %vm4550 = vcmask 1047559
    %v4551 = vsel %vm4550, %v4544, 0.0
    %v4552 = vsel %vm4550, %v4545, 0.0
    %v4553 = vadd.f32 %v4551, %v4552
    %4554 = vadd.xlane.f32.xlu0 %v4553
    %v4555 = vpop.xlane.xlu0 %4554
    %vm4556 = vcmask 1040384
    %v4557 = vsel %vm4556, %v4546, 0.0
    %v4558 = vsel %vm4556, %v4547, 0.0
    %v4559 = vadd.f32 %v4557, %v4558
    %4560 = vadd.xlane.f32.xlu0 %v4559
    %v4561 = vpop.xlane.xlu0 %4560
    %v4562 = vrcp.pop 256.0
    %v4563 = vmul.f32 %v4555, %v4562
    %v4564 = vmul.f32 %v4561, %v4562
    %v4565 = vsub.f32 %v4544, %v4563
    %v4566 = vsub.f32 %v4545, %v4563
    %v4567 = vsub.f32 %v4546, %v4564
    %v4568 = vsub.f32 %v4547, %v4564
    %v4569 = vmul.f32 %v4565, %v4565
    %v4570 = vmul.f32 %v4566, %v4566
    %v4571 = vmul.f32 %v4567, %v4567
    %v4572 = vmul.f32 %v4568, %v4568
    %v4573 = vsel %vm4550, %v4569, 0.0
    %v4574 = vsel %vm4550, %v4570, 0.0
    %v4575 = vadd.f32 %v4573, %v4574
    %4576 = vadd.xlane.f32.xlu0 %v4575
    %v4577 = vpop.xlane.xlu0 %4576
    %v4578 = vsel %vm4556, %v4571, 0.0
    %v4579 = vsel %vm4556, %v4572, 0.0
    %v4580 = vadd.f32 %v4578, %v4579
    %4581 = vadd.xlane.f32.xlu0 %v4580
    %v4582 = vpop.xlane.xlu0 %4581
    %v4583 = vmul.f32 %v4577, %v4562
    %v4584 = vmul.f32 %v4582, %v4562
    %v4585 = vadd.f32 %v4583, 1e-05
    %v4586 = vadd.f32 %v4584, 1e-05
    %v4587 = vrsqrt.pop %v4585
    %v4588 = vrsqrt.pop %v4586
    %v4589 = vmul.f32 %v4565, %v4587
    %v4590 = vmul.f32 %v4566, %v4587
    %v4591 = vmul.f32 %v4567, %v4588
    %v4592 = vmul.f32 %v4568, %v4588
    %v4594 = vlaneseq
    %v4595 = vshrl.u32 %v4594, 7
    %v4596 = vsub.s32 0, %v4595
    %v4597 = vrot.slane %v4548, %v4596
    %v4598 = vlaneseq
    %v4599 = vshrl.u32 %v4598, 7
    %v4600 = vsub.s32 1, %v4599
    %v4601 = vrot.slane %v4548, %v4600
    %v4604 = vmul.f32 %v4589, %v4597
    %v4605 = vmul.f32 %v4590, %v4601
    %v4606 = vmul.f32 %v4591, %v4597
    %v4607 = vmul.f32 %v4592, %v4601
    %v4609 = vlaneseq
    %v4610 = vshrl.u32 %v4609, 7
    %v4611 = vsub.s32 0, %v4610
    %v4612 = vrot.slane %v4549, %v4611
    %v4613 = vlaneseq
    %v4614 = vshrl.u32 %v4613, 7
    %v4615 = vsub.s32 1, %v4614
    %v4616 = vrot.slane %v4549, %v4615
    %v4619 = vadd.f32 %v4604, %v4612
    %v4620 = vadd.f32 %v4605, %v4616
    %v4621 = vadd.f32 %v4606, %v4612
    %v4622 = vadd.f32 %v4607, %v4616
    %v4623 = vmul.f32 %v4619, %v4619
    %v4624 = vmul.f32 %v4620, %v4620
    %v4625 = vmul.f32 %v4621, %v4621
    %v4626 = vmul.f32 %v4622, %v4622
    %v4627 = vsel %vm4550, %v4623, 0.0
    %v4628 = vsel %vm4550, %v4624, 0.0
    %v4629 = vadd.f32 %v4627, %v4628
    %4630 = vadd.xlane.f32.xlu0 %v4629
    %v4631 = vpop.xlane.xlu0 %4630
    %v4632 = vsel %vm4556, %v4625, 0.0
    %v4633 = vsel %vm4556, %v4626, 0.0
    %v4634 = vadd.f32 %v4632, %v4633
    %4635 = vadd.xlane.f32.xlu0 %v4634
    %v4636 = vpop.xlane.xlu0 %4635
    %v4637 = vrsqrt.pop %v4631
    %v4638 = vmul.f32 %v4631, %v4637
    %vm4639 = vcmp.eq.f32.partialorder %v4631, inf
    %v4640 = vsel %vm4639, %v4631, %v4638
    %vm4641 = vcmp.eq.f32.partialorder %v4631, 0.0
    %v4642 = vand.u32 %v4631, 2147483648
    %v4643 = vsel %vm4641, %v4642, %v4640
    %v4644 = vrsqrt.pop %v4636
    %v4645 = vmul.f32 %v4636, %v4644
    %vm4646 = vcmp.eq.f32.partialorder %v4636, inf
    %v4647 = vsel %vm4646, %v4636, %v4645
    %vm4648 = vcmp.eq.f32.partialorder %v4636, 0.0
    %v4649 = vand.u32 %v4636, 2147483648
    %v4650 = vsel %vm4648, %v4649, %v4647
    %v4651 = vrcp.pop %v4643
    %v4652 = vmul.f32 %v4619, %v4651
    %v4653 = vmul.f32 %v4620, %v4651
    %v4654 = vrcp.pop %v4650
    %v4655 = vmul.f32 %v4621, %v4654
    %v4656 = vmul.f32 %v4622, %v4654
    %v4661 = vcombine.high %v4652, %v4653
    %v4663 = vunpack.c.l.s4 1983009808
    %v4664 = vunpack.c.0.s8 %v4663
    %v4665 = vlaneseq
    %v4666 = vshrl.u32 %v4665, 7
    %v4667 = vsub.s32 %v4664, %v4666
    %v4668 = vrot.slane %v4661, %v4667
    %v4669 = vcombine.high %v4668, %v4668
    %v4670 = vcombine.low %v4655, %v4656
    %v4672 = vunpack.c.l.s4 1983009808
    %v4673 = vunpack.c.0.s8 %v4672
    %v4674 = vlaneseq
    %v4675 = vshrl.u32 %v4674, 7
    %v4676 = vsub.s32 %v4673, %v4675
    %v4677 = vrot.slane %v4670, %v4676
    %vm4678 = vcmask 1042434
    %vm4679 = vmor %vm4556, %vm4678
    %vm4680 = vcmask 1044484
    %vm4681 = vmor %vm4679, %vm4680
    %vm4682 = vcmask 1046534
    %vm4683 = vmor %vm4681, %vm4682
    %v4684 = vrot.slane %v4669, 7
    %v4685 = vrot.slane %v4684, 2
    %v4686 = vrot.slane %v4677, 7
    %v4687 = vsel %vm4683, %v4685, %v4686
    %4689 = vst [vmem:[#allocation4] sm:$0xf] %v4687
    %v4690 = vld [vmem:[%s7] sm:$0xff]
    %v4691 = vld [vmem:[%s7 + $0x8] sm:$0xff]
    %v4692 = vld [vmem:[%s45] sm:$0xff]
    %v4693 = vld [vmem:[%s45 + $0x8] sm:$0xff]
    %v4694 = vld [vmem:[%s45 + $0x10] sm:$0xff]
    %v4695 = vld [vmem:[%s45 + $0x18] sm:$0xff]
    %v4696 = vld [vmem:[%s45 + $0x20] sm:$0xff]
    %v4697 = vld [vmem:[%s45 + $0x28] sm:$0xff]
    %v4698 = vld [vmem:[%s45 + $0x30] sm:$0xff]
    %v4699 = vld [vmem:[%s45 + $0x38] sm:$0xff]
    %v4700 = vld [vmem:[%s45 + $0x40] sm:$0xff]
    %v4701 = vld [vmem:[%s45 + $0x48] sm:$0xff]
    %v4702 = vld [vmem:[%s45 + $0x50] sm:$0xff]
    %v4703 = vld [vmem:[%s45 + $0x58] sm:$0xff]
    %v4704 = vld [vmem:[%s45 + $0x60] sm:$0xff]
    %v4705 = vld [vmem:[%s45 + $0x68] sm:$0xff]
    %v4706 = vld [vmem:[%s45 + $0x70] sm:$0xff]
    %v4707 = vld [vmem:[%s45 + $0x78] sm:$0xff]
    %v4708 = vld [vmem:[%s45 + $0x80] sm:$0xff]
    %v4709 = vld [vmem:[%s45 + $0x88] sm:$0xff]
    %v4710 = vld [vmem:[%s45 + $0x90] sm:$0xff]
    %v4711 = vld [vmem:[%s45 + $0x98] sm:$0xff]
    %v4712 = vld [vmem:[%s45 + $0xa0] sm:$0xff]
    %v4713 = vld [vmem:[%s45 + $0xa8] sm:$0xff]
    %v4714 = vld [vmem:[%s45 + $0xb0] sm:$0xff]
    %v4715 = vld [vmem:[%s45 + $0xb8] sm:$0xff]
    %v4716 = vld [vmem:[%s47] sm:$0x1]
    %v4718 = vlaneseq
    %v4719 = vshrl.u32 %v4718, 7
    %v4720 = vsub.s32 0, %v4719
    %v4721 = vrot.slane %v4716, %v4720
    %v4725 = vcombine.low %v4690, %v4691
    %v4726 = vcombine.high %v4690, %v4691
    %v4728 = vsel %vm4324, %v4726, 0
    %4730 = vmatprep.subr.mxu0 0.0
    %4731 = vmatpush1.msra.mxu0 %v4692
    %4732 = vmatprep.subr.mxu0 0.0
    %4733 = vmatpush1.msra.mxu0 %v4693
    %4734 = vmatprep.subr.mxu0 0.0
    %4735 = vmatpush1.msra.mxu0 %v4694
    %4736 = vmatprep.subr.mxu0 0.0
    %4737 = vmatpush1.msra.mxu0 %v4695
    %4738 = vmatprep.subr.mxu0 0.0
    %4739 = vmatpush1.msra.mxu0 %v4696
    %4740 = vmatprep.subr.mxu0 0.0
    %4741 = vmatpush1.msra.mxu0 %v4697
    %4742 = vmatprep.subr.mxu0 0.0
    %4743 = vmatpush1.msra.mxu0 %v4698
    %4744 = vmatprep.subr.mxu0 0.0
    %4745 = vmatpush1.msra.mxu0 %v4699
    %4746 = vmatprep.subr.mxu0 0.0
    %4747 = vmatpush1.msra.mxu0 %v4700
    %4748 = vmatprep.subr.mxu0 0.0
    %4749 = vmatpush1.msra.mxu0 %v4701
    %4750 = vmatprep.subr.mxu0 0.0
    %4751 = vmatpush1.msra.mxu0 %v4702
    %4752 = vmatprep.subr.mxu0 0.0
    %4753 = vmatpush1.msra.mxu0 %v4703
    %4754 = vmatprep.subr.mxu0 0.0
    %4755 = vmatpush1.msra.mxu0 %v4704
    %4756 = vmatprep.subr.mxu0 0.0
    %4757 = vmatpush1.msra.mxu0 %v4705
    %4758 = vmatprep.subr.mxu0 0.0
    %4759 = vmatpush1.msra.mxu0 %v4706
    %4760 = vmatprep.subr.mxu0 0.0
    %4761 = vmatpush1.msra.mxu0 %v4707
    %4762 = vmatprep.subr.mxu0 0.0
    %4763 = vmatpush1.msra.mxu0 %v4708
    %4764 = vmatprep.subr.mxu0 0.0
    %4765 = vmatpush1.msra.mxu0 %v4709
    %4766 = vmatprep.subr.mxu0 0.0
    %4767 = vmatpush1.msra.mxu0 %v4710
    %4768 = vmatprep.subr.mxu0 0.0
    %4769 = vmatpush1.msra.mxu0 %v4711
    %4770 = vmatprep.subr.mxu0 0.0
    %4771 = vmatpush1.msra.mxu0 %v4712
    %4772 = vmatprep.subr.mxu0 0.0
    %4773 = vmatpush1.msra.mxu0 %v4713
    %4774 = vmatprep.subr.mxu0 0.0
    %4775 = vmatpush1.msra.mxu0 %v4714
    %4776 = vmatprep.subr.mxu0 0.0
    %4777 = vmatpush1.msra.mxu0 %v4715
    %4778 = vmatprep.subr.mxu0 0.0
    %4779 = vmatpush1.msra.mxu0 0.0
    %4780 = vmatprep.subr.mxu0 0.0
    %4781 = vmatpush1.msra.mxu0 0.0
    %4782 = vmatprep.subr.mxu0 0.0
    %4783 = vmatpush1.msra.mxu0 0.0
    %4784 = vmatprep.subr.mxu0 0.0
    %4785 = vmatpush1.msra.mxu0 0.0
    %4786 = vmatprep.subr.mxu0 0.0
    %4787 = vmatpush1.msra.mxu0 0.0
    %4788 = vmatprep.subr.mxu0 0.0
    %4789 = vmatpush1.msra.mxu0 0.0
    %4790 = vmatprep.subr.mxu0 0.0
    %4791 = vmatpush1.msra.mxu0 0.0
    %4792 = vmatprep.subr.mxu0 0.0
    %4793 = vmatpush1.msra.mxu0 0.0
    %4794 = vmatprep.mubr.f32.mxu0 %v4728
    %4795 = vmatmul.mubr.f32.gmra.mrb[0].mxu0 %v4725
    %v4796 = vpop.f32.mrb[0].mxu0
    %v4797 = vadd.f32 %v4721, %v4796
    %v4798 = vpop.f32.mrb[0].mxu0
    %4799 = vdwg.mxu0
    %v4801 = vcombine.high %v4797, %v4797
    %vm4803 = vcmask 1043456
    %v4804 = vsel %vm4803, %v4797, 0.0
    %v4805 = vrot.slane %v4804, 4
    %v4806 = vadd.f32 %v4804, %v4805
    %v4807 = vrot.slane %v4806, 2
    %v4808 = vadd.f32 %v4806, %v4807
    %v4809 = vrot.slane %v4808, 1
    %v4810 = vadd.f32 %v4808, %v4809
    %v4811 = vsel %vm4803, %v4801, 0.0
    %v4812 = vrot.slane %v4811, 4
    %v4813 = vadd.f32 %v4811, %v4812
    %v4814 = vrot.slane %v4813, 2
    %v4815 = vadd.f32 %v4813, %v4814
    %v4816 = vrot.slane %v4815, 1
    %v4817 = vadd.f32 %v4815, %v4816
    %v4818 = vrcp.pop 4.0
    %v4819 = vmul.f32 %v4810, %v4818
    %v4820 = vmul.f32 %v4817, %v4818
    %v4821 = vld [vmem:[%s49] sm:$0xff]
    %v4822 = vld [vmem:[%s49 + $0x8] sm:$0xff]
    %v4823 = vld [vmem:[%s49 + $0x10] sm:$0xff]
    %v4824 = vld [vmem:[%s49 + $0x18] sm:$0xff]
    %v4825 = vld [vmem:[%s49 + $0x20] sm:$0xff]
    %v4826 = vld [vmem:[%s49 + $0x28] sm:$0xff]
    %v4827 = vld [vmem:[%s49 + $0x30] sm:$0xff]
    %v4828 = vld [vmem:[%s49 + $0x38] sm:$0xff]
    %v4829 = vld [vmem:[%s49 + $0x40] sm:$0xff]
    %v4830 = vld [vmem:[%s49 + $0x48] sm:$0xff]
    %v4831 = vld [vmem:[%s49 + $0x50] sm:$0xff]
    %v4832 = vld [vmem:[%s49 + $0x58] sm:$0xff]
    %v4833 = vld [vmem:[%s49 + $0x60] sm:$0xff]
    %v4834 = vld [vmem:[%s49 + $0x68] sm:$0xff]
    %v4835 = vld [vmem:[%s49 + $0x70] sm:$0xff]
    %v4836 = vld [vmem:[%s49 + $0x78] sm:$0xff]
    %v4837 = vld [vmem:[%s51] sm:$0x1]
    %v4839 = vlaneseq
    %v4840 = vshrl.u32 %v4839, 7
    %v4841 = vsub.s32 0, %v4840
    %v4842 = vrot.slane %v4837, %v4841
    %v4846 = vsel %vm1289, %v4820, %v4819
    %4848 = vmatprep.subr.mxu0 0.0
    %4849 = vmatpush1.msra.mxu0 %v4821
    %4850 = vmatprep.subr.mxu0 0.0
    %4851 = vmatpush1.msra.mxu0 %v4822
    %4852 = vmatprep.subr.mxu0 0.0
    %4853 = vmatpush1.msra.mxu0 %v4823
    %4854 = vmatprep.subr.mxu0 0.0
    %4855 = vmatpush1.msra.mxu0 %v4824
    %4856 = vmatprep.subr.mxu0 0.0
    %4857 = vmatpush1.msra.mxu0 %v4825
    %4858 = vmatprep.subr.mxu0 0.0
    %4859 = vmatpush1.msra.mxu0 %v4826
    %4860 = vmatprep.subr.mxu0 0.0
    %4861 = vmatpush1.msra.mxu0 %v4827
    %4862 = vmatprep.subr.mxu0 0.0
    %4863 = vmatpush1.msra.mxu0 %v4828
    %4864 = vmatprep.subr.mxu0 0.0
    %4865 = vmatpush1.msra.mxu0 %v4829
    %4866 = vmatprep.subr.mxu0 0.0
    %4867 = vmatpush1.msra.mxu0 %v4830
    %4868 = vmatprep.subr.mxu0 0.0
    %4869 = vmatpush1.msra.mxu0 %v4831
    %4870 = vmatprep.subr.mxu0 0.0
    %4871 = vmatpush1.msra.mxu0 %v4832
    %4872 = vmatprep.subr.mxu0 0.0
    %4873 = vmatpush1.msra.mxu0 %v4833
    %4874 = vmatprep.subr.mxu0 0.0
    %4875 = vmatpush1.msra.mxu0 %v4834
    %4876 = vmatprep.subr.mxu0 0.0
    %4877 = vmatpush1.msra.mxu0 %v4835
    %4878 = vmatprep.subr.mxu0 0.0
    %4879 = vmatpush1.msra.mxu0 %v4836
    %4880 = vmatprep.subr.mxu0 0.0
    %4881 = vmatpush1.msra.mxu0 0.0
    %4882 = vmatprep.subr.mxu0 0.0
    %4883 = vmatpush1.msra.mxu0 0.0
    %4884 = vmatprep.subr.mxu0 0.0
    %4885 = vmatpush1.msra.mxu0 0.0
    %4886 = vmatprep.subr.mxu0 0.0
    %4887 = vmatpush1.msra.mxu0 0.0
    %4888 = vmatprep.subr.mxu0 0.0
    %4889 = vmatpush1.msra.mxu0 0.0
    %4890 = vmatprep.subr.mxu0 0.0
    %4891 = vmatpush1.msra.mxu0 0.0
    %4892 = vmatprep.subr.mxu0 0.0
    %4893 = vmatpush1.msra.mxu0 0.0
    %4894 = vmatprep.subr.mxu0 0.0
    %4895 = vmatpush1.msra.mxu0 0.0
    %4896 = vmatprep.subr.mxu0 0.0
    %4897 = vmatpush1.msra.mxu0 0.0
    %4898 = vmatprep.subr.mxu0 0.0
    %4899 = vmatpush1.msra.mxu0 0.0
    %4900 = vmatprep.subr.mxu0 0.0
    %4901 = vmatpush1.msra.mxu0 0.0
    %4902 = vmatprep.subr.mxu0 0.0
    %4903 = vmatpush1.msra.mxu0 0.0
    %4904 = vmatprep.subr.mxu0 0.0
    %4905 = vmatpush1.msra.mxu0 0.0
    %4906 = vmatprep.subr.mxu0 0.0
    %4907 = vmatpush1.msra.mxu0 0.0
    %4908 = vmatprep.subr.mxu0 0.0
    %4909 = vmatpush1.msra.mxu0 0.0
    %4910 = vmatprep.subr.mxu0 0.0
    %4911 = vmatpush1.msra.mxu0 0.0
    %4912 = vmatprep.mubr.f32.mxu0 0.0
    %4913 = vmatmul.mubr.f32.gmra.mrb[0].mxu0 %v4846
    %v4914 = vpop.f32.mrb[0].mxu0
    %v4915 = vadd.f32 %v4842, %v4914
    %v4916 = vpop.f32.mrb[0].mxu0
    %4917 = vdwg.mxu0
    %v4918 = vtanh.pop %v4915
    %4919 = vst [vmem:[#allocation2] sm:$0x3] %v4918
    // Predicated region
    $region106: #{ours_vilt_trace_forward.1} parent=1 // pred_check
      _
    $region107: #{ours_vilt_trace_forward.1} parent=1 // pred_check_branch
      %4921 = sbr.rel (0) target = $region109
    $region108: #{ours_vilt_trace_forward.1} parent=1 // pred_region
      %s4923 = ssub.s32 32, 32
      %4924 = vsyncadd [#allocation3], %s4923
      %s4926 = sshll.u32 [#allocation2], 4
      %s4927 = int_to_ptr.vmem [resolvable:$true] %s4926
      %4929 = dma.vmem_to_hbm [thread:$0]  %s4927, 32, %s53, [#allocation3]
    $region109: #{ours_vilt_trace_forward.1} parent=1 // pred_fallthru
      _
    // Predicated region
    $region110: #{ours_vilt_trace_forward.1} parent=1 // pred_check
      _
    $region111: #{ours_vilt_trace_forward.1} parent=1 // pred_check_branch
      %4931 = sbr.rel (0) target = $region113
    $region112: #{ours_vilt_trace_forward.1} parent=1 // pred_region
      %s4933 = ssub.s32 64, 64
      %4934 = vsyncadd [#allocation5], %s4933
      %s4936 = sshll.u32 [#allocation4], 4
      %s4937 = int_to_ptr.vmem [resolvable:$true] %s4936
      %4939 = dma.vmem_to_hbm [thread:$0]  %s4937, 64, %s55, [#allocation5]
    $region113: #{ours_vilt_trace_forward.1} parent=1 // pred_fallthru
      _
    // Predicated region
    $region114: #{ours_vilt_trace_forward.1} parent=1 // pred_check
      _
    $region115: #{ours_vilt_trace_forward.1} parent=1 // pred_check_branch
      %4941 = sbr.rel (0) target = $region117
    $region116: #{ours_vilt_trace_forward.1} parent=1 // pred_region
      _
    $region117: #{ours_vilt_trace_forward.1} parent=1 // pred_fallthru
      _
    // Predicated region
    $region118: #{ours_vilt_trace_forward.1} parent=1 // pred_check
      _
    $region119: #{ours_vilt_trace_forward.1} parent=1 // pred_check_branch
      %4943 = sbr.rel (0) target = $region121
    $region120: #{ours_vilt_trace_forward.1} parent=1 // pred_region
      %s4945 = ssub.s32 64, 64
      %4946 = vsyncadd [#allocation5], %s4945
      %s4948 = sshll.u32 [#allocation6], 4
      %s4949 = int_to_ptr.vmem [resolvable:$true] %s4948
      %4951 = dma.vmem_to_hbm [thread:$0]  %s4949, 64, %s59, [#allocation5]
    $region121: #{ours_vilt_trace_forward.1} parent=1 // pred_fallthru
      _
    // Predicated region
    $region122: #{ours_vilt_trace_forward.1} parent=1 // pred_check
      _
    $region123: #{ours_vilt_trace_forward.1} parent=1 // pred_check_branch
      %4953 = sbr.rel (0) target = $region125
    $region124: #{ours_vilt_trace_forward.1} parent=1 // pred_region
      %4954 = dma.done [#allocation3], 32
    $region125: #{ours_vilt_trace_forward.1} parent=1 // pred_fallthru
      _
    // Predicated region
    $region126: #{ours_vilt_trace_forward.1} parent=1 // pred_check
      _
    $region127: #{ours_vilt_trace_forward.1} parent=1 // pred_check_branch
      %4956 = sbr.rel (0) target = $region129
    $region128: #{ours_vilt_trace_forward.1} parent=1 // pred_region
      %4957 = dma.done [#allocation5], 64
    $region129: #{ours_vilt_trace_forward.1} parent=1 // pred_fallthru
      _
    // Predicated region
    $region130: #{ours_vilt_trace_forward.1} parent=1 // pred_check
      _
    $region131: #{ours_vilt_trace_forward.1} parent=1 // pred_check_branch
      %4959 = sbr.rel (0) target = $region133
    $region132: #{ours_vilt_trace_forward.1} parent=1 // pred_region
      _
    $region133: #{ours_vilt_trace_forward.1} parent=1 // pred_fallthru
      _
    // Predicated region
    $region134: #{ours_vilt_trace_forward.1} parent=1 // pred_check
      _
    $region135: #{ours_vilt_trace_forward.1} parent=1 // pred_check_branch
      %4961 = sbr.rel (0) target = $region137
    $region136: #{ours_vilt_trace_forward.1} parent=1 // pred_region
      %4962 = dma.done [#allocation5], 64
    $region137: #{ours_vilt_trace_forward.1} parent=1 // pred_fallthru
      _
    %4963 = vsyncpa [#allocation3], 1
    %4964 = vsyncpa [#allocation5], 1

</llo_original>
